<compile_context>
chip_gen: v7x
topology: tpu7x:2x2x1
jax: 0.10.0
libtpu: 0.0.40
codegen_flags: <defaults>
</compile_context>

<pallas_src>
import functools

import jax
import jax.numpy as jnp
from jax.experimental import pallas as pl
from jax.experimental.pallas import tpu as pltpu


# ----------------------------------------------------------------------------
# Config (small, deterministic, consistent with the PyTorch module)
# ----------------------------------------------------------------------------
CFG = dict(vocab_size=64, d_model=32, n_heads=2, n_layers=2, d_ffn=None)

BF16 = jnp.bfloat16
F32 = jnp.float32

# Generation-aware scoped-VMEM budget (v5e/v6e: 128 MiB, v7x: 64 MiB per TC).
try:
    _VMEM_CAP = int(pltpu.get_tpu_info().vmem_capacity_bytes)
except Exception:  # pragma: no cover - conservative fallback (v7x-sized)
    _VMEM_CAP = 64 * 1024 * 1024
VMEM_LIMIT = int(min(_VMEM_CAP // 2, 48 * 1024 * 1024))

# Matmul tile targets: 256-multiples match v6e/v7x's 256-wide MXU, 128-aligned
# for v5e.  At this toy model every matmul is a single tile anyway.
TM_TARGET, TN_TARGET, TK_TARGET = 256, 256, 512

# WKV time-chunk size.
# TODO(synk): raising this toward 128/256 requires sub-chunk stabilization of
# the exp(-cum) factorization (it can overflow for strongly negative decays).
WKV_CHUNK = 32


# ----------------------------------------------------------------------------
# Tile selection helpers
# ----------------------------------------------------------------------------
def _pick_tile(dim, target, align):
    """Largest tile <= target that divides dim and respects `align`; else dim."""
    if dim <= target:
        return dim
    t = (target // align) * align
    while t >= align:
        if dim % t == 0:
            return t
        t -= align
    return dim


def _pick_chunk(T, target=WKV_CHUNK):
    """WKV time-chunk: <= target, divides T, multiple of 8 (or T itself)."""
    if T <= target:
        return T
    best = 0
    for tc in range(8, target + 1, 8):
        if T % tc == 0:
            best = tc
    return best if best else T


def _apply_act(y, name):
    if name == "tanh":
        return jnp.tanh(y)
    if name == "relu2":
        return jnp.square(jnp.maximum(y, 0.0))
    return y


# ----------------------------------------------------------------------------
# Tiled matmul with fused prologue / epilogues
# ----------------------------------------------------------------------------
def _bmm_kernel(*refs, act, pre_act, has_bias, has_lerp, has_gate, has_add,
                multi_k):
    it = iter(refs)
    x_ref, w_ref = next(it), next(it)
    bias_ref = next(it) if has_bias else None
    lx_ref = next(it) if has_lerp else None
    ls_ref = next(it) if has_lerp else None
    gate_ref = next(it) if has_gate else None
    add_ref = next(it) if has_add else None
    o_ref = next(it)
    acc_ref = next(it) if multi_k else None

    x = x_ref[...]
    if pre_act is not None:
        x = _apply_act(x, pre_act)
    part = jnp.dot(x, w_ref[...], preferred_element_type=jnp.float32)

    def epilogue(y):
        y = _apply_act(y, act)
        if has_bias:
            y = y + bias_ref[...].astype(jnp.float32)
        if has_lerp:
            xv = lx_ref[...].astype(jnp.float32)
            y = xv + y * (ls_ref[...].astype(jnp.float32) - xv)   # lerp(x,xs,y)
        if has_gate:
            y = y * jax.nn.sigmoid(gate_ref[...].astype(jnp.float32))
        if has_add:
            y = y + add_ref[...].astype(jnp.float32)
        return y.astype(o_ref.dtype)

    if multi_k:
        kk = pl.program_id(2)

        @pl.when(kk == 0)
        def _():
            acc_ref[...] = part

        @pl.when(kk != 0)
        def _():
            acc_ref[...] += part

        @pl.when(kk == pl.num_programs(2) - 1)
        def _():
            o_ref[...] = epilogue(acc_ref[...])
    else:
        # Single K step: no accumulator round-trip, no zero-init.
        o_ref[...] = epilogue(part)


def p_bmm(x, w, *, act=None, pre_act=None, bias=None, lerp=None, gate=None,
          add=None, out_dtype=F32):
    """Tiled matmul `out = epilogue(pre_act(x) @ w)`.

    x: (M, K) bf16 (preferred), w: (K, N) bf16, bias: (1, N),
    lerp: tuple of two (M, N), gate/add: (M, N).  Returns (M, N) out_dtype.
    """
    M, Kd = x.shape
    Kw, N = w.shape
    assert Kd == Kw
    tm = _pick_tile(M, TM_TARGET, 8)
    tn = _pick_tile(N, TN_TARGET, 128)
    tk = _pick_tile(Kd, TK_TARGET, 128)
    nk = Kd // tk
    multi_k = nk > 1

    if multi_k:
        grid = (M // tm, N // tn, nk)
        x_map = lambda i, j, kk: (i, kk)
        w_map = lambda i, j, kk: (kk, j)
        n_map = lambda i, j, kk: (0, j)
        mn_map = lambda i, j, kk: (i, j)
        dims = ("parallel", "parallel", "arbitrary")
        scratch = [pltpu.VMEM((tm, tn), jnp.float32)]
    else:
        grid = (M // tm, N // tn)
        x_map = lambda i, j: (i, 0)
        w_map = lambda i, j: (0, j)
        n_map = lambda i, j: (0, j)
        mn_map = lambda i, j: (i, j)
        dims = ("parallel", "parallel")
        scratch = []

    in_arrays = [x, w]
    in_specs = [pl.BlockSpec((tm, tk), x_map),
                pl.BlockSpec((tk, tn), w_map)]
    has_bias, has_lerp = bias is not None, lerp is not None
    has_gate, has_add = gate is not None, add is not None
    if has_bias:
        in_arrays.append(bias)
        in_specs.append(pl.BlockSpec((1, tn), n_map))
    if has_lerp:
        lx, ls = lerp
        in_arrays += [lx, ls]
        in_specs += [pl.BlockSpec((tm, tn), mn_map),
                     pl.BlockSpec((tm, tn), mn_map)]
    if has_gate:
        in_arrays.append(gate)
        in_specs.append(pl.BlockSpec((tm, tn), mn_map))
    if has_add:
        in_arrays.append(add)
        in_specs.append(pl.BlockSpec((tm, tn), mn_map))

    kernel = functools.partial(_bmm_kernel, act=act, pre_act=pre_act,
                               has_bias=has_bias, has_lerp=has_lerp,
                               has_gate=has_gate, has_add=has_add,
                               multi_k=multi_k)
    return pl.pallas_call(
        kernel,
        grid=grid,
        in_specs=in_specs,
        out_specs=pl.BlockSpec((tm, tn), mn_map),
        out_shape=jax.ShapeDtypeStruct((M, N), out_dtype),
        scratch_shapes=scratch,
        compiler_params=pltpu.CompilerParams(
            dimension_semantics=dims, vmem_limit_bytes=VMEM_LIMIT),
    )(*in_arrays)


# ----------------------------------------------------------------------------
# Chunked WKV recurrence kernel (fused -exp decay, GroupNorm, SiLU gating)
# ----------------------------------------------------------------------------
def _wkv_kernel(r_ref, k_ref, v_ref, lnl_ref, g_ref, u_ref, gw_ref, gb_ref,
                s0_ref, out_ref, st_ref, *, chunk, d_head, gn_eps):
    c = pl.program_id(2)

    # Resident output block carries the per-(batch, head) kv-state (value-major).
    @pl.when(c == 0)
    def _():
        st_ref[...] = s0_ref[...]

    Tc, K = chunk, d_head
    lw = -jnp.exp(lnl_ref[0, 0].astype(jnp.float32))        # (Tc, K), <= 0
    t_i = jax.lax.broadcasted_iota(jnp.int32, (Tc, Tc), 0)
    s_i = jax.lax.broadcasted_iota(jnp.int32, (Tc, Tc), 1)
    tri_inc = (s_i <= t_i).astype(jnp.float32)               # inclusive tri
    causal = s_i < t_i                                       # strictly causal

    # Cumulative log-decay inside the chunk via a triangular matmul (MXU).
    cum = jnp.dot(tri_inc, lw, preferred_element_type=jnp.float32)
    cum_ex = cum - lw                                        # exclusive cumsum
    cum_all = cum[Tc - 1:Tc, :]                              # (1, K)

    r = r_ref[0, 0].astype(jnp.float32)
    k = k_ref[0, 0].astype(jnp.float32)
    v = v_ref[0, 0].astype(jnp.float32)
    s_t = st_ref[0, 0]                                       # (Kv, Kk) f32

    # bf16 MXU operands, f32 accumulation.  Safe for Tc <= 32 (see TODO above).
    r_q = (r * jnp.exp(cum_ex)).astype(jnp.bfloat16)
    k_b = (k * jnp.exp(-cum)).astype(jnp.bfloat16)
    k_e = (k * jnp.exp(cum_all - cum)).astype(jnp.bfloat16)
    v_b = v.astype(jnp.bfloat16)

    # inter-chunk (carried state) + causal intra-chunk + current-token bonus
    inter = jax.lax.dot_general(r_q, s_t.astype(jnp.bfloat16),
                                (((1,), (1,)), ((), ())),
                                preferred_element_type=jnp.float32)
    scores = jax.lax.dot_general(r_q, k_b, (((1,), (1,)), ((), ())),
                                 preferred_element_type=jnp.float32)
    scores = jnp.where(causal, scores, 0.0).astype(jnp.bfloat16)
    intra = jnp.dot(scores, v_b, preferred_element_type=jnp.float32)
    u = u_ref[0].astype(jnp.float32)                         # (1, K)
    diag = jnp.sum(r * u * k, axis=-1, keepdims=True)
    o = inter + intra + diag * v                             # (Tc, K)

    # State update (value-major): S <- S * exp(cum_all) + v^T @ k_e
    st_ref[0, 0] = (
        s_t * jnp.exp(cum_all)
        + jax.lax.dot_general(v_b, k_e, (((0,), (0,)), ((), ())),
                              preferred_element_type=jnp.float32))

    # Fused GroupNorm (per head, eps=0.00064) + affine + SiLU(gate)
    mu = jnp.mean(o, axis=-1, keepdims=True)
    oc = o - mu
    var = jnp.mean(oc * oc, axis=-1, keepdims=True)
    on = oc * jax.lax.rsqrt(var + gn_eps) * gw_ref[0] + gb_ref[0]
    g = g_ref[0, 0].astype(jnp.float32)
    out_ref[0, 0] = (on * (g * jax.nn.sigmoid(g))).astype(out_ref.dtype)


def p_wkv(r, k, v, lnl, gate, bonus, gn_w, gn_b, kv_state0_t):
    """Chunked RWKV-6 WKV recurrence (per-head-contiguous layout).

    r, k, v, gate: (B, H, T, K) bf16;  lnl: (B, H, T, K) f32
    bonus/gn_w/gn_b: (H, 1, K) f32;  kv_state0_t: (B, H, K, K) f32 (value-major)
    Returns out (B, H, T, K) bf16 and the final value-major kv-state.
    """
    B, H, T, K = r.shape
    Tc = _pick_chunk(T)
    grid = (B, H, T // Tc)

    seq_spec = pl.BlockSpec((1, 1, Tc, K), lambda b, h, c: (b, h, c, 0))
    vec_spec = pl.BlockSpec((1, 1, K), lambda b, h, c: (h, 0, 0))
    st_spec = pl.BlockSpec((1, 1, K, K), lambda b, h, c: (b, h, 0, 0))

    kernel = functools.partial(_wkv_kernel, chunk=Tc, d_head=K, gn_eps=0.00064)
    out, s_final = pl.pallas_call(
        kernel,
        grid=grid,
        in_specs=[seq_spec] * 5 + [vec_spec] * 3 + [st_spec],
        out_specs=[seq_spec, st_spec],
        out_shape=[jax.ShapeDtypeStruct((B, H, T, K), BF16),
                   jax.ShapeDtypeStruct((B, H, K, K), jnp.float32)],
        compiler_params=pltpu.CompilerParams(
            dimension_semantics=("parallel", "parallel", "arbitrary"),
            vmem_limit_bytes=VMEM_LIMIT),
    )(r, k, v, lnl, gate, bonus, gn_w, gn_b, kv_state0_t)
    return out, s_final


# ----------------------------------------------------------------------------
# Plain-JAX glue (LayerNorm, token-shift, lerps) -- XLA fuses these
# ----------------------------------------------------------------------------
def _layernorm(x, g, b, eps=1e-5):
    mu = jnp.mean(x, axis=-1, keepdims=True)
    xc = x - mu
    var = jnp.mean(xc * xc, axis=-1, keepdims=True)
    return xc * jax.lax.rsqrt(var + eps) * g + b


# ----------------------------------------------------------------------------
# Model
# ----------------------------------------------------------------------------
def time_mixer(hidden_in, x_state, kv_state, p, cfg):
    B, T, C = hidden_in.shape
    H = cfg["n_heads"]
    K = C // H
    M = B * T

    x = _layernorm(hidden_in, p["ln_g"], p["ln_b"])
    x_state_out = x[:, -1]
    x_shift = jnp.concatenate([x_state[:, None, :], x[:, :-1]], axis=1)
    x_pre = x + p["ddlerp_premix"] * (x_shift - x)

    x2 = x.reshape(M, C)
    xs2 = x_shift.reshape(M, C)

    # (1) 5-way ddlerp LoRA-A, lane-dense (M, 5*rank) with fused tanh.
    h_cat = p_bmm(x_pre.reshape(M, C).astype(BF16), p["dd_Wa_cat"],
                  act="tanh", out_dtype=BF16)
    # (2) LoRA-B block-diagonal matmul, fused +base and lerp(x, x_shift, .).
    dd = p_bmm(h_cat, p["dd_Wb_bd"], bias=p["dd_base_cat"],
               lerp=(jnp.tile(x2, (1, 5)), jnp.tile(xs2, (1, 5))),
               out_dtype=BF16)        # (M, 5C): [key|value|recept|gate|decay]
    # (3) key/value/receptance/gate projections + decay LoRA-A, block-diagonal.
    pj = p_bmm(dd, p["W_kvrg_dwa_bd"], out_dtype=BF16)    # (M, 4C + 64)
    # (4) decay LoRA-B with the tanh fused as an input prologue.
    lnl = p_bmm(pj[:, 4 * C:], p["decay_Wb"], pre_act="tanh",
                bias=p["decay_base"], out_dtype=F32)       # (M, C)

    def to_bhtk(a):                   # (M, C) -> (B, H, T, K), head-contiguous
        return a.reshape(B, T, H, K).transpose(0, 2, 1, 3)

    k = to_bhtk(pj[:, 0 * C:1 * C])
    v = to_bhtk(pj[:, 1 * C:2 * C])
    r = to_bhtk(pj[:, 2 * C:3 * C])
    g = to_bhtk(pj[:, 3 * C:4 * C])
    lnl = to_bhtk(lnl)

    # Store the carried state value-major inside the kernel so the per-chunk
    # decay is a lane-aligned broadcast multiply.
    kv_t = jnp.swapaxes(kv_state, -1, -2)
    wkv, kv_t_new = p_wkv(r, k, v, lnl, g, p["bonus"], p["gn_weight"],
                          p["gn_bias"], kv_t)
    kv_new = jnp.swapaxes(kv_t_new, -1, -2)
    wkv2 = wkv.transpose(0, 2, 1, 3).reshape(M, C)         # (M, C) bf16

    out = p_bmm(wkv2, p["output"], add=hidden_in.reshape(M, C), out_dtype=F32)
    return out.reshape(B, T, C), x_state_out, kv_new


def channel_mixer(hidden_in, x_state, p):
    B, T, C = hidden_in.shape
    M = B * T
    d_ffn = p["W_out"].shape[0]

    x = _layernorm(hidden_in, p["ln_g"], p["ln_b"])
    x_state_out = x[:, -1]
    x_shift = jnp.concatenate([x_state[:, None, :], x[:, :-1]], axis=1)
    x_in = x + p["ts_in"] * (x_shift - x)
    x_gate = x + p["ts_gate"] * (x_shift - x)

    # One block-diagonal call for W_in and the gate projection (lane-dense).
    xcat = jnp.concatenate([x_in, x_gate], axis=-1).reshape(M, 2 * C)
    hg = p_bmm(xcat.astype(BF16), p["Win_gate_bd"], out_dtype=BF16)
    # relu^2 fused as the W_out prologue; sigmoid-gate + residual in epilogue.
    out = p_bmm(hg[:, :d_ffn], p["W_out"], pre_act="relu2",
                gate=hg[:, d_ffn:], add=hidden_in.reshape(M, C),
                out_dtype=F32)
    return out.reshape(B, T, C), x_state_out


def rwkv_forward(tokens, params, cfg):
    C = cfg["d_model"]
    H = cfg["n_heads"]
    K = C // H
    V = cfg["vocab_size"]
    B, T = tokens.shape
    M = B * T

    x = jnp.take(params["embed"], tokens, axis=0)
    x = _layernorm(x, params["embed_norm_g"], params["embed_norm_b"])

    states = []
    for lp in params["layers"]:
        tm_x = jnp.zeros((B, C), F32)
        kv = jnp.zeros((B, H, K, K), F32)
        cm_x = jnp.zeros((B, C), F32)
        x, tm_x, kv = time_mixer(x, tm_x, kv, lp["tm"], cfg)
        x, cm_x = channel_mixer(x, cm_x, lp["cm"])
        states.append((tm_x, kv, cm_x))

    xf = _layernorm(x, params["head_norm_g"], params["head_norm_b"])
    logits = p_bmm(xf.reshape(M, C).astype(BF16), params["lm_head_unembed"],
                   out_dtype=F32)
    return logits.reshape(B, T, V), states


# ----------------------------------------------------------------------------
# Deterministic parameter init (shapes follow the PyTorch __init__)
# ----------------------------------------------------------------------------
def init_params(key, cfg):
    C = cfg["d_model"]
    H = cfg["n_heads"]
    K = C // H
    V = cfg["vocab_size"]
    d_ffn = cfg["d_ffn"] or int(C * 3.5) // 32 * 32
    rank_dd, rank_decay = 32, 64            # d_model < 4096 branch of LoRARanks

    keys = iter(jax.random.split(key, 4096))

    def nrm(shape, scale=0.02):
        return (scale * jax.random.normal(next(keys), shape)).astype(F32)

    bdiag = jax.scipy.linalg.block_diag

    layers = []
    for _ in range(cfg["n_layers"]):
        # ddlerp LoRA order: key, value, receptance, gate, decay
        wa = [nrm((C, rank_dd)) for _ in range(5)]
        wb = [nrm((rank_dd, C)) for _ in range(5)]
        w_k, w_v, w_r, w_g = (nrm((C, C)) for _ in range(4))
        decay_wa = nrm((C, rank_decay))
        tm = dict(
            ln_g=jnp.ones((C,), F32), ln_b=jnp.zeros((C,), F32),
            ddlerp_premix=nrm((1, 1, C), 0.1),
            dd_Wa_cat=jnp.concatenate(wa, axis=1).astype(BF16),      # (C, 5r)
            dd_Wb_bd=bdiag(*wb).astype(BF16),                        # (5r, 5C)
            dd_base_cat=nrm((1, 5 * C), 0.1),
            W_kvrg_dwa_bd=bdiag(w_k, w_v, w_r, w_g,
                                decay_wa).astype(BF16),              # (5C, 4C+64)
            decay_Wb=nrm((rank_decay, C)).astype(BF16),
            decay_base=nrm((1, C), 0.1),
            output=nrm((C, C)).astype(BF16),
            bonus=jnp.ones((H, 1, K), F32),
            gn_weight=jnp.ones((H, 1, K), F32),
            gn_bias=jnp.zeros((H, 1, K), F32),
        )
        w_in = nrm((C, d_ffn))
        w_gate_cm = nrm((C, C))
        cm = dict(
            ln_g=jnp.ones((C,), F32), ln_b=jnp.zeros((C,), F32),
            ts_in=nrm((1, 1, C), 0.1), ts_gate=nrm((1, 1, C), 0.1),
            Win_gate_bd=bdiag(w_in, w_gate_cm).astype(BF16),         # (2C, dffn+C)
            W_out=nrm((d_ffn, C)).astype(BF16),
        )
        layers.append(dict(tm=tm, cm=cm))

    return dict(
        embed=nrm((V, C), 0.5),
        embed_norm_g=jnp.ones((C,), F32), embed_norm_b=jnp.zeros((C,), F32),
        layers=layers,
        head_norm_g=jnp.ones((C,), F32), head_norm_b=jnp.zeros((C,), F32),
        lm_head_unembed=nrm((C, V)).astype(BF16),
    )


# ----------------------------------------------------------------------------
if __name__ == "__main__":
    key = jax.random.PRNGKey(0)
    pkey, tkey = jax.random.split(key)

    params = init_params(pkey, CFG)
    B, T = 2, 8
    tokens = jax.random.randint(tkey, (B, T), 0, CFG["vocab_size"],
                                dtype=jnp.int32)

    fwd = jax.jit(lambda tok, prm: rwkv_forward(tok, prm, CFG))
    logits, states = fwd(tokens, params)
    jax.block_until_ready(logits)
    jax.block_until_ready(states)

    K = CFG["d_model"] // CFG["n_heads"]
    assert logits.shape == (B, T, CFG["vocab_size"])
    assert states[0][1].shape == (B, CFG["n_heads"], K, K)
    print("KERNEL_OK")
</pallas_src>

<mosaic_0001>
module attributes {stable_mosaic.version = 11 : i64} {
  func.func @_bmm_kernel(%arg0: i32, %arg1: i32, %arg2: memref<16x160xbf16, #tpu.memory_space<vmem>>, %arg3: memref<160x192xbf16, #tpu.memory_space<vmem>>, %arg4: memref<16x192xbf16, #tpu.memory_space<vmem>>) attributes {dimension_semantics = [#tpu.dimension_semantics<parallel>, #tpu.dimension_semantics<parallel>], iteration_bounds = array<i64: 1, 1>, scalar_prefetch = 0 : i64, scratch_operands = 0 : i64, tpu.core_type = #tpu.core_type<tc>, window_params = [{transform_indices = @transform_0, window_bounds = array<i64: 16, 160>}, {transform_indices = @transform_1, window_bounds = array<i64: 160, 192>}, {transform_indices = @transform_2, window_bounds = array<i64: 16, 192>}]} {
    %c0 = arith.constant 0 : index
    %c0_0 = arith.constant 0 : index
    %0 = vector.load %arg2[%c0, %c0_0] : memref<16x160xbf16, #tpu.memory_space<vmem>>, vector<16x160xbf16>
    %c0_1 = arith.constant 0 : index
    %c0_2 = arith.constant 0 : index
    %1 = vector.load %arg3[%c0_1, %c0_2] : memref<160x192xbf16, #tpu.memory_space<vmem>>, vector<160x192xbf16>
    %cst = arith.constant dense<0.000000e+00> : vector<16x192xf32>
    %2 = tpu.matmul %0, %1, %cst {dimension_numbers = #tpu.dot_dimension_numbers<[1], [0], [0], [1], [0, 0, 1, 1], [], []>} : vector<16x160xbf16>, vector<160x192xbf16>, vector<16x192xf32> -> vector<16x192xf32>
    %3 = arith.truncf %2 : vector<16x192xf32> to vector<16x192xbf16>
    %c0_3 = arith.constant 0 : index
    %c0_4 = arith.constant 0 : index
    %4 = vector.load %arg4[%c0_3, %c0_4] : memref<16x192xbf16, #tpu.memory_space<vmem>>, vector<16x192xbf16>
    tpu.vector_store %arg4[%c0_3, %c0_4], %3 {strides = array<i32>} : memref<16x192xbf16, #tpu.memory_space<vmem>>, vector<16x192xbf16>,
    return
  }
  func.func @transform_0(%arg0: i32, %arg1: i32) -> (i32, i32) {
    %c0_i32 = arith.constant 0 : i32
    %c0_i32_0 = arith.constant 0 : i32
    return %arg0, %c0_i32 : i32, i32
  }
  func.func @transform_1(%arg0: i32, %arg1: i32) -> (i32, i32) {
    %c0_i32 = arith.constant 0 : i32
    %c0_i32_0 = arith.constant 0 : i32
    return %c0_i32, %arg1 : i32, i32
  }
  func.func @transform_2(%arg0: i32, %arg1: i32) -> (i32, i32) {
    %c0_i32 = arith.constant 0 : i32
    return %arg0, %arg1 : i32, i32
  }
}

module attributes {stable_mosaic.version = 11 : i64} {
  func.func @_bmm_kernel(%arg0: i32, %arg1: i32, %arg2: memref<16x160xbf16, #tpu.memory_space<vmem>>, %arg3: memref<160x160xbf16, #tpu.memory_space<vmem>>, %arg4: memref<1x160xf32, #tpu.memory_space<vmem>>, %arg5: memref<16x160xf32, #tpu.memory_space<vmem>>, %arg6: memref<16x160xf32, #tpu.memory_space<vmem>>, %arg7: memref<16x160xbf16, #tpu.memory_space<vmem>>) attributes {dimension_semantics = [#tpu.dimension_semantics<parallel>, #tpu.dimension_semantics<parallel>], iteration_bounds = array<i64: 1, 1>, scalar_prefetch = 0 : i64, scratch_operands = 0 : i64, tpu.core_type = #tpu.core_type<tc>, window_params = [{transform_indices = @transform_0, window_bounds = array<i64: 16, 160>}, {transform_indices = @transform_1, window_bounds = array<i64: 160, 160>}, {transform_indices = @transform_2, window_bounds = array<i64: 1, 160>}, {transform_indices = @transform_3, window_bounds = array<i64: 16, 160>}, {transform_indices = @transform_4, window_bounds = array<i64: 16, 160>}, {transform_indices = @transform_5, window_bounds = array<i64: 16, 160>}]} {
    %c0 = arith.constant 0 : index
    %c0_0 = arith.constant 0 : index
    %0 = vector.load %arg2[%c0, %c0_0] : memref<16x160xbf16, #tpu.memory_space<vmem>>, vector<16x160xbf16>
    %c0_1 = arith.constant 0 : index
    %c0_2 = arith.constant 0 : index
    %1 = vector.load %arg3[%c0_1, %c0_2] : memref<160x160xbf16, #tpu.memory_space<vmem>>, vector<160x160xbf16>
    %cst = arith.constant dense<0.000000e+00> : vector<16x160xf32>
    %2 = tpu.matmul %0, %1, %cst {dimension_numbers = #tpu.dot_dimension_numbers<[1], [0], [0], [1], [0, 0, 1, 1], [], []>} : vector<16x160xbf16>, vector<160x160xbf16>, vector<16x160xf32> -> vector<16x160xf32>
    %c0_3 = arith.constant 0 : index
    %c0_4 = arith.constant 0 : index
    %3 = vector.load %arg4[%c0_3, %c0_4] : memref<1x160xf32, #tpu.memory_space<vmem>>, vector<1x160xf32>
    %4 = vector.broadcast %3 : vector<1x160xf32> to vector<16x160xf32>
    %5 = arith.addf %2, %4 : vector<16x160xf32>
    %c0_5 = arith.constant 0 : index
    %c0_6 = arith.constant 0 : index
    %6 = vector.load %arg5[%c0_5, %c0_6] : memref<16x160xf32, #tpu.memory_space<vmem>>, vector<16x160xf32>
    %c0_7 = arith.constant 0 : index
    %c0_8 = arith.constant 0 : index
    %7 = vector.load %arg6[%c0_7, %c0_8] : memref<16x160xf32, #tpu.memory_space<vmem>>, vector<16x160xf32>
    %8 = arith.subf %7, %6 : vector<16x160xf32>
    %9 = arith.mulf %5, %8 : vector<16x160xf32>
    %10 = arith.addf %6, %9 : vector<16x160xf32>
    %11 = arith.truncf %10 : vector<16x160xf32> to vector<16x160xbf16>
    %c0_9 = arith.constant 0 : index
    %c0_10 = arith.constant 0 : index
    %12 = vector.load %arg7[%c0_9, %c0_10] : memref<16x160xbf16, #tpu.memory_space<vmem>>, vector<16x160xbf16>
    tpu.vector_store %arg7[%c0_9, %c0_10], %11 {strides = array<i32>} : memref<16x160xbf16, #tpu.memory_space<vmem>>, vector<16x160xbf16>,
    return
  }
  func.func @transform_0(%arg0: i32, %arg1: i32) -> (i32, i32) {
    %c0_i32 = arith.constant 0 : i32
    %c0_i32_0 = arith.constant 0 : i32
    return %arg0, %c0_i32 : i32, i32
  }
  func.func @transform_1(%arg0: i32, %arg1: i32) -> (i32, i32) {
    %c0_i32 = arith.constant 0 : i32
    %c0_i32_0 = arith.constant 0 : i32
    return %c0_i32, %arg1 : i32, i32
  }
  func.func @transform_2(%arg0: i32, %arg1: i32) -> (i32, i32) {
    %c0_i32 = arith.constant 0 : i32
    %c0_i32_0 = arith.constant 0 : i32
    return %c0_i32, %arg1 : i32, i32
  }
  func.func @transform_3(%arg0: i32, %arg1: i32) -> (i32, i32) {
    %c0_i32 = arith.constant 0 : i32
    return %arg0, %arg1 : i32, i32
  }
  func.func @transform_4(%arg0: i32, %arg1: i32) -> (i32, i32) {
    %c0_i32 = arith.constant 0 : i32
    return %arg0, %arg1 : i32, i32
  }
  func.func @transform_5(%arg0: i32, %arg1: i32) -> (i32, i32) {
    %c0_i32 = arith.constant 0 : i32
    return %arg0, %arg1 : i32, i32
  }
}

module attributes {stable_mosaic.version = 11 : i64} {
  func.func @_bmm_kernel(%arg0: i32, %arg1: i32, %arg2: memref<16x32xbf16, #tpu.memory_space<vmem>>, %arg3: memref<32x160xbf16, #tpu.memory_space<vmem>>, %arg4: memref<16x160xbf16, #tpu.memory_space<vmem>>) attributes {dimension_semantics = [#tpu.dimension_semantics<parallel>, #tpu.dimension_semantics<parallel>], iteration_bounds = array<i64: 1, 1>, scalar_prefetch = 0 : i64, scratch_operands = 0 : i64, tpu.core_type = #tpu.core_type<tc>, window_params = [{transform_indices = @transform_0, window_bounds = array<i64: 16, 32>}, {transform_indices = @transform_1, window_bounds = array<i64: 32, 160>}, {transform_indices = @transform_2, window_bounds = array<i64: 16, 160>}]} {
    %c0 = arith.constant 0 : index
    %c0_0 = arith.constant 0 : index
    %0 = vector.load %arg2[%c0, %c0_0] : memref<16x32xbf16, #tpu.memory_space<vmem>>, vector<16x32xbf16>
    %c0_1 = arith.constant 0 : index
    %c0_2 = arith.constant 0 : index
    %1 = vector.load %arg3[%c0_1, %c0_2] : memref<32x160xbf16, #tpu.memory_space<vmem>>, vector<32x160xbf16>
    %cst = arith.constant dense<0.000000e+00> : vector<16x160xf32>
    %2 = tpu.matmul %0, %1, %cst {dimension_numbers = #tpu.dot_dimension_numbers<[1], [0], [0], [1], [0, 0, 1, 1], [], []>} : vector<16x32xbf16>, vector<32x160xbf16>, vector<16x160xf32> -> vector<16x160xf32>
    %3 = math.tanh %2 : vector<16x160xf32>
    %4 = arith.truncf %3 : vector<16x160xf32> to vector<16x160xbf16>
    %c0_3 = arith.constant 0 : index
    %c0_4 = arith.constant 0 : index
    %5 = vector.load %arg4[%c0_3, %c0_4] : memref<16x160xbf16, #tpu.memory_space<vmem>>, vector<16x160xbf16>
    tpu.vector_store %arg4[%c0_3, %c0_4], %4 {strides = array<i32>} : memref<16x160xbf16, #tpu.memory_space<vmem>>, vector<16x160xbf16>,
    return
  }
  func.func @transform_0(%arg0: i32, %arg1: i32) -> (i32, i32) {
    %c0_i32 = arith.constant 0 : i32
    %c0_i32_0 = arith.constant 0 : i32
    return %arg0, %c0_i32 : i32, i32
  }
  func.func @transform_1(%arg0: i32, %arg1: i32) -> (i32, i32) {
    %c0_i32 = arith.constant 0 : i32
    %c0_i32_0 = arith.constant 0 : i32
    return %c0_i32, %arg1 : i32, i32
  }
  func.func @transform_2(%arg0: i32, %arg1: i32) -> (i32, i32) {
    %c0_i32 = arith.constant 0 : i32
    return %arg0, %arg1 : i32, i32
  }
}

module attributes {stable_mosaic.version = 11 : i64} {
  func.func @_bmm_kernel(%arg0: i32, %arg1: i32, %arg2: memref<16x64xbf16, #tpu.memory_space<vmem>>, %arg3: memref<64x32xbf16, #tpu.memory_space<vmem>>, %arg4: memref<1x32xf32, #tpu.memory_space<vmem>>, %arg5: memref<16x32xf32, #tpu.memory_space<vmem>>) attributes {dimension_semantics = [#tpu.dimension_semantics<parallel>, #tpu.dimension_semantics<parallel>], iteration_bounds = array<i64: 1, 1>, scalar_prefetch = 0 : i64, scratch_operands = 0 : i64, tpu.core_type = #tpu.core_type<tc>, window_params = [{transform_indices = @transform_0, window_bounds = array<i64: 16, 64>}, {transform_indices = @transform_1, window_bounds = array<i64: 64, 32>}, {transform_indices = @transform_2, window_bounds = array<i64: 1, 32>}, {transform_indices = @transform_3, window_bounds = array<i64: 16, 32>}]} {
    %c0 = arith.constant 0 : index
    %c0_0 = arith.constant 0 : index
    %0 = vector.load %arg2[%c0, %c0_0] : memref<16x64xbf16, #tpu.memory_space<vmem>>, vector<16x64xbf16>
    %1 = math.tanh %0 : vector<16x64xbf16>
    %c0_1 = arith.constant 0 : index
    %c0_2 = arith.constant 0 : index
    %2 = vector.load %arg3[%c0_1, %c0_2] : memref<64x32xbf16, #tpu.memory_space<vmem>>, vector<64x32xbf16>
    %cst = arith.constant dense<0.000000e+00> : vector<16x32xf32>
    %3 = tpu.matmul %1, %2, %cst {dimension_numbers = #tpu.dot_dimension_numbers<[1], [0], [0], [1], [0, 0, 1, 1], [], []>} : vector<16x64xbf16>, vector<64x32xbf16>, vector<16x32xf32> -> vector<16x32xf32>
    %c0_3 = arith.constant 0 : index
    %c0_4 = arith.constant 0 : index
    %4 = vector.load %arg4[%c0_3, %c0_4] : memref<1x32xf32, #tpu.memory_space<vmem>>, vector<1x32xf32>
    %5 = vector.broadcast %4 : vector<1x32xf32> to vector<16x32xf32>
    %6 = arith.addf %3, %5 : vector<16x32xf32>
    %c0_5 = arith.constant 0 : index
    %c0_6 = arith.constant 0 : index
    %7 = vector.load %arg5[%c0_5, %c0_6] : memref<16x32xf32, #tpu.memory_space<vmem>>, vector<16x32xf32>
    tpu.vector_store %arg5[%c0_5, %c0_6], %6 {strides = array<i32>} : memref<16x32xf32, #tpu.memory_space<vmem>>, vector<16x32xf32>,
    return
  }
  func.func @transform_0(%arg0: i32, %arg1: i32) -> (i32, i32) {
    %c0_i32 = arith.constant 0 : i32
    %c0_i32_0 = arith.constant 0 : i32
    return %arg0, %c0_i32 : i32, i32
  }
  func.func @transform_1(%arg0: i32, %arg1: i32) -> (i32, i32) {
    %c0_i32 = arith.constant 0 : i32
    %c0_i32_0 = arith.constant 0 : i32
    return %c0_i32, %arg1 : i32, i32
  }
  func.func @transform_2(%arg0: i32, %arg1: i32) -> (i32, i32) {
    %c0_i32 = arith.constant 0 : i32
    %c0_i32_0 = arith.constant 0 : i32
    return %c0_i32, %arg1 : i32, i32
  }
  func.func @transform_3(%arg0: i32, %arg1: i32) -> (i32, i32) {
    %c0_i32 = arith.constant 0 : i32
    return %arg0, %arg1 : i32, i32
  }
}

module attributes {stable_mosaic.version = 11 : i64} {
  func.func @_wkv_kernel(%arg0: i32, %arg1: i32, %arg2: i32, %arg3: memref<1x1x8x16xbf16, #tpu.memory_space<vmem>>, %arg4: memref<1x1x8x16xbf16, #tpu.memory_space<vmem>>, %arg5: memref<1x1x8x16xbf16, #tpu.memory_space<vmem>>, %arg6: memref<1x1x8x16xf32, #tpu.memory_space<vmem>>, %arg7: memref<1x1x8x16xbf16, #tpu.memory_space<vmem>>, %arg8: memref<1x1x16xf32, #tpu.memory_space<vmem>>, %arg9: memref<1x1x16xf32, #tpu.memory_space<vmem>>, %arg10: memref<1x1x16xf32, #tpu.memory_space<vmem>>, %arg11: memref<1x1x16x16xf32, #tpu.memory_space<vmem>>, %arg12: memref<1x1x8x16xbf16, #tpu.memory_space<vmem>>, %arg13: memref<1x1x16x16xf32, #tpu.memory_space<vmem>>) attributes {dimension_semantics = [#tpu.dimension_semantics<parallel>, #tpu.dimension_semantics<parallel>, #tpu.dimension_semantics<arbitrary>], iteration_bounds = array<i64: 2, 2, 1>, scalar_prefetch = 0 : i64, scratch_operands = 0 : i64, tpu.core_type = #tpu.core_type<tc>, window_params = [{transform_indices = @transform_0, window_bounds = array<i64: 1, 1, 8, 16>}, {transform_indices = @transform_1, window_bounds = array<i64: 1, 1, 8, 16>}, {transform_indices = @transform_2, window_bounds = array<i64: 1, 1, 8, 16>}, {transform_indices = @transform_3, window_bounds = array<i64: 1, 1, 8, 16>}, {transform_indices = @transform_4, window_bounds = array<i64: 1, 1, 8, 16>}, {transform_indices = @transform_5, window_bounds = array<i64: 1, 1, 16>}, {transform_indices = @transform_6, window_bounds = array<i64: 1, 1, 16>}, {transform_indices = @transform_7, window_bounds = array<i64: 1, 1, 16>}, {transform_indices = @transform_8, window_bounds = array<i64: 1, 1, 16, 16>}, {transform_indices = @transform_9, window_bounds = array<i64: 1, 1, 8, 16>}, {transform_indices = @transform_10, window_bounds = array<i64: 1, 1, 16, 16>}]} {
    %c0_i32 = arith.constant 0 : i32
    %0 = arith.cmpi eq, %arg2, %c0_i32 : i32
    %1 = arith.extui %0 : i1 to i32
    %c0_i32_0 = arith.constant 0 : i32
    %2 = arith.cmpi ne, %1, %c0_i32_0 : i32
    scf.if %2 {
      %c0_55 = arith.constant 0 : index
      %c0_56 = arith.constant 0 : index
      %c0_57 = arith.constant 0 : index
      %c0_58 = arith.constant 0 : index
      %106 = vector.load %arg11[%c0_55, %c0_56, %c0_57, %c0_58] : memref<1x1x16x16xf32, #tpu.memory_space<vmem>>, vector<1x1x16x16xf32>
      %c0_59 = arith.constant 0 : index
      %c0_60 = arith.constant 0 : index
      %c0_61 = arith.constant 0 : index
      %c0_62 = arith.constant 0 : index
      %107 = vector.load %arg13[%c0_59, %c0_60, %c0_61, %c0_62] : memref<1x1x16x16xf32, #tpu.memory_space<vmem>>, vector<1x1x16x16xf32>
      tpu.vector_store %arg13[%c0_59, %c0_60, %c0_61, %c0_62], %106 {strides = array<i32>} : memref<1x1x16x16xf32, #tpu.memory_space<vmem>>, vector<1x1x16x16xf32>,
    } else {
    }
    %c0 = arith.constant 0 : index
    %c0_1 = arith.constant 0 : index
    %c0_2 = arith.constant 0 : index
    %c0_3 = arith.constant 0 : index
    %3 = vector.load %arg6[%c0, %c0_1, %c0_2, %c0_3] : memref<1x1x8x16xf32, #tpu.memory_space<vmem>>, vector<1x1x8x16xf32>
    %4 = vector.shape_cast %3 : vector<1x1x8x16xf32> to vector<8x16xf32>
    %5 = math.exp %4 : vector<8x16xf32>
    %cst = arith.constant 0.000000e+00 : f32
    %6 = vector.broadcast %cst : f32 to vector<8x16xf32>
    %7 = arith.subf %6, %5 : vector<8x16xf32>
    %8 = tpu.iota {dimensions = array<i32: 0>} : vector<8x8xi32>
    %9 = tpu.iota {dimensions = array<i32: 1>} : vector<8x8xi32>
    %10 = arith.cmpi sle, %9, %8 : vector<8x8xi32>
    %11 = arith.extui %10 : vector<8x8xi1> to vector<8x8xi32>
    %12 = arith.sitofp %11 : vector<8x8xi32> to vector<8x8xf32>
    %13 = arith.cmpi slt, %9, %8 : vector<8x8xi32>
    %cst_4 = arith.constant dense<0.000000e+00> : vector<8x16xf32>
    %14 = tpu.matmul %12, %7, %cst_4 {dimension_numbers = #tpu.dot_dimension_numbers<[1], [0], [0], [1], [0, 0, 1, 1], [], []>} : vector<8x8xf32>, vector<8x16xf32>, vector<8x16xf32> -> vector<8x16xf32>
    %15 = arith.subf %14, %7 : vector<8x16xf32>
    %16 = vector.extract_strided_slice %14 {offsets = [7, 0], sizes = [1, 16], strides = [1, 1]} : vector<8x16xf32> to vector<1x16xf32>
    %c0_5 = arith.constant 0 : index
    %c0_6 = arith.constant 0 : index
    %c0_7 = arith.constant 0 : index
    %c0_8 = arith.constant 0 : index
    %17 = vector.load %arg3[%c0_5, %c0_6, %c0_7, %c0_8] : memref<1x1x8x16xbf16, #tpu.memory_space<vmem>>, vector<1x1x8x16xbf16>
    %18 = vector.shape_cast %17 : vector<1x1x8x16xbf16> to vector<8x16xbf16>
    %19 = arith.extf %18 : vector<8x16xbf16> to vector<8x16xf32>
    %c0_9 = arith.constant 0 : index
    %c0_10 = arith.constant 0 : index
    %c0_11 = arith.constant 0 : index
    %c0_12 = arith.constant 0 : index
    %20 = vector.load %arg4[%c0_9, %c0_10, %c0_11, %c0_12] : memref<1x1x8x16xbf16, #tpu.memory_space<vmem>>, vector<1x1x8x16xbf16>
    %21 = vector.shape_cast %20 : vector<1x1x8x16xbf16> to vector<8x16xbf16>
    %22 = arith.extf %21 : vector<8x16xbf16> to vector<8x16xf32>
    %c0_13 = arith.constant 0 : index
    %c0_14 = arith.constant 0 : index
    %c0_15 = arith.constant 0 : index
    %c0_16 = arith.constant 0 : index
    %23 = vector.load %arg5[%c0_13, %c0_14, %c0_15, %c0_16] : memref<1x1x8x16xbf16, #tpu.memory_space<vmem>>, vector<1x1x8x16xbf16>
    %24 = vector.shape_cast %23 : vector<1x1x8x16xbf16> to vector<8x16xbf16>
    %25 = arith.extf %24 : vector<8x16xbf16> to vector<8x16xf32>
    %c0_17 = arith.constant 0 : index
    %c0_18 = arith.constant 0 : index
    %c0_19 = arith.constant 0 : index
    %c0_20 = arith.constant 0 : index
    %26 = vector.load %arg13[%c0_17, %c0_18, %c0_19, %c0_20] : memref<1x1x16x16xf32, #tpu.memory_space<vmem>>, vector<1x1x16x16xf32>
    %27 = vector.shape_cast %26 : vector<1x1x16x16xf32> to vector<16x16xf32>
    %28 = math.exp %15 : vector<8x16xf32>
    %29 = arith.mulf %19, %28 : vector<8x16xf32>
    %30 = arith.truncf %29 : vector<8x16xf32> to vector<8x16xbf16>
    %cst_21 = arith.constant 0.000000e+00 : f32
    %31 = vector.broadcast %cst_21 : f32 to vector<8x16xf32>
    %32 = arith.subf %31, %14 : vector<8x16xf32>
    %33 = math.exp %32 : vector<8x16xf32>
    %34 = arith.mulf %22, %33 : vector<8x16xf32>
    %35 = arith.truncf %34 : vector<8x16xf32> to vector<8x16xbf16>
    %36 = vector.broadcast %16 : vector<1x16xf32> to vector<8x16xf32>
    %37 = arith.subf %36, %14 : vector<8x16xf32>
    %38 = math.exp %37 : vector<8x16xf32>
    %39 = arith.mulf %22, %38 : vector<8x16xf32>
    %40 = arith.truncf %39 : vector<8x16xf32> to vector<8x16xbf16>
    %41 = arith.truncf %25 : vector<8x16xf32> to vector<8x16xbf16>
    %42 = arith.truncf %27 : vector<16x16xf32> to vector<16x16xbf16>
    %cst_22 = arith.constant dense<0.000000e+00> : vector<8x16xf32>
    %43 = tpu.matmul %30, %42, %cst_22 {dimension_numbers = #tpu.dot_dimension_numbers<[1], [1], [0], [0], [0, 0, 1, 0], [], []>} : vector<8x16xbf16>, vector<16x16xbf16>, vector<8x16xf32> -> vector<8x16xf32>
    %cst_23 = arith.constant dense<0.000000e+00> : vector<8x8xf32>
    %44 = tpu.matmul %30, %35, %cst_23 {dimension_numbers = #tpu.dot_dimension_numbers<[1], [1], [0], [0], [0, 0, 1, 0], [], []>} : vector<8x16xbf16>, vector<8x16xbf16>, vector<8x8xf32> -> vector<8x8xf32>
    %cst_24 = arith.constant 0.000000e+00 : f32
    %45 = vector.broadcast %cst_24 : f32 to vector<8x8xf32>
    %46 = arith.select %13, %44, %45 : vector<8x8xi1>, vector<8x8xf32>
    %47 = arith.truncf %46 : vector<8x8xf32> to vector<8x8xbf16>
    %cst_25 = arith.constant dense<0.000000e+00> : vector<8x16xf32>
    %48 = tpu.matmul %47, %41, %cst_25 {dimension_numbers = #tpu.dot_dimension_numbers<[1], [0], [0], [1], [0, 0, 1, 1], [], []>} : vector<8x8xbf16>, vector<8x16xbf16>, vector<8x16xf32> -> vector<8x16xf32>
    %c0_26 = arith.constant 0 : index
    %c0_27 = arith.constant 0 : index
    %c0_28 = arith.constant 0 : index
    %49 = vector.load %arg8[%c0_26, %c0_27, %c0_28] : memref<1x1x16xf32, #tpu.memory_space<vmem>>, vector<1x1x16xf32>
    %50 = vector.shape_cast %49 : vector<1x1x16xf32> to vector<1x16xf32>
    %51 = vector.broadcast %50 : vector<1x16xf32> to vector<8x16xf32>
    %52 = arith.mulf %19, %51 : vector<8x16xf32>
    %53 = arith.mulf %52, %22 : vector<8x16xf32>
    %cst_29 = arith.constant dense<0.000000e+00> : vector<8xf32>
    %54 = vector.multi_reduction <add>, %53, %cst_29 [1] : vector<8x16xf32> to vector<8xf32>
    %55 = vector.shape_cast %54 : vector<8xf32> to vector<8x1xf32>
    %56 = arith.addf %43, %48 : vector<8x16xf32>
    %57 = vector.broadcast %55 : vector<8x1xf32> to vector<8x16xf32>
    %58 = arith.mulf %57, %25 : vector<8x16xf32>
    %59 = arith.addf %56, %58 : vector<8x16xf32>
    %60 = math.exp %16 : vector<1x16xf32>
    %61 = vector.broadcast %60 : vector<1x16xf32> to vector<16x16xf32>
    %62 = arith.mulf %27, %61 : vector<16x16xf32>
    %cst_30 = arith.constant dense<0.000000e+00> : vector<16x16xf32>
    %63 = tpu.matmul %41, %40, %cst_30 {dimension_numbers = #tpu.dot_dimension_numbers<[0], [0], [1], [1], [0, 1, 1, 1], [], []>} : vector<8x16xbf16>, vector<8x16xbf16>, vector<16x16xf32> -> vector<16x16xf32>
    %64 = arith.addf %62, %63 : vector<16x16xf32>
    %c0_31 = arith.constant 0 : index
    %c0_32 = arith.constant 0 : index
    %c0_33 = arith.constant 0 : index
    %c0_34 = arith.constant 0 : index
    %65 = vector.load %arg13[%c0_31, %c0_32, %c0_33, %c0_34] : memref<1x1x16x16xf32, #tpu.memory_space<vmem>>, vector<1x1x16x16xf32>
    %66 = vector.shape_cast %65 : vector<1x1x16x16xf32> to vector<16x16xf32>
    %67 = vector.shape_cast %64 : vector<16x16xf32> to vector<1x1x16x16xf32>
    tpu.vector_store %arg13[%c0_31, %c0_32, %c0_33, %c0_34], %67 {strides = array<i32>} : memref<1x1x16x16xf32, #tpu.memory_space<vmem>>, vector<1x1x16x16xf32>,
    %cst_35 = arith.constant dense<0.000000e+00> : vector<8xf32>
    %68 = vector.multi_reduction <add>, %59, %cst_35 [1] : vector<8x16xf32> to vector<8xf32>
    %69 = vector.shape_cast %68 : vector<8xf32> to vector<8x1xf32>
    %cst_36 = arith.constant 1.600000e+01 : f32
    %70 = vector.broadcast %cst_36 : f32 to vector<8x1xf32>
    %71 = arith.divf %69, %70 : vector<8x1xf32>
    %72 = vector.broadcast %71 : vector<8x1xf32> to vector<8x16xf32>
    %73 = arith.subf %59, %72 : vector<8x16xf32>
    %74 = arith.mulf %73, %73 : vector<8x16xf32>
    %cst_37 = arith.constant dense<0.000000e+00> : vector<8xf32>
    %75 = vector.multi_reduction <add>, %74, %cst_37 [1] : vector<8x16xf32> to vector<8xf32>
    %76 = vector.shape_cast %75 : vector<8xf32> to vector<8x1xf32>
    %cst_38 = arith.constant 1.600000e+01 : f32
    %77 = vector.broadcast %cst_38 : f32 to vector<8x1xf32>
    %78 = arith.divf %76, %77 : vector<8x1xf32>
    %cst_39 = arith.constant 6.400000e-04 : f32
    %79 = vector.broadcast %cst_39 : f32 to vector<8x1xf32>
    %80 = arith.addf %78, %79 : vector<8x1xf32>
    %81 = math.rsqrt %80 : vector<8x1xf32>
    %82 = vector.broadcast %81 : vector<8x1xf32> to vector<8x16xf32>
    %83 = arith.mulf %73, %82 : vector<8x16xf32>
    %c0_40 = arith.constant 0 : index
    %c0_41 = arith.constant 0 : index
    %c0_42 = arith.constant 0 : index
    %84 = vector.load %arg9[%c0_40, %c0_41, %c0_42] : memref<1x1x16xf32, #tpu.memory_space<vmem>>, vector<1x1x16xf32>
    %85 = vector.shape_cast %84 : vector<1x1x16xf32> to vector<1x16xf32>
    %86 = vector.broadcast %85 : vector<1x16xf32> to vector<8x16xf32>
    %87 = arith.mulf %83, %86 : vector<8x16xf32>
    %c0_43 = arith.constant 0 : index
    %c0_44 = arith.constant 0 : index
    %c0_45 = arith.constant 0 : index
    %88 = vector.load %arg10[%c0_43, %c0_44, %c0_45] : memref<1x1x16xf32, #tpu.memory_space<vmem>>, vector<1x1x16xf32>
    %89 = vector.shape_cast %88 : vector<1x1x16xf32> to vector<1x16xf32>
    %90 = vector.broadcast %89 : vector<1x16xf32> to vector<8x16xf32>
    %91 = arith.addf %87, %90 : vector<8x16xf32>
    %c0_46 = arith.constant 0 : index
    %c0_47 = arith.constant 0 : index
    %c0_48 = arith.constant 0 : index
    %c0_49 = arith.constant 0 : index
    %92 = vector.load %arg7[%c0_46, %c0_47, %c0_48, %c0_49] : memref<1x1x8x16xbf16, #tpu.memory_space<vmem>>, vector<1x1x8x16xbf16>
    %93 = vector.shape_cast %92 : vector<1x1x8x16xbf16> to vector<8x16xbf16>
    %94 = arith.extf %93 : vector<8x16xbf16> to vector<8x16xf32>
    %95 = arith.negf %94 : vector<8x16xf32>
    %96 = math.exp %95 : vector<8x16xf32>
    %cst_50 = arith.constant 1.000000e+00 : f32
    %97 = vector.broadcast %cst_50 : f32 to vector<8x16xf32>
    %98 = arith.addf %97, %96 : vector<8x16xf32>
    %99 = arith.divf %97, %98 : vector<8x16xf32>
    %100 = arith.mulf %94, %99 : vector<8x16xf32>
    %101 = arith.mulf %91, %100 : vector<8x16xf32>
    %102 = arith.truncf %101 : vector<8x16xf32> to vector<8x16xbf16>
    %c0_51 = arith.constant 0 : index
    %c0_52 = arith.constant 0 : index
    %c0_53 = arith.constant 0 : index
    %c0_54 = arith.constant 0 : index
    %103 = vector.load %arg12[%c0_51, %c0_52, %c0_53, %c0_54] : memref<1x1x8x16xbf16, #tpu.memory_space<vmem>>, vector<1x1x8x16xbf16>
    %104 = vector.shape_cast %103 : vector<1x1x8x16xbf16> to vector<8x16xbf16>
    %105 = vector.shape_cast %102 : vector<8x16xbf16> to vector<1x1x8x16xbf16>
    tpu.vector_store %arg12[%c0_51, %c0_52, %c0_53, %c0_54], %105 {strides = array<i32>} : memref<1x1x8x16xbf16, #tpu.memory_space<vmem>>, vector<1x1x8x16xbf16>,
    return
  }
  func.func @transform_0(%arg0: i32, %arg1: i32, %arg2: i32) -> (i32, i32, i32, i32) {
    %c0_i32 = arith.constant 0 : i32
    %c0_i32_0 = arith.constant 0 : i32
    return %arg0, %arg1, %arg2, %c0_i32 : i32, i32, i32, i32
  }
  func.func @transform_1(%arg0: i32, %arg1: i32, %arg2: i32) -> (i32, i32, i32, i32) {
    %c0_i32 = arith.constant 0 : i32
    %c0_i32_0 = arith.constant 0 : i32
    return %arg0, %arg1, %arg2, %c0_i32 : i32, i32, i32, i32
  }
  func.func @transform_2(%arg0: i32, %arg1: i32, %arg2: i32) -> (i32, i32, i32, i32) {
    %c0_i32 = arith.constant 0 : i32
    %c0_i32_0 = arith.constant 0 : i32
    return %arg0, %arg1, %arg2, %c0_i32 : i32, i32, i32, i32
  }
  func.func @transform_3(%arg0: i32, %arg1: i32, %arg2: i32) -> (i32, i32, i32, i32) {
    %c0_i32 = arith.constant 0 : i32
    %c0_i32_0 = arith.constant 0 : i32
    return %arg0, %arg1, %arg2, %c0_i32 : i32, i32, i32, i32
  }
  func.func @transform_4(%arg0: i32, %arg1: i32, %arg2: i32) -> (i32, i32, i32, i32) {
    %c0_i32 = arith.constant 0 : i32
    %c0_i32_0 = arith.constant 0 : i32
    return %arg0, %arg1, %arg2, %c0_i32 : i32, i32, i32, i32
  }
  func.func @transform_5(%arg0: i32, %arg1: i32, %arg2: i32) -> (i32, i32, i32) {
    %c0_i32 = arith.constant 0 : i32
    %c0_i32_0 = arith.constant 0 : i32
    %c0_i32_1 = arith.constant 0 : i32
    return %arg1, %c0_i32, %c0_i32_0 : i32, i32, i32
  }
  func.func @transform_6(%arg0: i32, %arg1: i32, %arg2: i32) -> (i32, i32, i32) {
    %c0_i32 = arith.constant 0 : i32
    %c0_i32_0 = arith.constant 0 : i32
    %c0_i32_1 = arith.constant 0 : i32
    return %arg1, %c0_i32, %c0_i32_0 : i32, i32, i32
  }
  func.func @transform_7(%arg0: i32, %arg1: i32, %arg2: i32) -> (i32, i32, i32) {
    %c0_i32 = arith.constant 0 : i32
    %c0_i32_0 = arith.constant 0 : i32
    %c0_i32_1 = arith.constant 0 : i32
    return %arg1, %c0_i32, %c0_i32_0 : i32, i32, i32
  }
  func.func @transform_8(%arg0: i32, %arg1: i32, %arg2: i32) -> (i32, i32, i32, i32) {
    %c0_i32 = arith.constant 0 : i32
    %c0_i32_0 = arith.constant 0 : i32
    %c0_i32_1 = arith.constant 0 : i32
    return %arg0, %arg1, %c0_i32, %c0_i32_0 : i32, i32, i32, i32
  }
  func.func @transform_9(%arg0: i32, %arg1: i32, %arg2: i32) -> (i32, i32, i32, i32) {
    %c0_i32 = arith.constant 0 : i32
    %c0_i32_0 = arith.constant 0 : i32
    return %arg0, %arg1, %arg2, %c0_i32 : i32, i32, i32, i32
  }
  func.func @transform_10(%arg0: i32, %arg1: i32, %arg2: i32) -> (i32, i32, i32, i32) {
    %c0_i32 = arith.constant 0 : i32
    %c0_i32_0 = arith.constant 0 : i32
    %c0_i32_1 = arith.constant 0 : i32
    return %arg0, %arg1, %c0_i32, %c0_i32_0 : i32, i32, i32, i32
  }
}

module attributes {stable_mosaic.version = 11 : i64} {
  func.func @_bmm_kernel(%arg0: i32, %arg1: i32, %arg2: memref<16x32xbf16, #tpu.memory_space<vmem>>, %arg3: memref<32x32xbf16, #tpu.memory_space<vmem>>, %arg4: memref<16x32xf32, #tpu.memory_space<vmem>>, %arg5: memref<16x32xf32, #tpu.memory_space<vmem>>) attributes {dimension_semantics = [#tpu.dimension_semantics<parallel>, #tpu.dimension_semantics<parallel>], iteration_bounds = array<i64: 1, 1>, scalar_prefetch = 0 : i64, scratch_operands = 0 : i64, tpu.core_type = #tpu.core_type<tc>, window_params = [{transform_indices = @transform_0, window_bounds = array<i64: 16, 32>}, {transform_indices = @transform_1, window_bounds = array<i64: 32, 32>}, {transform_indices = @transform_2, window_bounds = array<i64: 16, 32>}, {transform_indices = @transform_3, window_bounds = array<i64: 16, 32>}]} {
    %c0 = arith.constant 0 : index
    %c0_0 = arith.constant 0 : index
    %0 = vector.load %arg2[%c0, %c0_0] : memref<16x32xbf16, #tpu.memory_space<vmem>>, vector<16x32xbf16>
    %c0_1 = arith.constant 0 : index
    %c0_2 = arith.constant 0 : index
    %1 = vector.load %arg3[%c0_1, %c0_2] : memref<32x32xbf16, #tpu.memory_space<vmem>>, vector<32x32xbf16>
    %cst = arith.constant dense<0.000000e+00> : vector<16x32xf32>
    %2 = tpu.matmul %0, %1, %cst {dimension_numbers = #tpu.dot_dimension_numbers<[1], [0], [0], [1], [0, 0, 1, 1], [], []>} : vector<16x32xbf16>, vector<32x32xbf16>, vector<16x32xf32> -> vector<16x32xf32>
    %c0_3 = arith.constant 0 : index
    %c0_4 = arith.constant 0 : index
    %3 = vector.load %arg4[%c0_3, %c0_4] : memref<16x32xf32, #tpu.memory_space<vmem>>, vector<16x32xf32>
    %4 = arith.addf %2, %3 : vector<16x32xf32>
    %c0_5 = arith.constant 0 : index
    %c0_6 = arith.constant 0 : index
    %5 = vector.load %arg5[%c0_5, %c0_6] : memref<16x32xf32, #tpu.memory_space<vmem>>, vector<16x32xf32>
    tpu.vector_store %arg5[%c0_5, %c0_6], %4 {strides = array<i32>} : memref<16x32xf32, #tpu.memory_space<vmem>>, vector<16x32xf32>,
    return
  }
  func.func @transform_0(%arg0: i32, %arg1: i32) -> (i32, i32) {
    %c0_i32 = arith.constant 0 : i32
    %c0_i32_0 = arith.constant 0 : i32
    return %arg0, %c0_i32 : i32, i32
  }
  func.func @transform_1(%arg0: i32, %arg1: i32) -> (i32, i32) {
    %c0_i32 = arith.constant 0 : i32
    %c0_i32_0 = arith.constant 0 : i32
    return %c0_i32, %arg1 : i32, i32
  }
  func.func @transform_2(%arg0: i32, %arg1: i32) -> (i32, i32) {
    %c0_i32 = arith.constant 0 : i32
    return %arg0, %arg1 : i32, i32
  }
  func.func @transform_3(%arg0: i32, %arg1: i32) -> (i32, i32) {
    %c0_i32 = arith.constant 0 : i32
    return %arg0, %arg1 : i32, i32
  }
}

module attributes {stable_mosaic.version = 11 : i64} {
  func.func @_bmm_kernel(%arg0: i32, %arg1: i32, %arg2: memref<16x64xbf16, #tpu.memory_space<vmem>>, %arg3: memref<64x128xbf16, #tpu.memory_space<vmem>>, %arg4: memref<16x128xbf16, #tpu.memory_space<vmem>>) attributes {dimension_semantics = [#tpu.dimension_semantics<parallel>, #tpu.dimension_semantics<parallel>], iteration_bounds = array<i64: 1, 1>, scalar_prefetch = 0 : i64, scratch_operands = 0 : i64, tpu.core_type = #tpu.core_type<tc>, window_params = [{transform_indices = @transform_0, window_bounds = array<i64: 16, 64>}, {transform_indices = @transform_1, window_bounds = array<i64: 64, 128>}, {transform_indices = @transform_2, window_bounds = array<i64: 16, 128>}]} {
    %c0 = arith.constant 0 : index
    %c0_0 = arith.constant 0 : index
    %0 = vector.load %arg2[%c0, %c0_0] : memref<16x64xbf16, #tpu.memory_space<vmem>>, vector<16x64xbf16>
    %c0_1 = arith.constant 0 : index
    %c0_2 = arith.constant 0 : index
    %1 = vector.load %arg3[%c0_1, %c0_2] : memref<64x128xbf16, #tpu.memory_space<vmem>>, vector<64x128xbf16>
    %cst = arith.constant dense<0.000000e+00> : vector<16x128xf32>
    %2 = tpu.matmul %0, %1, %cst {dimension_numbers = #tpu.dot_dimension_numbers<[1], [0], [0], [1], [0, 0, 1, 1], [], []>} : vector<16x64xbf16>, vector<64x128xbf16>, vector<16x128xf32> -> vector<16x128xf32>
    %3 = arith.truncf %2 : vector<16x128xf32> to vector<16x128xbf16>
    %c0_3 = arith.constant 0 : index
    %c0_4 = arith.constant 0 : index
    %4 = vector.load %arg4[%c0_3, %c0_4] : memref<16x128xbf16, #tpu.memory_space<vmem>>, vector<16x128xbf16>
    tpu.vector_store %arg4[%c0_3, %c0_4], %3 {strides = array<i32>} : memref<16x128xbf16, #tpu.memory_space<vmem>>, vector<16x128xbf16>,
    return
  }
  func.func @transform_0(%arg0: i32, %arg1: i32) -> (i32, i32) {
    %c0_i32 = arith.constant 0 : i32
    %c0_i32_0 = arith.constant 0 : i32
    return %arg0, %c0_i32 : i32, i32
  }
  func.func @transform_1(%arg0: i32, %arg1: i32) -> (i32, i32) {
    %c0_i32 = arith.constant 0 : i32
    %c0_i32_0 = arith.constant 0 : i32
    return %c0_i32, %arg1 : i32, i32
  }
  func.func @transform_2(%arg0: i32, %arg1: i32) -> (i32, i32) {
    %c0_i32 = arith.constant 0 : i32
    return %arg0, %arg1 : i32, i32
  }
}

module attributes {stable_mosaic.version = 11 : i64} {
  func.func @_bmm_kernel(%arg0: i32, %arg1: i32, %arg2: memref<16x96xbf16, #tpu.memory_space<vmem>>, %arg3: memref<96x32xbf16, #tpu.memory_space<vmem>>, %arg4: memref<16x32xbf16, #tpu.memory_space<vmem>>, %arg5: memref<16x32xf32, #tpu.memory_space<vmem>>, %arg6: memref<16x32xf32, #tpu.memory_space<vmem>>) attributes {dimension_semantics = [#tpu.dimension_semantics<parallel>, #tpu.dimension_semantics<parallel>], iteration_bounds = array<i64: 1, 1>, scalar_prefetch = 0 : i64, scratch_operands = 0 : i64, tpu.core_type = #tpu.core_type<tc>, window_params = [{transform_indices = @transform_0, window_bounds = array<i64: 16, 96>}, {transform_indices = @transform_1, window_bounds = array<i64: 96, 32>}, {transform_indices = @transform_2, window_bounds = array<i64: 16, 32>}, {transform_indices = @transform_3, window_bounds = array<i64: 16, 32>}, {transform_indices = @transform_4, window_bounds = array<i64: 16, 32>}]} {
    %c0 = arith.constant 0 : index
    %c0_0 = arith.constant 0 : index
    %0 = vector.load %arg2[%c0, %c0_0] : memref<16x96xbf16, #tpu.memory_space<vmem>>, vector<16x96xbf16>
    %cst = arith.constant 0.000000e+00 : bf16
    %1 = vector.broadcast %cst : bf16 to vector<16x96xbf16>
    %2 = arith.maximumf %0, %1 : vector<16x96xbf16>
    %3 = arith.mulf %2, %2 : vector<16x96xbf16>
    %c0_1 = arith.constant 0 : index
    %c0_2 = arith.constant 0 : index
    %4 = vector.load %arg3[%c0_1, %c0_2] : memref<96x32xbf16, #tpu.memory_space<vmem>>, vector<96x32xbf16>
    %cst_3 = arith.constant dense<0.000000e+00> : vector<16x32xf32>
    %5 = tpu.matmul %3, %4, %cst_3 {dimension_numbers = #tpu.dot_dimension_numbers<[1], [0], [0], [1], [0, 0, 1, 1], [], []>} : vector<16x96xbf16>, vector<96x32xbf16>, vector<16x32xf32> -> vector<16x32xf32>
    %c0_4 = arith.constant 0 : index
    %c0_5 = arith.constant 0 : index
    %6 = vector.load %arg4[%c0_4, %c0_5] : memref<16x32xbf16, #tpu.memory_space<vmem>>, vector<16x32xbf16>
    %7 = arith.extf %6 : vector<16x32xbf16> to vector<16x32xf32>
    %8 = arith.negf %7 : vector<16x32xf32>
    %9 = math.exp %8 : vector<16x32xf32>
    %cst_6 = arith.constant 1.000000e+00 : f32
    %10 = vector.broadcast %cst_6 : f32 to vector<16x32xf32>
    %11 = arith.addf %10, %9 : vector<16x32xf32>
    %12 = arith.divf %10, %11 : vector<16x32xf32>
    %13 = arith.mulf %5, %12 : vector<16x32xf32>
    %c0_7 = arith.constant 0 : index
    %c0_8 = arith.constant 0 : index
    %14 = vector.load %arg5[%c0_7, %c0_8] : memref<16x32xf32, #tpu.memory_space<vmem>>, vector<16x32xf32>
    %15 = arith.addf %13, %14 : vector<16x32xf32>
    %c0_9 = arith.constant 0 : index
    %c0_10 = arith.constant 0 : index
    %16 = vector.load %arg6[%c0_9, %c0_10] : memref<16x32xf32, #tpu.memory_space<vmem>>, vector<16x32xf32>
    tpu.vector_store %arg6[%c0_9, %c0_10], %15 {strides = array<i32>} : memref<16x32xf32, #tpu.memory_space<vmem>>, vector<16x32xf32>,
    return
  }
  func.func @transform_0(%arg0: i32, %arg1: i32) -> (i32, i32) {
    %c0_i32 = arith.constant 0 : i32
    %c0_i32_0 = arith.constant 0 : i32
    return %arg0, %c0_i32 : i32, i32
  }
  func.func @transform_1(%arg0: i32, %arg1: i32) -> (i32, i32) {
    %c0_i32 = arith.constant 0 : i32
    %c0_i32_0 = arith.constant 0 : i32
    return %c0_i32, %arg1 : i32, i32
  }
  func.func @transform_2(%arg0: i32, %arg1: i32) -> (i32, i32) {
    %c0_i32 = arith.constant 0 : i32
    return %arg0, %arg1 : i32, i32
  }
  func.func @transform_3(%arg0: i32, %arg1: i32) -> (i32, i32) {
    %c0_i32 = arith.constant 0 : i32
    return %arg0, %arg1 : i32, i32
  }
  func.func @transform_4(%arg0: i32, %arg1: i32) -> (i32, i32) {
    %c0_i32 = arith.constant 0 : i32
    return %arg0, %arg1 : i32, i32
  }
}

module attributes {stable_mosaic.version = 11 : i64} {
  func.func @_bmm_kernel(%arg0: i32, %arg1: i32, %arg2: memref<16x32xbf16, #tpu.memory_space<vmem>>, %arg3: memref<32x64xbf16, #tpu.memory_space<vmem>>, %arg4: memref<16x64xf32, #tpu.memory_space<vmem>>) attributes {dimension_semantics = [#tpu.dimension_semantics<parallel>, #tpu.dimension_semantics<parallel>], iteration_bounds = array<i64: 1, 1>, scalar_prefetch = 0 : i64, scratch_operands = 0 : i64, tpu.core_type = #tpu.core_type<tc>, window_params = [{transform_indices = @transform_0, window_bounds = array<i64: 16, 32>}, {transform_indices = @transform_1, window_bounds = array<i64: 32, 64>}, {transform_indices = @transform_2, window_bounds = array<i64: 16, 64>}]} {
    %c0 = arith.constant 0 : index
    %c0_0 = arith.constant 0 : index
    %0 = vector.load %arg2[%c0, %c0_0] : memref<16x32xbf16, #tpu.memory_space<vmem>>, vector<16x32xbf16>
    %c0_1 = arith.constant 0 : index
    %c0_2 = arith.constant 0 : index
    %1 = vector.load %arg3[%c0_1, %c0_2] : memref<32x64xbf16, #tpu.memory_space<vmem>>, vector<32x64xbf16>
    %cst = arith.constant dense<0.000000e+00> : vector<16x64xf32>
    %2 = tpu.matmul %0, %1, %cst {dimension_numbers = #tpu.dot_dimension_numbers<[1], [0], [0], [1], [0, 0, 1, 1], [], []>} : vector<16x32xbf16>, vector<32x64xbf16>, vector<16x64xf32> -> vector<16x64xf32>
    %c0_3 = arith.constant 0 : index
    %c0_4 = arith.constant 0 : index
    %3 = vector.load %arg4[%c0_3, %c0_4] : memref<16x64xf32, #tpu.memory_space<vmem>>, vector<16x64xf32>
    tpu.vector_store %arg4[%c0_3, %c0_4], %2 {strides = array<i32>} : memref<16x64xf32, #tpu.memory_space<vmem>>, vector<16x64xf32>,
    return
  }
  func.func @transform_0(%arg0: i32, %arg1: i32) -> (i32, i32) {
    %c0_i32 = arith.constant 0 : i32
    %c0_i32_0 = arith.constant 0 : i32
    return %arg0, %c0_i32 : i32, i32
  }
  func.func @transform_1(%arg0: i32, %arg1: i32) -> (i32, i32) {
    %c0_i32 = arith.constant 0 : i32
    %c0_i32_0 = arith.constant 0 : i32
    return %c0_i32, %arg1 : i32, i32
  }
  func.func @transform_2(%arg0: i32, %arg1: i32) -> (i32, i32) {
    %c0_i32 = arith.constant 0 : i32
    return %arg0, %arg1 : i32, i32
  }
}

</mosaic_0001>

<llo_original>
// kernel: tile.19
$region0: #{tile.19}
  %s0 = inlined_call_operand.vmem [shape: f32[16,5,32], index: 0, kind: input, shape index: {}]
  %s1 = inlined_call_operand.vmem [shape: f32[16,160], index: 1, kind: output, shape index: {}]
  %v2 = vld [vmem:[%s0] ss:$4 sm:$0xff]
  %vm3 = vcmask 261120
  %4 = vst.msk [vmem:[%s1] ss:$8 sm:$0x3] %vm3, %v2
  %s5 = scalar_lea.vmem %s1, 4294967281
  %6 = vst.msk [vmem:[%s5] ss:$8 sm:$0xc] %vm3, %v2
  %s7 = scalar_lea.vmem %s1, 4294967266
  %8 = vst.msk [vmem:[%s7] ss:$8 sm:$0x30] %vm3, %v2
  %s9 = scalar_lea.vmem %s1, 4294967251
  %10 = vst.msk [vmem:[%s9] ss:$8 sm:$0xc0] %vm3, %v2
  %s11 = scalar_lea.vmem %s0, 32
  %v12 = vld [vmem:[%s11] ss:$4 sm:$0xff]
  %vm13 = vcmask 261120
  %s14 = scalar_lea.vmem %s1, 4
  %15 = vst.msk [vmem:[%s14] ss:$8 sm:$0x3] %vm13, %v12
  %s16 = scalar_lea.vmem %s1, 4294967285
  %17 = vst.msk [vmem:[%s16] ss:$8 sm:$0xc] %vm13, %v12
  %s18 = scalar_lea.vmem %s1, 4294967270
  %19 = vst.msk [vmem:[%s18] ss:$8 sm:$0x30] %vm13, %v12
  %s20 = scalar_lea.vmem %s1, 4294967255
  %21 = vst.msk [vmem:[%s20] ss:$8 sm:$0xc0] %vm13, %v12
  %s22 = scalar_lea.vmem %s0, 64
  %v23 = vld [vmem:[%s22] ss:$4 sm:$0xff]
  %vm24 = vcmask 261120
  %s25 = scalar_lea.vmem %s1, 16
  %26 = vst.msk [vmem:[%s25] ss:$8 sm:$0x3] %vm24, %v23
  %s27 = scalar_lea.vmem %s1, 1
  %28 = vst.msk [vmem:[%s27] ss:$8 sm:$0xc] %vm24, %v23
  %s29 = scalar_lea.vmem %s1, 4294967282
  %30 = vst.msk [vmem:[%s29] ss:$8 sm:$0x30] %vm24, %v23
  %s31 = scalar_lea.vmem %s1, 4294967267
  %32 = vst.msk [vmem:[%s31] ss:$8 sm:$0xc0] %vm24, %v23
  %s33 = scalar_lea.vmem %s0, 96
  %v34 = vld [vmem:[%s33] ss:$4 sm:$0xff]
  %vm35 = vcmask 261120
  %s36 = scalar_lea.vmem %s1, 20
  %37 = vst.msk [vmem:[%s36] ss:$8 sm:$0x3] %vm35, %v34
  %s38 = scalar_lea.vmem %s1, 5
  %39 = vst.msk [vmem:[%s38] ss:$8 sm:$0xc] %vm35, %v34
  %s40 = scalar_lea.vmem %s1, 4294967286
  %41 = vst.msk [vmem:[%s40] ss:$8 sm:$0x30] %vm35, %v34
  %s42 = scalar_lea.vmem %s1, 4294967271
  %43 = vst.msk [vmem:[%s42] ss:$8 sm:$0xc0] %vm35, %v34
  %s44 = scalar_lea.vmem %s0, 3
  %v45 = vld [vmem:[%s44] ss:$8 sm:$0xf]
  %s46 = scalar_lea.vmem %s0, 3
  %v47 = vld [vmem:[%s46] ss:$8 sm:$0xf0]
  %vm48 = vcmask 1047556
  %v49 = vsel %vm48, %v47, %v45
  %50 = vrot.lane.b32.xlu0 %v49, 96
  %v51 = vpop.permute.xlu0 %50
  %vm52 = vcmask 1048320
  %53 = vst.msk [vmem:[%s1] sm:$0xff] %vm52, %v51
  %s54 = scalar_lea.vmem %s0, 67
  %v55 = vld [vmem:[%s54] ss:$8 sm:$0xf]
  %s56 = scalar_lea.vmem %s0, 67
  %v57 = vld [vmem:[%s56] ss:$8 sm:$0xf0]
  %vm58 = vcmask 1047556
  %v59 = vsel %vm58, %v57, %v55
  %60 = vrot.lane.b32.xlu0 %v59, 96
  %v61 = vpop.permute.xlu0 %60
  %vm62 = vcmask 1048320
  %s63 = scalar_lea.vmem %s1, 16
  %64 = vst.msk [vmem:[%s63] sm:$0xff] %vm62, %v61
  %s65 = scalar_lea.vmem %s0, 2
  %v66 = vld [vmem:[%s65] ss:$8 sm:$0xf]
  %s67 = scalar_lea.vmem %s0, 2
  %v68 = vld [vmem:[%s67] ss:$8 sm:$0xf0]
  %vm69 = vcmask 1047556
  %v70 = vsel %vm69, %v68, %v66
  %71 = vrot.lane.b32.xlu0 %v70, 64
  %v72 = vpop.permute.xlu0 %71
  %vm73 = vcmask 785920
  %74 = vst.msk [vmem:[%s1] sm:$0xff] %vm73, %v72
  %s75 = scalar_lea.vmem %s0, 66
  %v76 = vld [vmem:[%s75] ss:$8 sm:$0xf]
  %s77 = scalar_lea.vmem %s0, 66
  %v78 = vld [vmem:[%s77] ss:$8 sm:$0xf0]
  %vm79 = vcmask 1047556
  %v80 = vsel %vm79, %v78, %v76
  %81 = vrot.lane.b32.xlu0 %v80, 64
  %v82 = vpop.permute.xlu0 %81
  %vm83 = vcmask 785920
  %s84 = scalar_lea.vmem %s1, 16
  %85 = vst.msk [vmem:[%s84] sm:$0xff] %vm83, %v82
  %s86 = scalar_lea.vmem %s0, 1
  %v87 = vld [vmem:[%s86] ss:$8 sm:$0xf]
  %s88 = scalar_lea.vmem %s0, 1
  %v89 = vld [vmem:[%s88] ss:$8 sm:$0xf0]
  %vm90 = vcmask 1047556
  %v91 = vsel %vm90, %v89, %v87
  %92 = vrot.lane.b32.xlu0 %v91, 32
  %v93 = vpop.permute.xlu0 %92
  %vm94 = vcmask 523520
  %95 = vst.msk [vmem:[%s1] sm:$0xff] %vm94, %v93
  %s96 = scalar_lea.vmem %s0, 65
  %v97 = vld [vmem:[%s96] ss:$8 sm:$0xf]
  %s98 = scalar_lea.vmem %s0, 65
  %v99 = vld [vmem:[%s98] ss:$8 sm:$0xf0]
  %vm100 = vcmask 1047556
  %v101 = vsel %vm100, %v99, %v97
  %102 = vrot.lane.b32.xlu0 %v101, 32
  %v103 = vpop.permute.xlu0 %102
  %vm104 = vcmask 523520
  %s105 = scalar_lea.vmem %s1, 16
  %106 = vst.msk [vmem:[%s105] sm:$0xff] %vm104, %v103

// kernel: _lambda_.17
$region0: #{_lambda_.17}
  #allocation0 [shape = 'u32[]', space=smem, size = 0x4, offset = 0x4, fixed_abs, tag = 'smem constant byte address 0x4 - core index']
  #allocation1 [shape = 'u32[144,128]{1,0:T(1,128)}', space=vmem, size = 0x12000, scoped, tag = 'internal scratch']
  %s0 = inlined_call_operand.vmem [shape: bf16[16,32], index: 0, kind: input, shape index: {}]
  %s1 = inlined_call_operand.vmem [shape: bf16[32,160], index: 1, kind: input, shape index: {}]
  %s2 = inlined_call_operand.vmem [shape: bf16[16,160], index: 2, kind: output, shape index: {}]
  %s3 = sld [smem:[#allocation0]]
  $region18: #{_lambda_.17} parent=0
    _
  %s5 = ssub.s32 1, %s3
  %s6 = scalar_select 0, %s5, %s3
  // Predicated region
  $region2: #{_lambda_.17} parent=0 // pred_check
    _
  $region3: #{_lambda_.17} parent=0 // pred_check_branch
    %8 = sbr.rel (0) target = $region5
  $region4: #{_lambda_.17} parent=0 // pred_region
    _
  $region5: #{_lambda_.17} parent=0 // pred_fallthru
    _
  // Predicated region
  $region6: #{_lambda_.17} parent=0 // pred_check
    _
  $region7: #{_lambda_.17} parent=0 // pred_check_branch
    %10 = sbr.rel (0) target = $region9
  $region8: #{_lambda_.17} parent=0 // pred_region
    _
  $region9: #{_lambda_.17} parent=0 // pred_fallthru
    _
  %v12 = vld [vmem:[%s0] sm:$0xf]
  %v13 = vld [vmem:[%s0 + $0x4] sm:$0xf]
  %v14 = vld [vmem:[%s1] sm:$0xff]
  %v15 = vld [vmem:[%s1 + $0x8] sm:$0xff]
  %v16 = vld [vmem:[%s1 + $0x10] sm:$0xff]
  %v17 = vld [vmem:[%s1 + $0x18] sm:$0xff]
  %v20 = vunpack.c.l.b16 %v12
  %v21 = vunpack.c.l.b16 %v13
  %v22 = vpack.c.b16 %v21, %v20
  %v27 = vunpack.c.l.b16 %v14
  %v28 = vunpack.c.h.b16 %v14
  %v29 = vunpack.c.l.b16 %v15
  %v30 = vunpack.c.h.b16 %v15
  %v31 = vunpack.c.l.b16 %v16
  %v32 = vunpack.c.h.b16 %v16
  %v33 = vunpack.c.l.b16 %v17
  %v34 = vunpack.c.h.b16 %v17
  %v35 = vpack.c.b16 %v29, %v27
  %v36 = vpack.c.b16 %v30, %v28
  %v37 = vpack.c.b16 %v33, %v31
  %v38 = vpack.c.b16 %v34, %v32
  %vm43 = vcmask 261120
  %v45 = vsel %vm43, %v22, 0
  %47 = vmatprep.subr.bf16.mxu0 %v36
  %48 = vmatpush1.bf16.msra.mxu0 %v35
  %49 = vmatprep.subr.bf16.mxu0 %v38
  %50 = vmatpush1.bf16.msra.mxu0 %v37
  %51 = vmatprep.subr.bf16.mxu0 0
  %52 = vmatpush1.bf16.msra.mxu0 0
  %53 = vmatprep.subr.bf16.mxu0 0
  %54 = vmatpush1.bf16.msra.mxu0 0
  %55 = vmatprep.subr.bf16.mxu0 0
  %56 = vmatpush1.bf16.msra.mxu0 0
  %57 = vmatprep.subr.bf16.mxu0 0
  %58 = vmatpush1.bf16.msra.mxu0 0
  %59 = vmatprep.subr.bf16.mxu0 0
  %60 = vmatpush1.bf16.msra.mxu0 0
  %61 = vmatprep.subr.bf16.mxu0 0
  %62 = vmatpush1.bf16.msra.mxu0 0
  %63 = vmatprep.subr.bf16.mxu0 0
  %64 = vmatpush1.bf16.msra.mxu0 0
  %65 = vmatprep.subr.bf16.mxu0 0
  %66 = vmatpush1.bf16.msra.mxu0 0
  %67 = vmatprep.subr.bf16.mxu0 0
  %68 = vmatpush1.bf16.msra.mxu0 0
  %69 = vmatprep.subr.bf16.mxu0 0
  %70 = vmatpush1.bf16.msra.mxu0 0
  %71 = vmatprep.subr.bf16.mxu0 0
  %72 = vmatpush1.bf16.msra.mxu0 0
  %73 = vmatprep.subr.bf16.mxu0 0
  %74 = vmatpush1.bf16.msra.mxu0 0
  %75 = vmatprep.subr.bf16.mxu0 0
  %76 = vmatpush1.bf16.msra.mxu0 0
  %77 = vmatprep.subr.bf16.mxu0 0
  %78 = vmatpush1.bf16.msra.mxu0 0
  %79 = vmatprep.mubr.bf16.mxu0 0
  %80 = vmatmul.mubr.bf16.gmra.mrb[0].mxu0 %v45
  %v81 = vpop.f32.mrb[0].mxu0
  %v82 = vadd.f32 0.0, %v81
  %v83 = vpop.f32.mrb[0].mxu0
  %v84 = vadd.f32 0.0, %v83
  %v85 = vpop.f32.mrb[0].mxu0
  %v86 = vadd.f32 0.0, %v85
  %v87 = vpop.f32.mrb[0].mxu0
  %v88 = vadd.f32 0.0, %v87
  %89 = vdwg.mxu0
  %v90 = vtanh.pop %v82
  %v91 = vtanh.pop %v84
  %v92 = vtanh.pop %v86
  %v93 = vtanh.pop %v88
  %v94 = vpack.c.bf16 %v92, %v90
  %v95 = vpack.c.bf16 %v93, %v91
  %v98 = vunpack.c.l.b16 %v94
  %v99 = vunpack.c.l.b16 %v95
  %v100 = vunpack.c.h.b16 %v94
  %v101 = vunpack.c.h.b16 %v95
  %v102 = vpack.c.b16 %v99, %v98
  %v103 = vpack.c.b16 %v101, %v100
  %vm106 = vcmask 1043456
  %vm107 = vcmask 261124
  %vm108 = vmor %vm107, %vm106
  %109 = vst.msk [vmem:[%s2] sm:$0xff] %vm108, %v102
  %110 = vst.msk [vmem:[%s2 + $0x8] sm:$0xff] %vm108, %v103
  // Predicated region
  $region10: #{_lambda_.17} parent=0 // pred_check
    _
  $region11: #{_lambda_.17} parent=0 // pred_check_branch
    %112 = sbr.rel (0) target = $region13
  $region12: #{_lambda_.17} parent=0 // pred_region
    _
  $region13: #{_lambda_.17} parent=0 // pred_fallthru
    _
  // Predicated region
  $region14: #{_lambda_.17} parent=0 // pred_check
    _
  $region15: #{_lambda_.17} parent=0 // pred_check_branch
    %114 = sbr.rel (0) target = $region17
  $region16: #{_lambda_.17} parent=0 // pred_region
    _
  $region17: #{_lambda_.17} parent=0 // pred_fallthru
    _

// kernel: _lambda_.19
$region0: #{_lambda_.19}
  #allocation0 [shape = 'u32[]', space=smem, size = 0x4, offset = 0x4, fixed_abs, tag = 'smem constant byte address 0x4 - core index']
  #allocation1 [shape = 'u32[144,128]{1,0:T(1,128)}', space=vmem, size = 0x12000, scoped, tag = 'internal scratch']
  %s0 = inlined_call_operand.vmem [shape: bf16[16,160], index: 0, kind: input, shape index: {}]
  %s1 = inlined_call_operand.vmem [shape: bf16[160,192], index: 1, kind: input, shape index: {}]
  %s2 = inlined_call_operand.vmem [shape: bf16[16,192], index: 2, kind: output, shape index: {}]
  %s3 = sld [smem:[#allocation0]]
  $region18: #{_lambda_.19} parent=0
    _
  %s5 = ssub.s32 1, %s3
  %s6 = scalar_select 0, %s5, %s3
  // Predicated region
  $region2: #{_lambda_.19} parent=0 // pred_check
    _
  $region3: #{_lambda_.19} parent=0 // pred_check_branch
    %8 = sbr.rel (0) target = $region5
  $region4: #{_lambda_.19} parent=0 // pred_region
    _
  $region5: #{_lambda_.19} parent=0 // pred_fallthru
    _
  // Predicated region
  $region6: #{_lambda_.19} parent=0 // pred_check
    _
  $region7: #{_lambda_.19} parent=0 // pred_check_branch
    %10 = sbr.rel (0) target = $region9
  $region8: #{_lambda_.19} parent=0 // pred_region
    _
  $region9: #{_lambda_.19} parent=0 // pred_fallthru
    _
  %v12 = vld [vmem:[%s0] sm:$0xff]
  %v13 = vld [vmem:[%s0 + $0x8] sm:$0xff]
  %v14 = vld [vmem:[%s1] sm:$0xff]
  %v15 = vld [vmem:[%s1 + $0x8] sm:$0xff]
  %v16 = vld [vmem:[%s1 + $0x10] sm:$0xff]
  %v17 = vld [vmem:[%s1 + $0x18] sm:$0xff]
  %v18 = vld [vmem:[%s1 + $0x20] sm:$0xff]
  %v19 = vld [vmem:[%s1 + $0x28] sm:$0xff]
  %v20 = vld [vmem:[%s1 + $0x30] sm:$0xff]
  %v21 = vld [vmem:[%s1 + $0x38] sm:$0xff]
  %v22 = vld [vmem:[%s1 + $0x40] sm:$0xff]
  %v23 = vld [vmem:[%s1 + $0x48] sm:$0xff]
  %v24 = vld [vmem:[%s1 + $0x50] sm:$0xff]
  %v25 = vld [vmem:[%s1 + $0x58] sm:$0xff]
  %v26 = vld [vmem:[%s1 + $0x60] sm:$0xff]
  %v27 = vld [vmem:[%s1 + $0x68] sm:$0xff]
  %v28 = vld [vmem:[%s1 + $0x70] sm:$0xff]
  %v29 = vld [vmem:[%s1 + $0x78] sm:$0xff]
  %v30 = vld [vmem:[%s1 + $0x80] sm:$0xff]
  %v31 = vld [vmem:[%s1 + $0x88] sm:$0xff]
  %v32 = vld [vmem:[%s1 + $0x90] sm:$0xff]
  %v33 = vld [vmem:[%s1 + $0x98] sm:$0xff]
  %v36 = vunpack.c.l.b16 %v12
  %v37 = vunpack.c.h.b16 %v12
  %v38 = vunpack.c.l.b16 %v13
  %v39 = vunpack.c.h.b16 %v13
  %v40 = vpack.c.b16 %v38, %v36
  %v41 = vpack.c.b16 %v39, %v37
  %v63 = vunpack.c.l.b16 %v14
  %v64 = vunpack.c.h.b16 %v14
  %v65 = vunpack.c.l.b16 %v15
  %v66 = vunpack.c.h.b16 %v15
  %v67 = vunpack.c.l.b16 %v16
  %v68 = vunpack.c.h.b16 %v16
  %v69 = vunpack.c.l.b16 %v17
  %v70 = vunpack.c.h.b16 %v17
  %v71 = vunpack.c.l.b16 %v18
  %v72 = vunpack.c.h.b16 %v18
  %v73 = vunpack.c.l.b16 %v19
  %v74 = vunpack.c.h.b16 %v19
  %v75 = vunpack.c.l.b16 %v20
  %v76 = vunpack.c.h.b16 %v20
  %v77 = vunpack.c.l.b16 %v21
  %v78 = vunpack.c.h.b16 %v21
  %v79 = vunpack.c.l.b16 %v22
  %v80 = vunpack.c.h.b16 %v22
  %v81 = vunpack.c.l.b16 %v23
  %v82 = vunpack.c.h.b16 %v23
  %v83 = vunpack.c.l.b16 %v24
  %v84 = vunpack.c.h.b16 %v24
  %v85 = vunpack.c.l.b16 %v25
  %v86 = vunpack.c.h.b16 %v25
  %v87 = vunpack.c.l.b16 %v26
  %v88 = vunpack.c.h.b16 %v26
  %v89 = vunpack.c.l.b16 %v27
  %v90 = vunpack.c.h.b16 %v27
  %v91 = vunpack.c.l.b16 %v28
  %v92 = vunpack.c.h.b16 %v28
  %v93 = vunpack.c.l.b16 %v29
  %v94 = vunpack.c.h.b16 %v29
  %v95 = vunpack.c.l.b16 %v30
  %v96 = vunpack.c.h.b16 %v30
  %v97 = vunpack.c.l.b16 %v31
  %v98 = vunpack.c.h.b16 %v31
  %v99 = vunpack.c.l.b16 %v32
  %v100 = vunpack.c.h.b16 %v32
  %v101 = vunpack.c.l.b16 %v33
  %v102 = vunpack.c.h.b16 %v33
  %v103 = vpack.c.b16 %v65, %v63
  %v104 = vpack.c.b16 %v66, %v64
  %v105 = vpack.c.b16 %v69, %v67
  %v106 = vpack.c.b16 %v70, %v68
  %v107 = vpack.c.b16 %v73, %v71
  %v108 = vpack.c.b16 %v74, %v72
  %v109 = vpack.c.b16 %v77, %v75
  %v110 = vpack.c.b16 %v78, %v76
  %v111 = vpack.c.b16 %v81, %v79
  %v112 = vpack.c.b16 %v82, %v80
  %v113 = vpack.c.b16 %v85, %v83
  %v114 = vpack.c.b16 %v86, %v84
  %v115 = vpack.c.b16 %v89, %v87
  %v116 = vpack.c.b16 %v90, %v88
  %v117 = vpack.c.b16 %v93, %v91
  %v118 = vpack.c.b16 %v94, %v92
  %v119 = vpack.c.b16 %v97, %v95
  %v120 = vpack.c.b16 %v98, %v96
  %v121 = vpack.c.b16 %v101, %v99
  %v122 = vpack.c.b16 %v102, %v100
  %vm143 = vcmask 261120
  %v145 = vsel %vm143, %v41, 0
  %147 = vmatprep.subr.bf16.mxu0 %v104
  %148 = vmatpush1.bf16.msra.mxu0 %v103
  %149 = vmatprep.subr.bf16.mxu0 %v106
  %150 = vmatpush1.bf16.msra.mxu0 %v105
  %151 = vmatprep.subr.bf16.mxu0 %v108
  %152 = vmatpush1.bf16.msra.mxu0 %v107
  %153 = vmatprep.subr.bf16.mxu0 %v110
  %154 = vmatpush1.bf16.msra.mxu0 %v109
  %155 = vmatprep.subr.bf16.mxu0 %v112
  %156 = vmatpush1.bf16.msra.mxu0 %v111
  %157 = vmatprep.subr.bf16.mxu0 %v114
  %158 = vmatpush1.bf16.msra.mxu0 %v113
  %159 = vmatprep.subr.bf16.mxu0 %v116
  %160 = vmatpush1.bf16.msra.mxu0 %v115
  %161 = vmatprep.subr.bf16.mxu0 %v118
  %162 = vmatpush1.bf16.msra.mxu0 %v117
  %163 = vmatprep.subr.bf16.mxu0 %v120
  %164 = vmatpush1.bf16.msra.mxu0 %v119
  %165 = vmatprep.subr.bf16.mxu0 %v122
  %166 = vmatpush1.bf16.msra.mxu0 %v121
  %167 = vmatprep.subr.bf16.mxu0 0
  %168 = vmatpush1.bf16.msra.mxu0 0
  %169 = vmatprep.subr.bf16.mxu0 0
  %170 = vmatpush1.bf16.msra.mxu0 0
  %171 = vmatprep.subr.bf16.mxu0 0
  %172 = vmatpush1.bf16.msra.mxu0 0
  %173 = vmatprep.subr.bf16.mxu0 0
  %174 = vmatpush1.bf16.msra.mxu0 0
  %175 = vmatprep.subr.bf16.mxu0 0
  %176 = vmatpush1.bf16.msra.mxu0 0
  %177 = vmatprep.subr.bf16.mxu0 0
  %178 = vmatpush1.bf16.msra.mxu0 0
  %179 = vmatprep.mubr.bf16.mxu0 %v145
  %180 = vmatmul.mubr.bf16.gmra.mrb[0].mxu0 %v40
  %v181 = vpop.f32.mrb[0].mxu0
  %v182 = vadd.f32 0.0, %v181
  %v183 = vpop.f32.mrb[0].mxu0
  %v184 = vadd.f32 0.0, %v183
  %v185 = vpop.f32.mrb[0].mxu0
  %v186 = vadd.f32 0.0, %v185
  %v187 = vpop.f32.mrb[0].mxu0
  %v188 = vadd.f32 0.0, %v187
  %189 = vdwg.mxu0
  %v190 = vpack.c.bf16 %v186, %v182
  %v191 = vpack.c.bf16 %v188, %v184
  %v194 = vunpack.c.l.b16 %v190
  %v195 = vunpack.c.l.b16 %v191
  %v196 = vunpack.c.h.b16 %v190
  %v197 = vunpack.c.h.b16 %v191
  %v198 = vpack.c.b16 %v195, %v194
  %v199 = vpack.c.b16 %v197, %v196
  %vm202 = vcmask 1043456
  %vm203 = vcmask 523268
  %vm204 = vmor %vm203, %vm202
  %205 = vst.msk [vmem:[%s2] sm:$0xff] %vm204, %v198
  %206 = vst.msk [vmem:[%s2 + $0x8] sm:$0xff] %vm204, %v199
  // Predicated region
  $region10: #{_lambda_.19} parent=0 // pred_check
    _
  $region11: #{_lambda_.19} parent=0 // pred_check_branch
    %208 = sbr.rel (0) target = $region13
  $region12: #{_lambda_.19} parent=0 // pred_region
    _
  $region13: #{_lambda_.19} parent=0 // pred_fallthru
    _
  // Predicated region
  $region14: #{_lambda_.19} parent=0 // pred_check
    _
  $region15: #{_lambda_.19} parent=0 // pred_check_branch
    %210 = sbr.rel (0) target = $region17
  $region16: #{_lambda_.19} parent=0 // pred_region
    _
  $region17: #{_lambda_.19} parent=0 // pred_fallthru
    _

// kernel: _lambda_.18
$region0: #{_lambda_.18}
  #allocation0 [shape = 'u32[]', space=smem, size = 0x4, offset = 0x4, fixed_abs, tag = 'smem constant byte address 0x4 - core index']
  #allocation1 [shape = 'u32[144,128]{1,0:T(1,128)}', space=vmem, size = 0x12000, scoped, tag = 'internal scratch']
  %s0 = inlined_call_operand.vmem [shape: bf16[16,160], index: 0, kind: input, shape index: {}]
  %s1 = inlined_call_operand.vmem [shape: bf16[160,160], index: 1, kind: input, shape index: {}]
  %s2 = inlined_call_operand.vmem [shape: f32[1,160], index: 2, kind: input, shape index: {}]
  %s3 = inlined_call_operand.vmem [shape: f32[16,160], index: 3, kind: input, shape index: {}]
  %s4 = inlined_call_operand.vmem [shape: f32[16,160], index: 4, kind: input, shape index: {}]
  %s5 = inlined_call_operand.vmem [shape: bf16[16,160], index: 5, kind: output, shape index: {}]
  %s6 = sld [smem:[#allocation0]]
  $region30: #{_lambda_.18} parent=0
    _
  %s8 = ssub.s32 1, %s6
  %s9 = scalar_select 0, %s8, %s6
  // Predicated region
  $region2: #{_lambda_.18} parent=0 // pred_check
    _
  $region3: #{_lambda_.18} parent=0 // pred_check_branch
    %11 = sbr.rel (0) target = $region5
  $region4: #{_lambda_.18} parent=0 // pred_region
    _
  $region5: #{_lambda_.18} parent=0 // pred_fallthru
    _
  // Predicated region
  $region6: #{_lambda_.18} parent=0 // pred_check
    _
  $region7: #{_lambda_.18} parent=0 // pred_check_branch
    %13 = sbr.rel (0) target = $region9
  $region8: #{_lambda_.18} parent=0 // pred_region
    _
  $region9: #{_lambda_.18} parent=0 // pred_fallthru
    _
  // Predicated region
  $region10: #{_lambda_.18} parent=0 // pred_check
    _
  $region11: #{_lambda_.18} parent=0 // pred_check_branch
    %15 = sbr.rel (0) target = $region13
  $region12: #{_lambda_.18} parent=0 // pred_region
    _
  $region13: #{_lambda_.18} parent=0 // pred_fallthru
    _
  // Predicated region
  $region14: #{_lambda_.18} parent=0 // pred_check
    _
  $region15: #{_lambda_.18} parent=0 // pred_check_branch
    %17 = sbr.rel (0) target = $region17
  $region16: #{_lambda_.18} parent=0 // pred_region
    _
  $region17: #{_lambda_.18} parent=0 // pred_fallthru
    _
  // Predicated region
  $region18: #{_lambda_.18} parent=0 // pred_check
    _
  $region19: #{_lambda_.18} parent=0 // pred_check_branch
    %19 = sbr.rel (0) target = $region21
  $region20: #{_lambda_.18} parent=0 // pred_region
    _
  $region21: #{_lambda_.18} parent=0 // pred_fallthru
    _
  %v21 = vld [vmem:[%s0] sm:$0xff]
  %v22 = vld [vmem:[%s0 + $0x8] sm:$0xff]
  %v23 = vld [vmem:[%s1] sm:$0xff]
  %v24 = vld [vmem:[%s1 + $0x8] sm:$0xff]
  %v25 = vld [vmem:[%s1 + $0x10] sm:$0xff]
  %v26 = vld [vmem:[%s1 + $0x18] sm:$0xff]
  %v27 = vld [vmem:[%s1 + $0x20] sm:$0xff]
  %v28 = vld [vmem:[%s1 + $0x28] sm:$0xff]
  %v29 = vld [vmem:[%s1 + $0x30] sm:$0xff]
  %v30 = vld [vmem:[%s1 + $0x38] sm:$0xff]
  %v31 = vld [vmem:[%s1 + $0x40] sm:$0xff]
  %v32 = vld [vmem:[%s1 + $0x48] sm:$0xff]
  %v33 = vld [vmem:[%s1 + $0x50] sm:$0xff]
  %v34 = vld [vmem:[%s1 + $0x58] sm:$0xff]
  %v35 = vld [vmem:[%s1 + $0x60] sm:$0xff]
  %v36 = vld [vmem:[%s1 + $0x68] sm:$0xff]
  %v37 = vld [vmem:[%s1 + $0x70] sm:$0xff]
  %v38 = vld [vmem:[%s1 + $0x78] sm:$0xff]
  %v39 = vld [vmem:[%s1 + $0x80] sm:$0xff]
  %v40 = vld [vmem:[%s1 + $0x88] sm:$0xff]
  %v41 = vld [vmem:[%s1 + $0x90] sm:$0xff]
  %v42 = vld [vmem:[%s1 + $0x98] sm:$0xff]
  %v43 = vld [vmem:[%s2] sm:$0x3]
  %v45 = vlaneseq
  %v46 = vshrl.u32 %v45, 7
  %v47 = vsub.s32 0, %v46
  %v48 = vrot.slane %v43, %v47
  %v49 = vlaneseq
  %v50 = vshrl.u32 %v49, 7
  %v51 = vsub.s32 1, %v50
  %v52 = vrot.slane %v43, %v51
  %v57 = vunpack.c.l.b16 %v21
  %v58 = vunpack.c.h.b16 %v21
  %v59 = vunpack.c.l.b16 %v22
  %v60 = vunpack.c.h.b16 %v22
  %v61 = vpack.c.b16 %v59, %v57
  %v62 = vpack.c.b16 %v60, %v58
  %v84 = vunpack.c.l.b16 %v23
  %v85 = vunpack.c.h.b16 %v23
  %v86 = vunpack.c.l.b16 %v24
  %v87 = vunpack.c.h.b16 %v24
  %v88 = vunpack.c.l.b16 %v25
  %v89 = vunpack.c.h.b16 %v25
  %v90 = vunpack.c.l.b16 %v26
  %v91 = vunpack.c.h.b16 %v26
  %v92 = vunpack.c.l.b16 %v27
  %v93 = vunpack.c.h.b16 %v27
  %v94 = vunpack.c.l.b16 %v28
  %v95 = vunpack.c.h.b16 %v28
  %v96 = vunpack.c.l.b16 %v29
  %v97 = vunpack.c.h.b16 %v29
  %v98 = vunpack.c.l.b16 %v30
  %v99 = vunpack.c.h.b16 %v30
  %v100 = vunpack.c.l.b16 %v31
  %v101 = vunpack.c.h.b16 %v31
  %v102 = vunpack.c.l.b16 %v32
  %v103 = vunpack.c.h.b16 %v32
  %v104 = vunpack.c.l.b16 %v33
  %v105 = vunpack.c.h.b16 %v33
  %v106 = vunpack.c.l.b16 %v34
  %v107 = vunpack.c.h.b16 %v34
  %v108 = vunpack.c.l.b16 %v35
  %v109 = vunpack.c.h.b16 %v35
  %v110 = vunpack.c.l.b16 %v36
  %v111 = vunpack.c.h.b16 %v36
  %v112 = vunpack.c.l.b16 %v37
  %v113 = vunpack.c.h.b16 %v37
  %v114 = vunpack.c.l.b16 %v38
  %v115 = vunpack.c.h.b16 %v38
  %v116 = vunpack.c.l.b16 %v39
  %v117 = vunpack.c.h.b16 %v39
  %v118 = vunpack.c.l.b16 %v40
  %v119 = vunpack.c.h.b16 %v40
  %v120 = vunpack.c.l.b16 %v41
  %v121 = vunpack.c.h.b16 %v41
  %v122 = vunpack.c.l.b16 %v42
  %v123 = vunpack.c.h.b16 %v42
  %v124 = vpack.c.b16 %v86, %v84
  %v125 = vpack.c.b16 %v87, %v85
  %v126 = vpack.c.b16 %v90, %v88
  %v127 = vpack.c.b16 %v91, %v89
  %v128 = vpack.c.b16 %v94, %v92
  %v129 = vpack.c.b16 %v95, %v93
  %v130 = vpack.c.b16 %v98, %v96
  %v131 = vpack.c.b16 %v99, %v97
  %v132 = vpack.c.b16 %v102, %v100
  %v133 = vpack.c.b16 %v103, %v101
  %v134 = vpack.c.b16 %v106, %v104
  %v135 = vpack.c.b16 %v107, %v105
  %v136 = vpack.c.b16 %v110, %v108
  %v137 = vpack.c.b16 %v111, %v109
  %v138 = vpack.c.b16 %v114, %v112
  %v139 = vpack.c.b16 %v115, %v113
  %v140 = vpack.c.b16 %v118, %v116
  %v141 = vpack.c.b16 %v119, %v117
  %v142 = vpack.c.b16 %v122, %v120
  %v143 = vpack.c.b16 %v123, %v121
  %vm164 = vcmask 261120
  %v166 = vsel %vm164, %v62, 0
  %168 = vmatprep.subr.bf16.mxu0 %v125
  %169 = vmatpush1.bf16.msra.mxu0 %v124
  %170 = vmatprep.subr.bf16.mxu0 %v127
  %171 = vmatpush1.bf16.msra.mxu0 %v126
  %172 = vmatprep.subr.bf16.mxu0 %v129
  %173 = vmatpush1.bf16.msra.mxu0 %v128
  %174 = vmatprep.subr.bf16.mxu0 %v131
  %175 = vmatpush1.bf16.msra.mxu0 %v130
  %176 = vmatprep.subr.bf16.mxu0 %v133
  %177 = vmatpush1.bf16.msra.mxu0 %v132
  %178 = vmatprep.subr.bf16.mxu0 %v135
  %179 = vmatpush1.bf16.msra.mxu0 %v134
  %180 = vmatprep.subr.bf16.mxu0 %v137
  %181 = vmatpush1.bf16.msra.mxu0 %v136
  %182 = vmatprep.subr.bf16.mxu0 %v139
  %183 = vmatpush1.bf16.msra.mxu0 %v138
  %184 = vmatprep.subr.bf16.mxu0 %v141
  %185 = vmatpush1.bf16.msra.mxu0 %v140
  %186 = vmatprep.subr.bf16.mxu0 %v143
  %187 = vmatpush1.bf16.msra.mxu0 %v142
  %188 = vmatprep.subr.bf16.mxu0 0
  %189 = vmatpush1.bf16.msra.mxu0 0
  %190 = vmatprep.subr.bf16.mxu0 0
  %191 = vmatpush1.bf16.msra.mxu0 0
  %192 = vmatprep.subr.bf16.mxu0 0
  %193 = vmatpush1.bf16.msra.mxu0 0
  %194 = vmatprep.subr.bf16.mxu0 0
  %195 = vmatpush1.bf16.msra.mxu0 0
  %196 = vmatprep.subr.bf16.mxu0 0
  %197 = vmatpush1.bf16.msra.mxu0 0
  %198 = vmatprep.subr.bf16.mxu0 0
  %199 = vmatpush1.bf16.msra.mxu0 0
  %200 = vmatprep.mubr.bf16.mxu0 %v166
  %201 = vmatmul.mubr.bf16.gmra.mrb[0].mxu0 %v61
  %v202 = vpop.f32.mrb[0].mxu0
  %v203 = vadd.f32 %v48, %v202
  %v204 = vpop.f32.mrb[0].mxu0
  %v205 = vadd.f32 %v52, %v204
  %v206 = vpop.f32.mrb[0].mxu0
  %v207 = vadd.f32 %v48, %v206
  %v208 = vpop.f32.mrb[0].mxu0
  %v209 = vadd.f32 %v52, %v208
  %210 = vdwg.mxu0
  %v211 = vld [vmem:[%s3] sm:$0xff]
  %v212 = vld [vmem:[%s3 + $0x8] sm:$0xff]
  %v213 = vld [vmem:[%s3 + $0x10] sm:$0xff]
  %v214 = vld [vmem:[%s3 + $0x18] sm:$0xff]
  %v215 = vld [vmem:[%s4] sm:$0xff]
  %v216 = vld [vmem:[%s4 + $0x8] sm:$0xff]
  %v217 = vld [vmem:[%s4 + $0x10] sm:$0xff]
  %v218 = vld [vmem:[%s4 + $0x18] sm:$0xff]
  %v219 = vsub.f32 %v215, %v211
  %v220 = vsub.f32 %v216, %v212
  %v221 = vsub.f32 %v217, %v213
  %v222 = vsub.f32 %v218, %v214
  %v223 = vmul.f32 %v203, %v219
  %v224 = vmul.f32 %v205, %v220
  %v225 = vmul.f32 %v207, %v221
  %v226 = vmul.f32 %v209, %v222
  %v227 = vadd.f32 %v211, %v223
  %v228 = vadd.f32 %v212, %v224
  %v229 = vadd.f32 %v213, %v225
  %v230 = vadd.f32 %v214, %v226
  %v231 = vpack.c.bf16 %v229, %v227
  %v232 = vpack.c.bf16 %v230, %v228
  %v235 = vunpack.c.l.b16 %v231
  %v236 = vunpack.c.l.b16 %v232
  %v237 = vunpack.c.h.b16 %v231
  %v238 = vunpack.c.h.b16 %v232
  %v239 = vpack.c.b16 %v236, %v235
  %v240 = vpack.c.b16 %v238, %v237
  %vm243 = vcmask 1043456
  %vm244 = vcmask 261124
  %vm245 = vmor %vm244, %vm243
  %246 = vst.msk [vmem:[%s5] sm:$0xff] %vm245, %v239
  %247 = vst.msk [vmem:[%s5 + $0x8] sm:$0xff] %vm245, %v240
  // Predicated region
  $region22: #{_lambda_.18} parent=0 // pred_check
    _
  $region23: #{_lambda_.18} parent=0 // pred_check_branch
    %249 = sbr.rel (0) target = $region25
  $region24: #{_lambda_.18} parent=0 // pred_region
    _
  $region25: #{_lambda_.18} parent=0 // pred_fallthru
    _
  // Predicated region
  $region26: #{_lambda_.18} parent=0 // pred_check
    _
  $region27: #{_lambda_.18} parent=0 // pred_check_branch
    %251 = sbr.rel (0) target = $region29
  $region28: #{_lambda_.18} parent=0 // pred_region
    _
  $region29: #{_lambda_.18} parent=0 // pred_fallthru
    _

// kernel: _lambda_.20
$region0: #{_lambda_.20}
  #allocation0 [shape = 'u32[]', space=smem, size = 0x4, offset = 0x4, fixed_abs, tag = 'smem constant byte address 0x4 - core index']
  #allocation1 [shape = 'u32[144,128]{1,0:T(1,128)}', space=vmem, size = 0x12000, scoped, tag = 'internal scratch']
  %s0 = inlined_call_operand.vmem [shape: bf16[16,64], index: 0, kind: input, shape index: {}]
  %s1 = inlined_call_operand.vmem [shape: bf16[64,32], index: 1, kind: input, shape index: {}]
  %s2 = inlined_call_operand.vmem [shape: f32[1,32], index: 2, kind: input, shape index: {}]
  %s3 = inlined_call_operand.vmem [shape: f32[16,32], index: 3, kind: output, shape index: {}]
  %s4 = sld [smem:[#allocation0]]
  $region22: #{_lambda_.20} parent=0
    _
  %s6 = ssub.s32 1, %s4
  %s7 = scalar_select 0, %s6, %s4
  // Predicated region
  $region2: #{_lambda_.20} parent=0 // pred_check
    _
  $region3: #{_lambda_.20} parent=0 // pred_check_branch
    %9 = sbr.rel (0) target = $region5
  $region4: #{_lambda_.20} parent=0 // pred_region
    _
  $region5: #{_lambda_.20} parent=0 // pred_fallthru
    _
  // Predicated region
  $region6: #{_lambda_.20} parent=0 // pred_check
    _
  $region7: #{_lambda_.20} parent=0 // pred_check_branch
    %11 = sbr.rel (0) target = $region9
  $region8: #{_lambda_.20} parent=0 // pred_region
    _
  $region9: #{_lambda_.20} parent=0 // pred_fallthru
    _
  // Predicated region
  $region10: #{_lambda_.20} parent=0 // pred_check
    _
  $region11: #{_lambda_.20} parent=0 // pred_check_branch
    %13 = sbr.rel (0) target = $region13
  $region12: #{_lambda_.20} parent=0 // pred_region
    _
  $region13: #{_lambda_.20} parent=0 // pred_fallthru
    _
  %v15 = vld [vmem:[%s0] sm:$0xf]
  %v16 = vld [vmem:[%s0 + $0x4] sm:$0xf]
  %v17 = vtanh.bf16.pop %v15
  %v18 = vtanh.bf16.pop %v16
  %v19 = vld [vmem:[%s1] sm:$0xf]
  %v20 = vld [vmem:[%s1 + $0x4] sm:$0xf]
  %v21 = vld [vmem:[%s1 + $0x8] sm:$0xf]
  %v22 = vld [vmem:[%s1 + $0xc] sm:$0xf]
  %v23 = vld [vmem:[%s1 + $0x10] sm:$0xf]
  %v24 = vld [vmem:[%s1 + $0x14] sm:$0xf]
  %v25 = vld [vmem:[%s1 + $0x18] sm:$0xf]
  %v26 = vld [vmem:[%s1 + $0x1c] sm:$0xf]
  %v27 = vld [vmem:[%s2] sm:$0x1]
  %v29 = vlaneseq
  %v30 = vshrl.u32 %v29, 7
  %v31 = vsub.s32 0, %v30
  %v32 = vrot.slane %v27, %v31
  %v36 = vunpack.c.l.b16 %v17
  %v37 = vunpack.c.l.b16 %v18
  %v38 = vpack.c.b16 %v37, %v36
  %v47 = vunpack.c.l.b16 %v19
  %v48 = vunpack.c.l.b16 %v20
  %v49 = vunpack.c.l.b16 %v21
  %v50 = vunpack.c.l.b16 %v22
  %v51 = vunpack.c.l.b16 %v23
  %v52 = vunpack.c.l.b16 %v24
  %v53 = vunpack.c.l.b16 %v25
  %v54 = vunpack.c.l.b16 %v26
  %v55 = vpack.c.b16 %v48, %v47
  %v56 = vpack.c.b16 %v50, %v49
  %v57 = vpack.c.b16 %v52, %v51
  %v58 = vpack.c.b16 %v54, %v53
  %vm63 = vcmask 523264
  %v65 = vsel %vm63, %v38, 0
  %67 = vmatprep.subr.bf16.mxu0 0
  %68 = vmatpush1.bf16.msra.mxu0 %v55
  %69 = vmatprep.subr.bf16.mxu0 0
  %70 = vmatpush1.bf16.msra.mxu0 %v56
  %71 = vmatprep.subr.bf16.mxu0 0
  %72 = vmatpush1.bf16.msra.mxu0 %v57
  %73 = vmatprep.subr.bf16.mxu0 0
  %74 = vmatpush1.bf16.msra.mxu0 %v58
  %75 = vmatprep.subr.bf16.mxu0 0
  %76 = vmatpush1.bf16.msra.mxu0 0
  %77 = vmatprep.subr.bf16.mxu0 0
  %78 = vmatpush1.bf16.msra.mxu0 0
  %79 = vmatprep.subr.bf16.mxu0 0
  %80 = vmatpush1.bf16.msra.mxu0 0
  %81 = vmatprep.subr.bf16.mxu0 0
  %82 = vmatpush1.bf16.msra.mxu0 0
  %83 = vmatprep.subr.bf16.mxu0 0
  %84 = vmatpush1.bf16.msra.mxu0 0
  %85 = vmatprep.subr.bf16.mxu0 0
  %86 = vmatpush1.bf16.msra.mxu0 0
  %87 = vmatprep.subr.bf16.mxu0 0
  %88 = vmatpush1.bf16.msra.mxu0 0
  %89 = vmatprep.subr.bf16.mxu0 0
  %90 = vmatpush1.bf16.msra.mxu0 0
  %91 = vmatprep.subr.bf16.mxu0 0
  %92 = vmatpush1.bf16.msra.mxu0 0
  %93 = vmatprep.subr.bf16.mxu0 0
  %94 = vmatpush1.bf16.msra.mxu0 0
  %95 = vmatprep.subr.bf16.mxu0 0
  %96 = vmatpush1.bf16.msra.mxu0 0
  %97 = vmatprep.subr.bf16.mxu0 0
  %98 = vmatpush1.bf16.msra.mxu0 0
  %99 = vmatprep.mubr.bf16.mxu0 0
  %100 = vmatmul.mubr.bf16.gmra.mrb[0].mxu0 %v65
  %v101 = vpop.f32.mrb[0].mxu0
  %v102 = vadd.f32 %v32, %v101
  %v103 = vpop.f32.mrb[0].mxu0
  %v104 = vpop.f32.mrb[0].mxu0
  %v105 = vadd.f32 %v32, %v104
  %v106 = vpop.f32.mrb[0].mxu0
  %107 = vdwg.mxu0
  %vm108 = vcmask 261120
  %109 = vst.msk [vmem:[%s3] sm:$0xff] %vm108, %v102
  %110 = vst.msk [vmem:[%s3 + $0x8] sm:$0xff] %vm108, %v105
  // Predicated region
  $region14: #{_lambda_.20} parent=0 // pred_check
    _
  $region15: #{_lambda_.20} parent=0 // pred_check_branch
    %112 = sbr.rel (0) target = $region17
  $region16: #{_lambda_.20} parent=0 // pred_region
    _
  $region17: #{_lambda_.20} parent=0 // pred_fallthru
    _
  // Predicated region
  $region18: #{_lambda_.20} parent=0 // pred_check
    _
  $region19: #{_lambda_.20} parent=0 // pred_check_branch
    %114 = sbr.rel (0) target = $region21
  $region20: #{_lambda_.20} parent=0 // pred_region
    _
  $region21: #{_lambda_.20} parent=0 // pred_fallthru
    _

// kernel: _lambda_.22
$region0: #{_lambda_.22}
  #allocation0 [shape = 'u32[]', space=smem, size = 0x4, offset = 0x4, fixed_abs, tag = 'smem constant byte address 0x4 - core index']
  #allocation1 [shape = 'u32[144,128]{1,0:T(1,128)}', space=vmem, size = 0x12000, scoped, tag = 'internal scratch']
  %s0 = inlined_call_operand.vmem [shape: bf16[16,32], index: 0, kind: input, shape index: {}]
  %s1 = inlined_call_operand.vmem [shape: bf16[32,32], index: 1, kind: input, shape index: {}]
  %s2 = inlined_call_operand.vmem [shape: f32[16,32], index: 2, kind: input, shape index: {}]
  %s3 = inlined_call_operand.vmem [shape: f32[16,32], index: 3, kind: output, shape index: {}]
  %s4 = sld [smem:[#allocation0]]
  $region22: #{_lambda_.22} parent=0
    _
  %s6 = ssub.s32 1, %s4
  %s7 = scalar_select 0, %s6, %s4
  // Predicated region
  $region2: #{_lambda_.22} parent=0 // pred_check
    _
  $region3: #{_lambda_.22} parent=0 // pred_check_branch
    %9 = sbr.rel (0) target = $region5
  $region4: #{_lambda_.22} parent=0 // pred_region
    _
  $region5: #{_lambda_.22} parent=0 // pred_fallthru
    _
  // Predicated region
  $region6: #{_lambda_.22} parent=0 // pred_check
    _
  $region7: #{_lambda_.22} parent=0 // pred_check_branch
    %11 = sbr.rel (0) target = $region9
  $region8: #{_lambda_.22} parent=0 // pred_region
    _
  $region9: #{_lambda_.22} parent=0 // pred_fallthru
    _
  // Predicated region
  $region10: #{_lambda_.22} parent=0 // pred_check
    _
  $region11: #{_lambda_.22} parent=0 // pred_check_branch
    %13 = sbr.rel (0) target = $region13
  $region12: #{_lambda_.22} parent=0 // pred_region
    _
  $region13: #{_lambda_.22} parent=0 // pred_fallthru
    _
  %v15 = vld [vmem:[%s0] sm:$0xf]
  %v16 = vld [vmem:[%s0 + $0x4] sm:$0xf]
  %v17 = vld [vmem:[%s1] sm:$0xf]
  %v18 = vld [vmem:[%s1 + $0x4] sm:$0xf]
  %v19 = vld [vmem:[%s1 + $0x8] sm:$0xf]
  %v20 = vld [vmem:[%s1 + $0xc] sm:$0xf]
  %v21 = vld [vmem:[%s2] sm:$0xff]
  %v22 = vld [vmem:[%s2 + $0x8] sm:$0xff]
  %v25 = vunpack.c.l.b16 %v15
  %v26 = vunpack.c.l.b16 %v16
  %v27 = vpack.c.b16 %v26, %v25
  %v32 = vunpack.c.l.b16 %v17
  %v33 = vunpack.c.l.b16 %v18
  %v34 = vunpack.c.l.b16 %v19
  %v35 = vunpack.c.l.b16 %v20
  %v36 = vpack.c.b16 %v33, %v32
  %v37 = vpack.c.b16 %v35, %v34
  %vm40 = vcmask 261120
  %v42 = vsel %vm40, %v27, 0
  %44 = vmatprep.subr.bf16.mxu0 0
  %45 = vmatpush1.bf16.msra.mxu0 %v36
  %46 = vmatprep.subr.bf16.mxu0 0
  %47 = vmatpush1.bf16.msra.mxu0 %v37
  %48 = vmatprep.subr.bf16.mxu0 0
  %49 = vmatpush1.bf16.msra.mxu0 0
  %50 = vmatprep.subr.bf16.mxu0 0
  %51 = vmatpush1.bf16.msra.mxu0 0
  %52 = vmatprep.subr.bf16.mxu0 0
  %53 = vmatpush1.bf16.msra.mxu0 0
  %54 = vmatprep.subr.bf16.mxu0 0
  %55 = vmatpush1.bf16.msra.mxu0 0
  %56 = vmatprep.subr.bf16.mxu0 0
  %57 = vmatpush1.bf16.msra.mxu0 0
  %58 = vmatprep.subr.bf16.mxu0 0
  %59 = vmatpush1.bf16.msra.mxu0 0
  %60 = vmatprep.subr.bf16.mxu0 0
  %61 = vmatpush1.bf16.msra.mxu0 0
  %62 = vmatprep.subr.bf16.mxu0 0
  %63 = vmatpush1.bf16.msra.mxu0 0
  %64 = vmatprep.subr.bf16.mxu0 0
  %65 = vmatpush1.bf16.msra.mxu0 0
  %66 = vmatprep.subr.bf16.mxu0 0
  %67 = vmatpush1.bf16.msra.mxu0 0
  %68 = vmatprep.subr.bf16.mxu0 0
  %69 = vmatpush1.bf16.msra.mxu0 0
  %70 = vmatprep.subr.bf16.mxu0 0
  %71 = vmatpush1.bf16.msra.mxu0 0
  %72 = vmatprep.subr.bf16.mxu0 0
  %73 = vmatpush1.bf16.msra.mxu0 0
  %74 = vmatprep.subr.bf16.mxu0 0
  %75 = vmatpush1.bf16.msra.mxu0 0
  %76 = vmatprep.mubr.bf16.mxu0 0
  %77 = vmatmul.mubr.bf16.gmra.mrb[0].mxu0 %v42
  %v78 = vpop.f32.mrb[0].mxu0
  %v79 = vadd.f32 %v21, %v78
  %v80 = vpop.f32.mrb[0].mxu0
  %v81 = vpop.f32.mrb[0].mxu0
  %v82 = vadd.f32 %v22, %v81
  %v83 = vpop.f32.mrb[0].mxu0
  %84 = vdwg.mxu0
  %85 = vst.msk [vmem:[%s3] sm:$0xff] %vm40, %v79
  %86 = vst.msk [vmem:[%s3 + $0x8] sm:$0xff] %vm40, %v82
  // Predicated region
  $region14: #{_lambda_.22} parent=0 // pred_check
    _
  $region15: #{_lambda_.22} parent=0 // pred_check_branch
    %88 = sbr.rel (0) target = $region17
  $region16: #{_lambda_.22} parent=0 // pred_region
    _
  $region17: #{_lambda_.22} parent=0 // pred_fallthru
    _
  // Predicated region
  $region18: #{_lambda_.22} parent=0 // pred_check
    _
  $region19: #{_lambda_.22} parent=0 // pred_check_branch
    %90 = sbr.rel (0) target = $region21
  $region20: #{_lambda_.22} parent=0 // pred_region
    _
  $region21: #{_lambda_.22} parent=0 // pred_fallthru
    _

// kernel: _lambda_.23
$region0: #{_lambda_.23}
  #allocation0 [shape = 'u32[]', space=smem, size = 0x4, offset = 0x4, fixed_abs, tag = 'smem constant byte address 0x4 - core index']
  #allocation1 [shape = 'u32[144,128]{1,0:T(1,128)}', space=vmem, size = 0x12000, scoped, tag = 'internal scratch']
  %s0 = inlined_call_operand.vmem [shape: bf16[16,64], index: 0, kind: input, shape index: {}]
  %s1 = inlined_call_operand.vmem [shape: bf16[64,128], index: 1, kind: input, shape index: {}]
  %s2 = inlined_call_operand.vmem [shape: bf16[16,128], index: 2, kind: output, shape index: {}]
  %s3 = sld [smem:[#allocation0]]
  $region18: #{_lambda_.23} parent=0
    _
  %s5 = ssub.s32 1, %s3
  %s6 = scalar_select 0, %s5, %s3
  // Predicated region
  $region2: #{_lambda_.23} parent=0 // pred_check
    _
  $region3: #{_lambda_.23} parent=0 // pred_check_branch
    %8 = sbr.rel (0) target = $region5
  $region4: #{_lambda_.23} parent=0 // pred_region
    _
  $region5: #{_lambda_.23} parent=0 // pred_fallthru
    _
  // Predicated region
  $region6: #{_lambda_.23} parent=0 // pred_check
    _
  $region7: #{_lambda_.23} parent=0 // pred_check_branch
    %10 = sbr.rel (0) target = $region9
  $region8: #{_lambda_.23} parent=0 // pred_region
    _
  $region9: #{_lambda_.23} parent=0 // pred_fallthru
    _
  %v12 = vld [vmem:[%s0] sm:$0xf]
  %v13 = vld [vmem:[%s0 + $0x4] sm:$0xf]
  %v14 = vld [vmem:[%s1] sm:$0xf]
  %v15 = vld [vmem:[%s1 + $0x4] sm:$0xf]
  %v16 = vld [vmem:[%s1 + $0x8] sm:$0xf]
  %v17 = vld [vmem:[%s1 + $0xc] sm:$0xf]
  %v18 = vld [vmem:[%s1 + $0x10] sm:$0xf]
  %v19 = vld [vmem:[%s1 + $0x14] sm:$0xf]
  %v20 = vld [vmem:[%s1 + $0x18] sm:$0xf]
  %v21 = vld [vmem:[%s1 + $0x1c] sm:$0xf]
  %v24 = vunpack.c.l.b16 %v12
  %v25 = vunpack.c.l.b16 %v13
  %v26 = vpack.c.b16 %v25, %v24
  %v35 = vunpack.c.l.b16 %v14
  %v36 = vunpack.c.l.b16 %v15
  %v37 = vunpack.c.l.b16 %v16
  %v38 = vunpack.c.l.b16 %v17
  %v39 = vunpack.c.l.b16 %v18
  %v40 = vunpack.c.l.b16 %v19
  %v41 = vunpack.c.l.b16 %v20
  %v42 = vunpack.c.l.b16 %v21
  %v43 = vpack.c.b16 %v36, %v35
  %v44 = vpack.c.b16 %v38, %v37
  %v45 = vpack.c.b16 %v40, %v39
  %v46 = vpack.c.b16 %v42, %v41
  %vm51 = vcmask 523264
  %v53 = vsel %vm51, %v26, 0
  %55 = vmatprep.subr.bf16.mxu0 0
  %56 = vmatpush1.bf16.msra.mxu0 %v43
  %57 = vmatprep.subr.bf16.mxu0 0
  %58 = vmatpush1.bf16.msra.mxu0 %v44
  %59 = vmatprep.subr.bf16.mxu0 0
  %60 = vmatpush1.bf16.msra.mxu0 %v45
  %61 = vmatprep.subr.bf16.mxu0 0
  %62 = vmatpush1.bf16.msra.mxu0 %v46
  %63 = vmatprep.subr.bf16.mxu0 0
  %64 = vmatpush1.bf16.msra.mxu0 0
  %65 = vmatprep.subr.bf16.mxu0 0
  %66 = vmatpush1.bf16.msra.mxu0 0
  %67 = vmatprep.subr.bf16.mxu0 0
  %68 = vmatpush1.bf16.msra.mxu0 0
  %69 = vmatprep.subr.bf16.mxu0 0
  %70 = vmatpush1.bf16.msra.mxu0 0
  %71 = vmatprep.subr.bf16.mxu0 0
  %72 = vmatpush1.bf16.msra.mxu0 0
  %73 = vmatprep.subr.bf16.mxu0 0
  %74 = vmatpush1.bf16.msra.mxu0 0
  %75 = vmatprep.subr.bf16.mxu0 0
  %76 = vmatpush1.bf16.msra.mxu0 0
  %77 = vmatprep.subr.bf16.mxu0 0
  %78 = vmatpush1.bf16.msra.mxu0 0
  %79 = vmatprep.subr.bf16.mxu0 0
  %80 = vmatpush1.bf16.msra.mxu0 0
  %81 = vmatprep.subr.bf16.mxu0 0
  %82 = vmatpush1.bf16.msra.mxu0 0
  %83 = vmatprep.subr.bf16.mxu0 0
  %84 = vmatpush1.bf16.msra.mxu0 0
  %85 = vmatprep.subr.bf16.mxu0 0
  %86 = vmatpush1.bf16.msra.mxu0 0
  %87 = vmatprep.mubr.bf16.mxu0 0
  %88 = vmatmul.mubr.bf16.gmra.mrb[0].mxu0 %v53
  %v89 = vpop.f32.mrb[0].mxu0
  %v90 = vadd.f32 0.0, %v89
  %v91 = vpop.f32.mrb[0].mxu0
  %v92 = vpop.f32.mrb[0].mxu0
  %v93 = vadd.f32 0.0, %v92
  %v94 = vpop.f32.mrb[0].mxu0
  %95 = vdwg.mxu0
  %v96 = vpack.c.bf16 %v93, %v90
  %v98 = vunpack.c.l.b16 %v96
  %v99 = vunpack.c.h.b16 %v96
  %v100 = vpack.c.b16 %v98, %v98
  %v101 = vpack.c.b16 %v99, %v99
  %104 = vst [vmem:[%s2] sm:$0xf] %v100
  %105 = vst [vmem:[%s2 + $0x4] sm:$0xf] %v101
  // Predicated region
  $region10: #{_lambda_.23} parent=0 // pred_check
    _
  $region11: #{_lambda_.23} parent=0 // pred_check_branch
    %107 = sbr.rel (0) target = $region13
  $region12: #{_lambda_.23} parent=0 // pred_region
    _
  $region13: #{_lambda_.23} parent=0 // pred_fallthru
    _
  // Predicated region
  $region14: #{_lambda_.23} parent=0 // pred_check
    _
  $region15: #{_lambda_.23} parent=0 // pred_check_branch
    %109 = sbr.rel (0) target = $region17
  $region16: #{_lambda_.23} parent=0 // pred_region
    _
  $region17: #{_lambda_.23} parent=0 // pred_fallthru
    _

// kernel: _lambda_.21
$region0: #{_lambda_.21}
  #allocation0 [shape = 'u32[]', space=smem, size = 0x4, offset = 0x4, fixed_abs, tag = 'smem constant byte address 0x4 - core index']
  #allocation1 [shape = 'u32[144,128]{1,0:T(1,128)}', space=vmem, size = 0x12000, scoped, tag = 'internal scratch']
  %s0 = inlined_call_operand.vmem [shape: bf16[2,2,8,16], index: 0, kind: input, shape index: {}]
  %s1 = inlined_call_operand.vmem [shape: bf16[2,2,8,16], index: 1, kind: input, shape index: {}]
  %s2 = inlined_call_operand.vmem [shape: bf16[2,2,8,16], index: 2, kind: input, shape index: {}]
  %s3 = inlined_call_operand.vmem [shape: f32[2,2,8,16], index: 3, kind: input, shape index: {}]
  %s4 = inlined_call_operand.vmem [shape: bf16[2,2,8,16], index: 4, kind: input, shape index: {}]
  %s5 = inlined_call_operand.vmem [shape: f32[2,1,16], index: 5, kind: input, shape index: {}]
  %s6 = inlined_call_operand.vmem [shape: f32[2,1,16], index: 6, kind: input, shape index: {}]
  %s7 = inlined_call_operand.vmem [shape: f32[2,1,16], index: 7, kind: input, shape index: {}]
  %s8 = inlined_call_operand.vmem [shape: f32[2,2,16,16], index: 8, kind: input, shape index: {}]
  %s9 = inlined_call_operand.vmem [shape: bf16[2,2,8,16], index: 9, kind: output, shape index: {0}]
  %s10 = inlined_call_operand.vmem [shape: f32[2,2,16,16], index: 10, kind: output, shape index: {1}]
  %11 = xla_tuple %s9, %s10
  %s12 = sld [smem:[#allocation0]]
  $region81: #{_lambda_.21} parent=0
    _
  %s14 = ssub.s32 1, %s12
  %s15 = scalar_select 0, %s14, %s12
  loop: start=0, step=1, limit=6
  $region2: #{_lambda_.21} parent=0 // loop_pre_header
    _
  $region3: #{_lambda_.21} parent=0 // loop_header
    %s17 = sphi 0, %s21
    %p18 = scmp.ge.s32.totalorder %s17, 6
    %s24 = sphi 0, %s43
    %s25 = sphi 0, %s39
    %s26 = sphi 0, %s35
    %s27 = sphi 0, %s24
    %s28 = sphi 0, %s25
    %s29 = sphi 0, %s26
    %s30 = sphi 0, %s27
    %s31 = sphi 0, %s28
    %s32 = sphi 0, %s29
    %s50 = sphi 0, %s52
    %s53 = sphi 0, %s50
    %s54 = sphi 0, %s53
    %s70 = sphi 0, %s54
    %s80 = sphi 0, %s82
    %s83 = sphi 0, %s80
    %s84 = sphi 0, %s83
    %s100 = sphi 0, %s84
    %s110 = sphi 0, %s112
    %s113 = sphi 0, %s110
    %s114 = sphi 0, %s113
    %s130 = sphi 0, %s114
    %s140 = sphi 0, %s142
    %s143 = sphi 0, %s140
    %s144 = sphi 0, %s143
    %s160 = sphi 0, %s144
    %s170 = sphi 0, %s172
    %s173 = sphi 0, %s170
    %s174 = sphi 0, %s173
    %s190 = sphi 0, %s174
    %s196 = sphi 0, %s198
    %s199 = sphi 0, %s196
    %s200 = sphi 0, %s199
    %s216 = sphi 0, %s200
    %s222 = sphi 0, %s224
    %s225 = sphi 0, %s222
    %s226 = sphi 0, %s225
    %s242 = sphi 0, %s226
    %s248 = sphi 0, %s250
    %s251 = sphi 0, %s248
    %s252 = sphi 0, %s251
    %s268 = sphi 0, %s252
    %s276 = sphi 0, %s278
    %s279 = sphi 0, %s276
    %s280 = sphi 0, %s279
    %s296 = sphi 0, %s280
    %s306 = sphi 0, %s308
    %s309 = sphi 0, %s306
    %s310 = sphi 0, %s309
    %s326 = sphi 0, %s310
    %s334 = sphi 0, %s336
    %s337 = sphi 0, %s334
    %s338 = sphi 0, %s337
    %s354 = sphi 0, %s338
  $region4: #{_lambda_.21} parent=0 // loop_header_branch
    %20 = sbr.rel (%p18) target = $region8
  $region5: #{_lambda_.21} parent=0 // loop_body
    %s22 = ssub.s32 %s17, 1
    %s23 = ssub.s32 %s17, 2
    %s33 = sadd.s32 1, %s26
    %p34 = scmp.ge.s32.totalorder %s33, 1
    %s35 = scalar_select %p34, 0, %s33
    %s36 = sadd.s32 1, %s25
    %s37 = scalar_select %p34, %s36, %s25
    %p38 = scmp.ge.s32.totalorder %s37, 2
    %s39 = scalar_select %p38, 0, %s37
    %s40 = sadd.s32 1, %s24
    %s41 = scalar_select %p38, %s40, %s24
    %p42 = scmp.ge.s32.totalorder %s41, 2
    %s43 = scalar_select %p42, 0, %s41
    %s44 = ssub.s32 %s24, %s43
    %s45 = ssub.s32 %s25, %s39
    %s46 = sor.u32 %s44, %s45
    %s47 = ssub.s32 %s26, %s35
    %s48 = sor.u32 %s46, %s47
    %p49 = scmp.eq.s32.totalorder %s48, 0
    %s51 = sadd.s32 %s50, 1
    %s52 = scalar_select %p49, %s50, %s51
    %p55 = pneg %p49
    %p56 = scmp.eq.s32.totalorder %s17, 3
    %p57 = por %p55, %p56
    %p58 = scmp.ne.s32.totalorder %s50, %s53
    %p59 = scmp.eq.s32.totalorder %s17, 0
    %p60 = por %p58, %p59
    %p61 = scmp.ne.s32.totalorder %s50, %s53
    %p62 = scmp.eq.s32.totalorder %s22, 3
    %p63 = por %p61, %p62
    %p64 = scmp.ne.s32.totalorder %s53, %s54
    %p65 = scmp.eq.s32.totalorder %s22, 0
    %p66 = por %p64, %p65
    %p67 = scmp.ne.s32.totalorder %s53, %s54
    %p68 = scmp.eq.s32.totalorder %s23, 3
    %p69 = por %p67, %p68
    %p71 = scmp.ne.s32.totalorder %s54, %s70
    %p72 = scmp.eq.s32.totalorder %s23, 0
    %p73 = por %p71, %p72
    %s74 = ssub.s32 %s24, %s43
    %s75 = ssub.s32 %s25, %s39
    %s76 = sor.u32 %s74, %s75
    %s77 = ssub.s32 %s26, %s35
    %s78 = sor.u32 %s76, %s77
    %p79 = scmp.eq.s32.totalorder %s78, 0
    %s81 = sadd.s32 %s80, 1
    %s82 = scalar_select %p79, %s80, %s81
    %p85 = pneg %p79
    %p86 = scmp.eq.s32.totalorder %s17, 3
    %p87 = por %p85, %p86
    %p88 = scmp.ne.s32.totalorder %s80, %s83
    %p89 = scmp.eq.s32.totalorder %s17, 0
    %p90 = por %p88, %p89
    %p91 = scmp.ne.s32.totalorder %s80, %s83
    %p92 = scmp.eq.s32.totalorder %s22, 3
    %p93 = por %p91, %p92
    %p94 = scmp.ne.s32.totalorder %s83, %s84
    %p95 = scmp.eq.s32.totalorder %s22, 0
    %p96 = por %p94, %p95
    %p97 = scmp.ne.s32.totalorder %s83, %s84
    %p98 = scmp.eq.s32.totalorder %s23, 3
    %p99 = por %p97, %p98
    %p101 = scmp.ne.s32.totalorder %s84, %s100
    %p102 = scmp.eq.s32.totalorder %s23, 0
    %p103 = por %p101, %p102
    %s104 = ssub.s32 %s24, %s43
    %s105 = ssub.s32 %s25, %s39
    %s106 = sor.u32 %s104, %s105
    %s107 = ssub.s32 %s26, %s35
    %s108 = sor.u32 %s106, %s107
    %p109 = scmp.eq.s32.totalorder %s108, 0
    %s111 = sadd.s32 %s110, 1
    %s112 = scalar_select %p109, %s110, %s111
    %p115 = pneg %p109
    %p116 = scmp.eq.s32.totalorder %s17, 3
    %p117 = por %p115, %p116
    %p118 = scmp.ne.s32.totalorder %s110, %s113
    %p119 = scmp.eq.s32.totalorder %s17, 0
    %p120 = por %p118, %p119
    %p121 = scmp.ne.s32.totalorder %s110, %s113
    %p122 = scmp.eq.s32.totalorder %s22, 3
    %p123 = por %p121, %p122
    %p124 = scmp.ne.s32.totalorder %s113, %s114
    %p125 = scmp.eq.s32.totalorder %s22, 0
    %p126 = por %p124, %p125
    %p127 = scmp.ne.s32.totalorder %s113, %s114
    %p128 = scmp.eq.s32.totalorder %s23, 3
    %p129 = por %p127, %p128
    %p131 = scmp.ne.s32.totalorder %s114, %s130
    %p132 = scmp.eq.s32.totalorder %s23, 0
    %p133 = por %p131, %p132
    %s134 = ssub.s32 %s24, %s43
    %s135 = ssub.s32 %s25, %s39
    %s136 = sor.u32 %s134, %s135
    %s137 = ssub.s32 %s26, %s35
    %s138 = sor.u32 %s136, %s137
    %p139 = scmp.eq.s32.totalorder %s138, 0
    %s141 = sadd.s32 %s140, 1
    %s142 = scalar_select %p139, %s140, %s141
    %p145 = pneg %p139
    %p146 = scmp.eq.s32.totalorder %s17, 3
    %p147 = por %p145, %p146
    %p148 = scmp.ne.s32.totalorder %s140, %s143
    %p149 = scmp.eq.s32.totalorder %s17, 0
    %p150 = por %p148, %p149
    %p151 = scmp.ne.s32.totalorder %s140, %s143
    %p152 = scmp.eq.s32.totalorder %s22, 3
    %p153 = por %p151, %p152
    %p154 = scmp.ne.s32.totalorder %s143, %s144
    %p155 = scmp.eq.s32.totalorder %s22, 0
    %p156 = por %p154, %p155
    %p157 = scmp.ne.s32.totalorder %s143, %s144
    %p158 = scmp.eq.s32.totalorder %s23, 3
    %p159 = por %p157, %p158
    %p161 = scmp.ne.s32.totalorder %s144, %s160
    %p162 = scmp.eq.s32.totalorder %s23, 0
    %p163 = por %p161, %p162
    %s164 = ssub.s32 %s24, %s43
    %s165 = ssub.s32 %s25, %s39
    %s166 = sor.u32 %s164, %s165
    %s167 = ssub.s32 %s26, %s35
    %s168 = sor.u32 %s166, %s167
    %p169 = scmp.eq.s32.totalorder %s168, 0
    %s171 = sadd.s32 %s170, 1
    %s172 = scalar_select %p169, %s170, %s171
    %p175 = pneg %p169
    %p176 = scmp.eq.s32.totalorder %s17, 3
    %p177 = por %p175, %p176
    %p178 = scmp.ne.s32.totalorder %s170, %s173
    %p179 = scmp.eq.s32.totalorder %s17, 0
    %p180 = por %p178, %p179
    %p181 = scmp.ne.s32.totalorder %s170, %s173
    %p182 = scmp.eq.s32.totalorder %s22, 3
    %p183 = por %p181, %p182
    %p184 = scmp.ne.s32.totalorder %s173, %s174
    %p185 = scmp.eq.s32.totalorder %s22, 0
    %p186 = por %p184, %p185
    %p187 = scmp.ne.s32.totalorder %s173, %s174
    %p188 = scmp.eq.s32.totalorder %s23, 3
    %p189 = por %p187, %p188
    %p191 = scmp.ne.s32.totalorder %s174, %s190
    %p192 = scmp.eq.s32.totalorder %s23, 0
    %p193 = por %p191, %p192
    %s194 = ssub.s32 %s25, %s39
    %p195 = scmp.eq.s32.totalorder %s194, 0
    %s197 = sadd.s32 %s196, 1
    %s198 = scalar_select %p195, %s196, %s197
    %p201 = pneg %p195
    %p202 = scmp.eq.s32.totalorder %s17, 3
    %p203 = por %p201, %p202
    %p204 = scmp.ne.s32.totalorder %s196, %s199
    %p205 = scmp.eq.s32.totalorder %s17, 0
    %p206 = por %p204, %p205
    %p207 = scmp.ne.s32.totalorder %s196, %s199
    %p208 = scmp.eq.s32.totalorder %s22, 3
    %p209 = por %p207, %p208
    %p210 = scmp.ne.s32.totalorder %s199, %s200
    %p211 = scmp.eq.s32.totalorder %s22, 0
    %p212 = por %p210, %p211
    %p213 = scmp.ne.s32.totalorder %s199, %s200
    %p214 = scmp.eq.s32.totalorder %s23, 3
    %p215 = por %p213, %p214
    %p217 = scmp.ne.s32.totalorder %s200, %s216
    %p218 = scmp.eq.s32.totalorder %s23, 0
    %p219 = por %p217, %p218
    %s220 = ssub.s32 %s25, %s39
    %p221 = scmp.eq.s32.totalorder %s220, 0
    %s223 = sadd.s32 %s222, 1
    %s224 = scalar_select %p221, %s222, %s223
    %p227 = pneg %p221
    %p228 = scmp.eq.s32.totalorder %s17, 3
    %p229 = por %p227, %p228
    %p230 = scmp.ne.s32.totalorder %s222, %s225
    %p231 = scmp.eq.s32.totalorder %s17, 0
    %p232 = por %p230, %p231
    %p233 = scmp.ne.s32.totalorder %s222, %s225
    %p234 = scmp.eq.s32.totalorder %s22, 3
    %p235 = por %p233, %p234
    %p236 = scmp.ne.s32.totalorder %s225, %s226
    %p237 = scmp.eq.s32.totalorder %s22, 0
    %p238 = por %p236, %p237
    %p239 = scmp.ne.s32.totalorder %s225, %s226
    %p240 = scmp.eq.s32.totalorder %s23, 3
    %p241 = por %p239, %p240
    %p243 = scmp.ne.s32.totalorder %s226, %s242
    %p244 = scmp.eq.s32.totalorder %s23, 0
    %p245 = por %p243, %p244
    %s246 = ssub.s32 %s25, %s39
    %p247 = scmp.eq.s32.totalorder %s246, 0
    %s249 = sadd.s32 %s248, 1
    %s250 = scalar_select %p247, %s248, %s249
    %p253 = pneg %p247
    %p254 = scmp.eq.s32.totalorder %s17, 3
    %p255 = por %p253, %p254
    %p256 = scmp.ne.s32.totalorder %s248, %s251
    %p257 = scmp.eq.s32.totalorder %s17, 0
    %p258 = por %p256, %p257
    %p259 = scmp.ne.s32.totalorder %s248, %s251
    %p260 = scmp.eq.s32.totalorder %s22, 3
    %p261 = por %p259, %p260
    %p262 = scmp.ne.s32.totalorder %s251, %s252
    %p263 = scmp.eq.s32.totalorder %s22, 0
    %p264 = por %p262, %p263
    %p265 = scmp.ne.s32.totalorder %s251, %s252
    %p266 = scmp.eq.s32.totalorder %s23, 3
    %p267 = por %p265, %p266
    %p269 = scmp.ne.s32.totalorder %s252, %s268
    %p270 = scmp.eq.s32.totalorder %s23, 0
    %p271 = por %p269, %p270
    %s272 = ssub.s32 %s24, %s43
    %s273 = ssub.s32 %s25, %s39
    %s274 = sor.u32 %s272, %s273
    %p275 = scmp.eq.s32.totalorder %s274, 0
    %s277 = sadd.s32 %s276, 1
    %s278 = scalar_select %p275, %s276, %s277
    %p281 = pneg %p275
    %p282 = scmp.eq.s32.totalorder %s17, 3
    %p283 = por %p281, %p282
    %p284 = scmp.ne.s32.totalorder %s276, %s279
    %p285 = scmp.eq.s32.totalorder %s17, 0
    %p286 = por %p284, %p285
    %p287 = scmp.ne.s32.totalorder %s276, %s279
    %p288 = scmp.eq.s32.totalorder %s22, 3
    %p289 = por %p287, %p288
    %p290 = scmp.ne.s32.totalorder %s279, %s280
    %p291 = scmp.eq.s32.totalorder %s22, 0
    %p292 = por %p290, %p291
    %p293 = scmp.ne.s32.totalorder %s279, %s280
    %p294 = scmp.eq.s32.totalorder %s23, 3
    %p295 = por %p293, %p294
    %p297 = scmp.ne.s32.totalorder %s280, %s296
    %p298 = scmp.eq.s32.totalorder %s23, 0
    %p299 = por %p297, %p298
    %s300 = ssub.s32 %s24, %s43
    %s301 = ssub.s32 %s25, %s39
    %s302 = sor.u32 %s300, %s301
    %s303 = ssub.s32 %s26, %s35
    %s304 = sor.u32 %s302, %s303
    %p305 = scmp.eq.s32.totalorder %s304, 0
    %s307 = sadd.s32 %s306, 1
    %s308 = scalar_select %p305, %s306, %s307
    %p311 = pneg %p305
    %p312 = scmp.eq.s32.totalorder %s17, 3
    %p313 = por %p311, %p312
    %p314 = scmp.ne.s32.totalorder %s306, %s309
    %p315 = scmp.eq.s32.totalorder %s17, 0
    %p316 = por %p314, %p315
    %p317 = scmp.ne.s32.totalorder %s306, %s309
    %p318 = scmp.eq.s32.totalorder %s22, 3
    %p319 = por %p317, %p318
    %p320 = scmp.ne.s32.totalorder %s309, %s310
    %p321 = scmp.eq.s32.totalorder %s22, 0
    %p322 = por %p320, %p321
    %p323 = scmp.ne.s32.totalorder %s309, %s310
    %p324 = scmp.eq.s32.totalorder %s23, 3
    %p325 = por %p323, %p324
    %p327 = scmp.ne.s32.totalorder %s310, %s326
    %p328 = scmp.eq.s32.totalorder %s23, 0
    %p329 = por %p327, %p328
    %s330 = ssub.s32 %s24, %s43
    %s331 = ssub.s32 %s25, %s39
    %s332 = sor.u32 %s330, %s331
    %p333 = scmp.eq.s32.totalorder %s332, 0
    %s335 = sadd.s32 %s334, 1
    %s336 = scalar_select %p333, %s334, %s335
    %p339 = pneg %p333
    %p340 = scmp.eq.s32.totalorder %s17, 3
    %p341 = por %p339, %p340
    %p342 = scmp.ne.s32.totalorder %s334, %s337
    %p343 = scmp.eq.s32.totalorder %s17, 0
    %p344 = por %p342, %p343
    %p345 = scmp.ne.s32.totalorder %s334, %s337
    %p346 = scmp.eq.s32.totalorder %s22, 3
    %p347 = por %p345, %p346
    %p348 = scmp.ne.s32.totalorder %s337, %s338
    %p349 = scmp.eq.s32.totalorder %s22, 0
    %p350 = por %p348, %p349
    %p351 = scmp.ne.s32.totalorder %s337, %s338
    %p352 = scmp.eq.s32.totalorder %s23, 3
    %p353 = por %p351, %p352
    %p355 = scmp.ne.s32.totalorder %s338, %s354
    %p356 = scmp.eq.s32.totalorder %s23, 0
    %p357 = por %p355, %p356
    %p358 = scmp.le.s32.totalorder 1, %s17
    %p359 = scmp.lt.s32.totalorder %s17, 5
    %p360 = pnand %p358, %p359
    %p361 = pneg %p360
    // Predicated region
    $region9: #{_lambda_.21} parent=5 // pred_check
      _
    $region10: #{_lambda_.21} parent=5 // pred_check_branch
      %363 = sbr.rel (%p360) target = $region12
    $region11: #{_lambda_.21} parent=5 // pred_region
      %s364 = ssub.s32 %s17, 1
    $region12: #{_lambda_.21} parent=5 // pred_fallthru
      _
    %p365 = scmp.lt.s32.totalorder %s17, 4
    // Predicated region
    $region13: #{_lambda_.21} parent=5 // pred_check
      %p366 = pneg %p365
    $region14: #{_lambda_.21} parent=5 // pred_check_branch
      %368 = sbr.rel (%p366) target = $region16
    $region15: #{_lambda_.21} parent=5 // pred_region
      // Predicated region
      $region17: #{_lambda_.21} parent=15 // pred_check
        %p369 = pneg %p60
      $region18: #{_lambda_.21} parent=15 // pred_check_branch
        %371 = sbr.rel (%p369) target = $region20
      $region19: #{_lambda_.21} parent=15 // pred_region
        %p372 = scmp.lt.s32.totalorder %s24, 1
        %s373 = scalar_select %p372, %s24, 1
        %p374 = scmp.lt.s32.totalorder %s25, 1
        %s375 = scalar_select %p374, %s25, 1
        %p376 = scmp.lt.s32.totalorder %s26, 0
        %s377 = scalar_select %p376, %s26, 0
        %s378 = sadd.s32 %s377, %s375
        %s379 = smul.addr %s373, 2
        %s380 = sadd.s32 %s378, %s379
        %s381 = smul.addr %s380, 4
        %s382 = scalar_lea.vmem %s0, %s381
      $region20: #{_lambda_.21} parent=15 // pred_fallthru
        _
      // Predicated region
      $region21: #{_lambda_.21} parent=15 // pred_check
        %p383 = pneg %p90
      $region22: #{_lambda_.21} parent=15 // pred_check_branch
        %385 = sbr.rel (%p383) target = $region24
      $region23: #{_lambda_.21} parent=15 // pred_region
        %p386 = scmp.lt.s32.totalorder %s24, 1
        %s387 = scalar_select %p386, %s24, 1
        %p388 = scmp.lt.s32.totalorder %s25, 1
        %s389 = scalar_select %p388, %s25, 1
        %p390 = scmp.lt.s32.totalorder %s26, 0
        %s391 = scalar_select %p390, %s26, 0
        %s392 = sadd.s32 %s391, %s389
        %s393 = smul.addr %s387, 2
        %s394 = sadd.s32 %s392, %s393
        %s395 = smul.addr %s394, 4
        %s396 = scalar_lea.vmem %s1, %s395
      $region24: #{_lambda_.21} parent=15 // pred_fallthru
        _
      // Predicated region
      $region25: #{_lambda_.21} parent=15 // pred_check
        %p397 = pneg %p120
      $region26: #{_lambda_.21} parent=15 // pred_check_branch
        %399 = sbr.rel (%p397) target = $region28
      $region27: #{_lambda_.21} parent=15 // pred_region
        %p400 = scmp.lt.s32.totalorder %s24, 1
        %s401 = scalar_select %p400, %s24, 1
        %p402 = scmp.lt.s32.totalorder %s25, 1
        %s403 = scalar_select %p402, %s25, 1
        %p404 = scmp.lt.s32.totalorder %s26, 0
        %s405 = scalar_select %p404, %s26, 0
        %s406 = sadd.s32 %s405, %s403
        %s407 = smul.addr %s401, 2
        %s408 = sadd.s32 %s406, %s407
        %s409 = smul.addr %s408, 4
        %s410 = scalar_lea.vmem %s2, %s409
      $region28: #{_lambda_.21} parent=15 // pred_fallthru
        _
      // Predicated region
      $region29: #{_lambda_.21} parent=15 // pred_check
        %p411 = pneg %p150
      $region30: #{_lambda_.21} parent=15 // pred_check_branch
        %413 = sbr.rel (%p411) target = $region32
      $region31: #{_lambda_.21} parent=15 // pred_region
        %p414 = scmp.lt.s32.totalorder %s24, 1
        %s415 = scalar_select %p414, %s24, 1
        %p416 = scmp.lt.s32.totalorder %s25, 1
        %s417 = scalar_select %p416, %s25, 1
        %p418 = scmp.lt.s32.totalorder %s26, 0
        %s419 = scalar_select %p418, %s26, 0
        %s420 = sadd.s32 %s419, %s417
        %s421 = smul.addr %s415, 2
        %s422 = sadd.s32 %s420, %s421
        %s423 = smul.addr %s422, 8
        %s424 = scalar_lea.vmem %s3, %s423
      $region32: #{_lambda_.21} parent=15 // pred_fallthru
        _
      // Predicated region
      $region33: #{_lambda_.21} parent=15 // pred_check
        %p425 = pneg %p180
      $region34: #{_lambda_.21} parent=15 // pred_check_branch
        %427 = sbr.rel (%p425) target = $region36
      $region35: #{_lambda_.21} parent=15 // pred_region
        %p428 = scmp.lt.s32.totalorder %s24, 1
        %s429 = scalar_select %p428, %s24, 1
        %p430 = scmp.lt.s32.totalorder %s25, 1
        %s431 = scalar_select %p430, %s25, 1
        %p432 = scmp.lt.s32.totalorder %s26, 0
        %s433 = scalar_select %p432, %s26, 0
        %s434 = sadd.s32 %s433, %s431
        %s435 = smul.addr %s429, 2
        %s436 = sadd.s32 %s434, %s435
        %s437 = smul.addr %s436, 4
        %s438 = scalar_lea.vmem %s4, %s437
      $region36: #{_lambda_.21} parent=15 // pred_fallthru
        _
      // Predicated region
      $region37: #{_lambda_.21} parent=15 // pred_check
        %p439 = pneg %p206
      $region38: #{_lambda_.21} parent=15 // pred_check_branch
        %441 = sbr.rel (%p439) target = $region40
      $region39: #{_lambda_.21} parent=15 // pred_region
        %p442 = scmp.lt.s32.totalorder %s25, 1
        %s443 = scalar_select %p442, %s25, 1
        %s444 = scalar_lea.vmem %s5, %s443
      $region40: #{_lambda_.21} parent=15 // pred_fallthru
        _
      // Predicated region
      $region41: #{_lambda_.21} parent=15 // pred_check
        %p445 = pneg %p232
      $region42: #{_lambda_.21} parent=15 // pred_check_branch
        %447 = sbr.rel (%p445) target = $region44
      $region43: #{_lambda_.21} parent=15 // pred_region
        %p448 = scmp.lt.s32.totalorder %s25, 1
        %s449 = scalar_select %p448, %s25, 1
        %s450 = scalar_lea.vmem %s6, %s449
      $region44: #{_lambda_.21} parent=15 // pred_fallthru
        _
      // Predicated region
      $region45: #{_lambda_.21} parent=15 // pred_check
        %p451 = pneg %p258
      $region46: #{_lambda_.21} parent=15 // pred_check_branch
        %453 = sbr.rel (%p451) target = $region48
      $region47: #{_lambda_.21} parent=15 // pred_region
        %p454 = scmp.lt.s32.totalorder %s25, 1
        %s455 = scalar_select %p454, %s25, 1
        %s456 = scalar_lea.vmem %s7, %s455
      $region48: #{_lambda_.21} parent=15 // pred_fallthru
        _
      // Predicated region
      $region49: #{_lambda_.21} parent=15 // pred_check
        %p457 = pneg %p286
      $region50: #{_lambda_.21} parent=15 // pred_check_branch
        %459 = sbr.rel (%p457) target = $region52
      $region51: #{_lambda_.21} parent=15 // pred_region
        %p460 = scmp.lt.s32.totalorder %s24, 1
        %s461 = scalar_select %p460, %s24, 1
        %p462 = scmp.lt.s32.totalorder %s25, 1
        %s463 = scalar_select %p462, %s25, 1
        %s464 = smul.addr %s463, 2
        %s465 = smul.addr %s461, 4
        %s466 = sadd.s32 %s464, %s465
        %s467 = smul.addr %s466, 8
        %s468 = scalar_lea.vmem %s8, %s467
      $region52: #{_lambda_.21} parent=15 // pred_fallthru
        _
    $region16: #{_lambda_.21} parent=5 // pred_fallthru
      _
    %p469 = scmp.le.s32.totalorder 1, %s17
    %p470 = scmp.lt.s32.totalorder %s17, 5
    %p471 = pnand %p469, %p470
    %p472 = pneg %p471
    // Predicated region
    $region53: #{_lambda_.21} parent=5 // pred_check
      _
    $region54: #{_lambda_.21} parent=5 // pred_check_branch
      %474 = sbr.rel (%p471) target = $region56
    $region55: #{_lambda_.21} parent=5 // pred_region
      %s475 = ssub.s32 %s17, 1
      %p476 = scmp.lt.s32.totalorder %s27, 1
      %s477 = scalar_select %p476, %s27, 1
      %p478 = scmp.lt.s32.totalorder %s28, 1
      %s479 = scalar_select %p478, %s28, 1
      %p480 = scmp.lt.s32.totalorder %s29, 0
      %s481 = scalar_select %p480, %s29, 0
      %s482 = sadd.s32 %s481, %s479
      %s483 = smul.addr %s477, 2
      %s484 = sadd.s32 %s482, %s483
      %s485 = smul.addr %s484, 4
      %s486 = scalar_lea.vmem %s0, %s485
      %p487 = pneg %p66
      %p488 = pneg %p63
      %p489 = scmp.lt.s32.totalorder %s27, 1
      %s490 = scalar_select %p489, %s27, 1
      %p491 = scmp.lt.s32.totalorder %s28, 1
      %s492 = scalar_select %p491, %s28, 1
      %p493 = scmp.lt.s32.totalorder %s29, 0
      %s494 = scalar_select %p493, %s29, 0
      %s495 = sadd.s32 %s494, %s492
      %s496 = smul.addr %s490, 2
      %s497 = sadd.s32 %s495, %s496
      %s498 = smul.addr %s497, 4
      %s499 = scalar_lea.vmem %s1, %s498
      %p500 = pneg %p96
      %p501 = pneg %p93
      %p502 = scmp.lt.s32.totalorder %s27, 1
      %s503 = scalar_select %p502, %s27, 1
      %p504 = scmp.lt.s32.totalorder %s28, 1
      %s505 = scalar_select %p504, %s28, 1
      %p506 = scmp.lt.s32.totalorder %s29, 0
      %s507 = scalar_select %p506, %s29, 0
      %s508 = sadd.s32 %s507, %s505
      %s509 = smul.addr %s503, 2
      %s510 = sadd.s32 %s508, %s509
      %s511 = smul.addr %s510, 4
      %s512 = scalar_lea.vmem %s2, %s511
      %p513 = pneg %p126
      %p514 = pneg %p123
      %p515 = scmp.lt.s32.totalorder %s27, 1
      %s516 = scalar_select %p515, %s27, 1
      %p517 = scmp.lt.s32.totalorder %s28, 1
      %s518 = scalar_select %p517, %s28, 1
      %p519 = scmp.lt.s32.totalorder %s29, 0
      %s520 = scalar_select %p519, %s29, 0
      %s521 = sadd.s32 %s520, %s518
      %s522 = smul.addr %s516, 2
      %s523 = sadd.s32 %s521, %s522
      %s524 = smul.addr %s523, 8
      %s525 = scalar_lea.vmem %s3, %s524
      %p526 = pneg %p156
      %p527 = pneg %p153
      %p528 = scmp.lt.s32.totalorder %s27, 1
      %s529 = scalar_select %p528, %s27, 1
      %p530 = scmp.lt.s32.totalorder %s28, 1
      %s531 = scalar_select %p530, %s28, 1
      %p532 = scmp.lt.s32.totalorder %s29, 0
      %s533 = scalar_select %p532, %s29, 0
      %s534 = sadd.s32 %s533, %s531
      %s535 = smul.addr %s529, 2
      %s536 = sadd.s32 %s534, %s535
      %s537 = smul.addr %s536, 4
      %s538 = scalar_lea.vmem %s4, %s537
      %p539 = pneg %p186
      %p540 = pneg %p183
      %p541 = scmp.lt.s32.totalorder %s28, 1
      %s542 = scalar_select %p541, %s28, 1
      %s543 = scalar_lea.vmem %s5, %s542
      %p544 = pneg %p212
      %p545 = pneg %p209
      %p546 = scmp.lt.s32.totalorder %s28, 1
      %s547 = scalar_select %p546, %s28, 1
      %s548 = scalar_lea.vmem %s6, %s547
      %p549 = pneg %p238
      %p550 = pneg %p235
      %p551 = scmp.lt.s32.totalorder %s28, 1
      %s552 = scalar_select %p551, %s28, 1
      %s553 = scalar_lea.vmem %s7, %s552
      %p554 = pneg %p264
      %p555 = pneg %p261
      %p556 = scmp.lt.s32.totalorder %s27, 1
      %s557 = scalar_select %p556, %s27, 1
      %p558 = scmp.lt.s32.totalorder %s28, 1
      %s559 = scalar_select %p558, %s28, 1
      %s560 = smul.addr %s559, 2
      %s561 = smul.addr %s557, 4
      %s562 = sadd.s32 %s560, %s561
      %s563 = smul.addr %s562, 8
      %s564 = scalar_lea.vmem %s8, %s563
      %p565 = pneg %p292
      %p566 = pneg %p289
      %p567 = pneg %p322
      %p568 = pneg %p319
      %p569 = scmp.lt.s32.totalorder %s27, 1
      %s570 = scalar_select %p569, %s27, 1
      %p571 = scmp.lt.s32.totalorder %s28, 1
      %s572 = scalar_select %p571, %s28, 1
      %p573 = scmp.lt.s32.totalorder %s29, 0
      %s574 = scalar_select %p573, %s29, 0
      %s575 = sadd.s32 %s574, %s572
      %s576 = smul.addr %s570, 2
      %s577 = sadd.s32 %s575, %s576
      %s578 = smul.addr %s577, 4
      %s579 = scalar_lea.vmem %s9, %s578
      %p580 = pneg %p350
      %p581 = pneg %p347
      %p582 = scmp.lt.s32.totalorder %s27, 1
      %s583 = scalar_select %p582, %s27, 1
      %p584 = scmp.lt.s32.totalorder %s28, 1
      %s585 = scalar_select %p584, %s28, 1
      %s586 = smul.addr %s585, 2
      %s587 = smul.addr %s583, 4
      %s588 = sadd.s32 %s586, %s587
      %s589 = smul.addr %s588, 8
      %s590 = scalar_lea.vmem %s10, %s589
      %p591 = scmp.lt.s32.totalorder %s27, 1
      %s592 = scalar_select %p591, %s27, 1
      %p593 = scmp.lt.s32.totalorder %s28, 1
      %s594 = scalar_select %p593, %s28, 1
      %p595 = scmp.lt.s32.totalorder %s29, 0
      %s596 = scalar_select %p595, %s29, 0
      %s597 = sadd.s32 %s596, %s594
      %s598 = smul.addr %s592, 2
      %s599 = sadd.s32 %s597, %s598
      %s600 = smul.addr %s599, 4
      %s601 = scalar_lea.vmem %s0, %s600
      %p602 = scmp.lt.s32.totalorder %s27, 1
      %s603 = scalar_select %p602, %s27, 1
      %p604 = scmp.lt.s32.totalorder %s28, 1
      %s605 = scalar_select %p604, %s28, 1
      %p606 = scmp.lt.s32.totalorder %s29, 0
      %s607 = scalar_select %p606, %s29, 0
      %s608 = sadd.s32 %s607, %s605
      %s609 = smul.addr %s603, 2
      %s610 = sadd.s32 %s608, %s609
      %s611 = smul.addr %s610, 4
      %s612 = scalar_lea.vmem %s1, %s611
      %p613 = scmp.lt.s32.totalorder %s27, 1
      %s614 = scalar_select %p613, %s27, 1
      %p615 = scmp.lt.s32.totalorder %s28, 1
      %s616 = scalar_select %p615, %s28, 1
      %p617 = scmp.lt.s32.totalorder %s29, 0
      %s618 = scalar_select %p617, %s29, 0
      %s619 = sadd.s32 %s618, %s616
      %s620 = smul.addr %s614, 2
      %s621 = sadd.s32 %s619, %s620
      %s622 = smul.addr %s621, 4
      %s623 = scalar_lea.vmem %s2, %s622
      %p624 = scmp.lt.s32.totalorder %s27, 1
      %s625 = scalar_select %p624, %s27, 1
      %p626 = scmp.lt.s32.totalorder %s28, 1
      %s627 = scalar_select %p626, %s28, 1
      %p628 = scmp.lt.s32.totalorder %s29, 0
      %s629 = scalar_select %p628, %s29, 0
      %s630 = sadd.s32 %s629, %s627
      %s631 = smul.addr %s625, 2
      %s632 = sadd.s32 %s630, %s631
      %s633 = smul.addr %s632, 8
      %s634 = scalar_lea.vmem %s3, %s633
      %p635 = scmp.lt.s32.totalorder %s27, 1
      %s636 = scalar_select %p635, %s27, 1
      %p637 = scmp.lt.s32.totalorder %s28, 1
      %s638 = scalar_select %p637, %s28, 1
      %p639 = scmp.lt.s32.totalorder %s29, 0
      %s640 = scalar_select %p639, %s29, 0
      %s641 = sadd.s32 %s640, %s638
      %s642 = smul.addr %s636, 2
      %s643 = sadd.s32 %s641, %s642
      %s644 = smul.addr %s643, 4
      %s645 = scalar_lea.vmem %s4, %s644
      %p646 = scmp.lt.s32.totalorder %s28, 1
      %s647 = scalar_select %p646, %s28, 1
      %s648 = scalar_lea.vmem %s5, %s647
      %p649 = scmp.lt.s32.totalorder %s28, 1
      %s650 = scalar_select %p649, %s28, 1
      %s651 = scalar_lea.vmem %s6, %s650
      %p652 = scmp.lt.s32.totalorder %s28, 1
      %s653 = scalar_select %p652, %s28, 1
      %s654 = scalar_lea.vmem %s7, %s653
      %p655 = scmp.lt.s32.totalorder %s27, 1
      %s656 = scalar_select %p655, %s27, 1
      %p657 = scmp.lt.s32.totalorder %s28, 1
      %s658 = scalar_select %p657, %s28, 1
      %s659 = smul.addr %s658, 2
      %s660 = smul.addr %s656, 4
      %s661 = sadd.s32 %s659, %s660
      %s662 = smul.addr %s661, 8
      %s663 = scalar_lea.vmem %s8, %s662
      %p664 = scmp.lt.s32.totalorder %s27, 1
      %s665 = scalar_select %p664, %s27, 1
      %p666 = scmp.lt.s32.totalorder %s28, 1
      %s667 = scalar_select %p666, %s28, 1
      %p668 = scmp.lt.s32.totalorder %s29, 0
      %s669 = scalar_select %p668, %s29, 0
      %s670 = sadd.s32 %s669, %s667
      %s671 = smul.addr %s665, 2
      %s672 = sadd.s32 %s670, %s671
      %s673 = smul.addr %s672, 4
      %s674 = scalar_lea.vmem %s9, %s673
      %p675 = scmp.lt.s32.totalorder %s27, 1
      %s676 = scalar_select %p675, %s27, 1
      %p677 = scmp.lt.s32.totalorder %s28, 1
      %s678 = scalar_select %p677, %s28, 1
      %s679 = smul.addr %s678, 2
      %s680 = smul.addr %s676, 4
      %s681 = sadd.s32 %s679, %s680
      %s682 = smul.addr %s681, 8
      %s683 = scalar_lea.vmem %s10, %s682
      %p685 = scmp.eq.s32.totalorder %s29, 0
      // Predicated region
      $region57: #{_lambda_.21} parent=55 // pred_check
        %p686 = pneg %p685
      $region58: #{_lambda_.21} parent=55 // pred_check_branch
        %688 = sbr.rel (%p686) target = $region60
      $region59: #{_lambda_.21} parent=55 // pred_region
        %v689 = vld [vmem:[%s663] sm:$0xff]
        %v690 = vld [vmem:[%s663 + $0x8] sm:$0xff]
        %vm691 = vcmask 130048
        %692 = vst.msk [vmem:[%s683] sm:$0xff] %vm691, %v689
        %693 = vst.msk [vmem:[%s683 + $0x8] sm:$0xff] %vm691, %v690
      $region60: #{_lambda_.21} parent=55 // pred_fallthru
        _
      %v694 = vld [vmem:[%s634] sm:$0xff]
      %v695 = vmul.f32 %v694, 1.442695
      %v696 = vpow.pop %v695
      %v697 = vsub.f32 0.0, %v696
      %v698 = vlaneseq
      %v699 = vshrl.u32 %v698, 7
      %v700 = vlaneseq
      %v701 = vand.u32 %v700, 127
      %vm702 = vcmp.le.s32.totalorder %v701, %v699
      %v703 = vsel %vm702, 1, 0
      %v704 = vcvt.s32.f32 %v703
      %vm705 = vcmp.lt.s32.totalorder %v701, %v699
      %vm706 = vcmask 64512
      %v708 = vsel %vm706, %v704, 0
      %710 = vmatprep.subr.mxu0 0.0
      %711 = vmatpush1.msra.mxu0 %v697
      %712 = vmatprep.subr.mxu0 0.0
      %713 = vmatpush1.msra.mxu0 0.0
      %714 = vmatprep.subr.mxu0 0.0
      %715 = vmatpush1.msra.mxu0 0.0
      %716 = vmatprep.subr.mxu0 0.0
      %717 = vmatpush1.msra.mxu0 0.0
      %718 = vmatprep.subr.mxu0 0.0
      %719 = vmatpush1.msra.mxu0 0.0
      %720 = vmatprep.subr.mxu0 0.0
      %721 = vmatpush1.msra.mxu0 0.0
      %722 = vmatprep.subr.mxu0 0.0
      %723 = vmatpush1.msra.mxu0 0.0
      %724 = vmatprep.subr.mxu0 0.0
      %725 = vmatpush1.msra.mxu0 0.0
      %726 = vmatprep.subr.mxu0 0.0
      %727 = vmatpush1.msra.mxu0 0.0
      %728 = vmatprep.subr.mxu0 0.0
      %729 = vmatpush1.msra.mxu0 0.0
      %730 = vmatprep.subr.mxu0 0.0
      %731 = vmatpush1.msra.mxu0 0.0
      %732 = vmatprep.subr.mxu0 0.0
      %733 = vmatpush1.msra.mxu0 0.0
      %734 = vmatprep.subr.mxu0 0.0
      %735 = vmatpush1.msra.mxu0 0.0
      %736 = vmatprep.subr.mxu0 0.0
      %737 = vmatpush1.msra.mxu0 0.0
      %738 = vmatprep.subr.mxu0 0.0
      %739 = vmatpush1.msra.mxu0 0.0
      %740 = vmatprep.subr.mxu0 0.0
      %741 = vmatpush1.msra.mxu0 0.0
      %742 = vmatprep.subr.mxu0 0.0
      %743 = vmatpush1.msra.mxu0 0.0
      %744 = vmatprep.subr.mxu0 0.0
      %745 = vmatpush1.msra.mxu0 0.0
      %746 = vmatprep.subr.mxu0 0.0
      %747 = vmatpush1.msra.mxu0 0.0
      %748 = vmatprep.subr.mxu0 0.0
      %749 = vmatpush1.msra.mxu0 0.0
      %750 = vmatprep.subr.mxu0 0.0
      %751 = vmatpush1.msra.mxu0 0.0
      %752 = vmatprep.subr.mxu0 0.0
      %753 = vmatpush1.msra.mxu0 0.0
      %754 = vmatprep.subr.mxu0 0.0
      %755 = vmatpush1.msra.mxu0 0.0
      %756 = vmatprep.subr.mxu0 0.0
      %757 = vmatpush1.msra.mxu0 0.0
      %758 = vmatprep.subr.mxu0 0.0
      %759 = vmatpush1.msra.mxu0 0.0
      %760 = vmatprep.subr.mxu0 0.0
      %761 = vmatpush1.msra.mxu0 0.0
      %762 = vmatprep.subr.mxu0 0.0
      %763 = vmatpush1.msra.mxu0 0.0
      %764 = vmatprep.subr.mxu0 0.0
      %765 = vmatpush1.msra.mxu0 0.0
      %766 = vmatprep.subr.mxu0 0.0
      %767 = vmatpush1.msra.mxu0 0.0
      %768 = vmatprep.subr.mxu0 0.0
      %769 = vmatpush1.msra.mxu0 0.0
      %770 = vmatprep.subr.mxu0 0.0
      %771 = vmatpush1.msra.mxu0 0.0
      %772 = vmatprep.subr.mxu0 0.0
      %773 = vmatpush1.msra.mxu0 0.0
      %774 = vmatprep.mubr.f32.mxu0 0.0
      %775 = vmatmul.mubr.f32.gmra.mrb[0].mxu0 %v708
      %v776 = vpop.f32.mrb[0].mxu0
      %v777 = vadd.f32 0.0, %v776
      %v778 = vpop.f32.mrb[0].mxu0
      %779 = vdwg.mxu0
      %v780 = vsub.f32 %v777, %v697
      %v781 = vld [vmem:[%s601] sm:$0xf]
      %v782 = vunpack.c.l.bf16 %v781
      %v783 = vld [vmem:[%s612] sm:$0xf]
      %v784 = vunpack.c.l.bf16 %v783
      %v785 = vld [vmem:[%s623] sm:$0xf]
      %v786 = vunpack.c.l.bf16 %v785
      %v787 = vld [vmem:[%s683] sm:$0xff]
      %v788 = vld [vmem:[%s683 + $0x8] sm:$0xff]
      %v789 = vmul.f32 %v780, 1.442695
      %v790 = vpow.pop %v789
      %v791 = vmul.f32 %v782, %v790
      %v792 = vpack.c.bf16 %v791, %v791
      %v793 = vsub.f32 0.0, %v777
      %v794 = vmul.f32 %v793, 1.442695
      %v795 = vpow.pop %v794
      %v796 = vmul.f32 %v784, %v795
      %v797 = vpack.c.bf16 %v796, %v796
      %v798 = vlaneseq
      %v799 = vshrl.u32 %v798, 7
      %v800 = vsub.s32 7, %v799
      %v801 = vrot.slane %v777, %v800
      %v802 = vsub.f32 %v801, %v777
      %v803 = vmul.f32 %v802, 1.442695
      %v804 = vpow.pop %v803
      %v805 = vmul.f32 %v784, %v804
      %v806 = vpack.c.bf16 %v805, %v805
      %v807 = vpack.c.bf16 %v788, %v787
      %vm808 = vcmask 130048
      %v810 = vsel %vm808, %v792, 0
      %v813 = vsel %vm808, %v797, 0
      %815 = vmatprep.subr.bf16.mxu0 0
      %816 = vmatpush1.bf16.xpose.msra.mxu0 %v813
      %817 = vmatprep.subr.bf16.mxu0 0
      %818 = vmatpush1.bf16.xpose.msra.mxu0 0
      %819 = vmatprep.subr.bf16.mxu0 0
      %820 = vmatpush1.bf16.xpose.msra.mxu0 0
      %821 = vmatprep.subr.bf16.mxu0 0
      %822 = vmatpush1.bf16.xpose.msra.mxu0 0
      %823 = vmatprep.subr.bf16.mxu0 0
      %824 = vmatpush1.bf16.xpose.msra.mxu0 0
      %825 = vmatprep.subr.bf16.mxu0 0
      %826 = vmatpush1.bf16.xpose.msra.mxu0 0
      %827 = vmatprep.subr.bf16.mxu0 0
      %828 = vmatpush1.bf16.xpose.msra.mxu0 0
      %829 = vmatprep.subr.bf16.mxu0 0
      %830 = vmatpush1.bf16.xpose.msra.mxu0 0
      %831 = vmatprep.subr.bf16.mxu0 0
      %832 = vmatpush1.bf16.xpose.msra.mxu0 0
      %833 = vmatprep.subr.bf16.mxu0 0
      %834 = vmatpush1.bf16.xpose.msra.mxu0 0
      %835 = vmatprep.subr.bf16.mxu0 0
      %836 = vmatpush1.bf16.xpose.msra.mxu0 0
      %837 = vmatprep.subr.bf16.mxu0 0
      %838 = vmatpush1.bf16.xpose.msra.mxu0 0
      %839 = vmatprep.subr.bf16.mxu0 0
      %840 = vmatpush1.bf16.xpose.msra.mxu0 0
      %841 = vmatprep.subr.bf16.mxu0 0
      %842 = vmatpush1.bf16.xpose.msra.mxu0 0
      %843 = vmatprep.subr.bf16.mxu0 0
      %844 = vmatpush1.bf16.xpose.msra.mxu0 0
      %845 = vmatprep.subr.bf16.mxu0 0
      %846 = vmatpush1.bf16.xpose.msra.mxu0 0
      %847 = vmatprep.mubr.bf16.mxu0 0
      %848 = vmatmul.mubr.bf16.gmra.mrb[0].mxu0 %v810
      %v849 = vpop.f32.mrb[0].mxu0
      %v850 = vadd.f32 0.0, %v849
      %v851 = vpop.f32.mrb[0].mxu0
      %v852 = vpop.f32.mrb[0].mxu0
      %v853 = vpop.f32.mrb[0].mxu0
      %854 = vdwg.mxu0
      %v855 = vsel %vm705, %v850, 0.0
      %v856 = vpack.c.bf16 %v855, %v855
      %v858 = vsel %vm706, %v856, 0
      %vm860 = vcmask 1043456
      %v862 = vsel %vm860, %v785, 0
      %864 = vmatprep.subr.bf16.mxu0 0
      %865 = vmatpush1.bf16.msra.mxu0 %v862
      %866 = vmatprep.subr.bf16.mxu0 0
      %867 = vmatpush1.bf16.msra.mxu0 0
      %868 = vmatprep.subr.bf16.mxu0 0
      %869 = vmatpush1.bf16.msra.mxu0 0
      %870 = vmatprep.subr.bf16.mxu0 0
      %871 = vmatpush1.bf16.msra.mxu0 0
      %872 = vmatprep.subr.bf16.mxu0 0
      %873 = vmatpush1.bf16.msra.mxu0 0
      %874 = vmatprep.subr.bf16.mxu0 0
      %875 = vmatpush1.bf16.msra.mxu0 0
      %876 = vmatprep.subr.bf16.mxu0 0
      %877 = vmatpush1.bf16.msra.mxu0 0
      %878 = vmatprep.subr.bf16.mxu0 0
      %879 = vmatpush1.bf16.msra.mxu0 0
      %880 = vmatprep.subr.bf16.mxu0 0
      %881 = vmatpush1.bf16.msra.mxu0 0
      %882 = vmatprep.subr.bf16.mxu0 0
      %883 = vmatpush1.bf16.msra.mxu0 0
      %884 = vmatprep.subr.bf16.mxu0 0
      %885 = vmatpush1.bf16.msra.mxu0 0
      %886 = vmatprep.subr.bf16.mxu0 0
      %887 = vmatpush1.bf16.msra.mxu0 0
      %888 = vmatprep.subr.bf16.mxu0 0
      %889 = vmatpush1.bf16.msra.mxu0 0
      %890 = vmatprep.subr.bf16.mxu0 0
      %891 = vmatpush1.bf16.msra.mxu0 0
      %892 = vmatprep.subr.bf16.mxu0 0
      %893 = vmatpush1.bf16.msra.mxu0 0
      %894 = vmatprep.subr.bf16.mxu0 0
      %895 = vmatpush1.bf16.msra.mxu0 0
      %896 = vmatprep.mubr.bf16.mxu0 0
      %897 = vmatmul.mubr.bf16.gmra.mrb[0].mxu0 %v858
      %v898 = vpop.f32.mrb[0].mxu0
      %v899 = vadd.f32 0.0, %v898
      %v900 = vpop.f32.mrb[0].mxu0
      %v901 = vpop.f32.mrb[0].mxu0
      %v902 = vpop.f32.mrb[0].mxu0
      %903 = vdwg.mxu0
      %v904 = vld [vmem:[%s648] sm:$0x1]
      %v906 = vlaneseq
      %v907 = vshrl.u32 %v906, 7
      %v908 = vsub.s32 0, %v907
      %v909 = vrot.slane %v904, %v908
      %v911 = vmul.f32 %v782, %v909
      %v912 = vmul.f32 %v911, %v784
      %v913 = vsel %vm808, %v912, 0.0
      %914 = vadd.xlane.f32.xlu0 %v913
      %v915 = vpop.xlane.xlu0 %914
      %v917 = vsel %vm808, %v807, 0
      %919 = vmatprep.subr.bf16.mxu0 0
      %920 = vmatpush1.bf16.xpose.msra.mxu0 %v917
      %921 = vmatprep.subr.bf16.mxu0 0
      %922 = vmatpush1.bf16.xpose.msra.mxu0 0
      %923 = vmatprep.subr.bf16.mxu0 0
      %924 = vmatpush1.bf16.xpose.msra.mxu0 0
      %925 = vmatprep.subr.bf16.mxu0 0
      %926 = vmatpush1.bf16.xpose.msra.mxu0 0
      %927 = vmatprep.subr.bf16.mxu0 0
      %928 = vmatpush1.bf16.xpose.msra.mxu0 0
      %929 = vmatprep.subr.bf16.mxu0 0
      %930 = vmatpush1.bf16.xpose.msra.mxu0 0
      %931 = vmatprep.subr.bf16.mxu0 0
      %932 = vmatpush1.bf16.xpose.msra.mxu0 0
      %933 = vmatprep.subr.bf16.mxu0 0
      %934 = vmatpush1.bf16.xpose.msra.mxu0 0
      %935 = vmatprep.subr.bf16.mxu0 0
      %936 = vmatpush1.bf16.xpose.msra.mxu0 0
      %937 = vmatprep.subr.bf16.mxu0 0
      %938 = vmatpush1.bf16.xpose.msra.mxu0 0
      %939 = vmatprep.subr.bf16.mxu0 0
      %940 = vmatpush1.bf16.xpose.msra.mxu0 0
      %941 = vmatprep.subr.bf16.mxu0 0
      %942 = vmatpush1.bf16.xpose.msra.mxu0 0
      %943 = vmatprep.subr.bf16.mxu0 0
      %944 = vmatpush1.bf16.xpose.msra.mxu0 0
      %945 = vmatprep.subr.bf16.mxu0 0
      %946 = vmatpush1.bf16.xpose.msra.mxu0 0
      %947 = vmatprep.subr.bf16.mxu0 0
      %948 = vmatpush1.bf16.xpose.msra.mxu0 0
      %949 = vmatprep.subr.bf16.mxu0 0
      %950 = vmatpush1.bf16.xpose.msra.mxu0 0
      %951 = vmatprep.mubr.bf16.mxu0 0
      %952 = vmatmul.mubr.bf16.gmra.mrb[0].mxu0 %v810
      %v953 = vpop.f32.mrb[0].mxu0
      %v954 = vadd.f32 %v899, %v953
      %v955 = vpop.f32.mrb[0].mxu0
      %v956 = vpop.f32.mrb[0].mxu0
      %v957 = vpop.f32.mrb[0].mxu0
      %958 = vdwg.mxu0
      %v959 = vmul.f32 %v915, %v786
      %v960 = vadd.f32 %v954, %v959
      %v961 = vmul.f32 %v777, 1.442695
      %v962 = vpow.pop %v961
      %v963 = vlaneseq
      %v964 = vshrl.u32 %v963, 7
      %v965 = vsub.s32 7, %v964
      %v966 = vrot.slane %v962, %v965
      %v967 = vmul.f32 %v787, %v966
      %v968 = vmul.f32 %v788, %v966
      %969 = vxpose.xlu0.c.b16.start [1/8] %v785, 128
      %970 = vxpose.xlu0.c.b16.cont [2/8] 0, 128
      %971 = vxpose.xlu0.c.b16.cont [3/8] 0, 128
      %972 = vxpose.xlu0.c.b16.cont [4/8] 0, 128
      %973 = vxpose.xlu0.c.b16.cont [5/8] 0, 128
      %974 = vxpose.xlu0.c.b16.cont [6/8] 0, 128
      %975 = vxpose.xlu0.c.b16.cont [7/8] 0, 128
      %976 = vxpose.xlu0.c.b16.end [8/8] 0, 128
      %v977 = vpop.trf.xlu0
      %v978 = vpop.trf.xlu0
      %v979 = vpop.trf.xlu0
      %v980 = vpop.trf.xlu0
      %v981 = vpop.trf.xlu0
      %v982 = vpop.trf.xlu0
      %v983 = vpop.trf.xlu0
      %v984 = vpop.trf.xlu0
      %v986 = vsel %vm706, %v977, 0
      %v989 = vsel %vm860, %v806, 0
      %991 = vmatprep.subr.bf16.mxu0 0
      %992 = vmatpush1.bf16.msra.mxu0 %v989
      %993 = vmatprep.subr.bf16.mxu0 0
      %994 = vmatpush1.bf16.msra.mxu0 0
      %995 = vmatprep.subr.bf16.mxu0 0
      %996 = vmatpush1.bf16.msra.mxu0 0
      %997 = vmatprep.subr.bf16.mxu0 0
      %998 = vmatpush1.bf16.msra.mxu0 0
      %999 = vmatprep.subr.bf16.mxu0 0
      %1000 = vmatpush1.bf16.msra.mxu0 0
      %1001 = vmatprep.subr.bf16.mxu0 0
      %1002 = vmatpush1.bf16.msra.mxu0 0
      %1003 = vmatprep.subr.bf16.mxu0 0
      %1004 = vmatpush1.bf16.msra.mxu0 0
      %1005 = vmatprep.subr.bf16.mxu0 0
      %1006 = vmatpush1.bf16.msra.mxu0 0
      %1007 = vmatprep.subr.bf16.mxu0 0
      %1008 = vmatpush1.bf16.msra.mxu0 0
      %1009 = vmatprep.subr.bf16.mxu0 0
      %1010 = vmatpush1.bf16.msra.mxu0 0
      %1011 = vmatprep.subr.bf16.mxu0 0
      %1012 = vmatpush1.bf16.msra.mxu0 0
      %1013 = vmatprep.subr.bf16.mxu0 0
      %1014 = vmatpush1.bf16.msra.mxu0 0
      %1015 = vmatprep.subr.bf16.mxu0 0
      %1016 = vmatpush1.bf16.msra.mxu0 0
      %1017 = vmatprep.subr.bf16.mxu0 0
      %1018 = vmatpush1.bf16.msra.mxu0 0
      %1019 = vmatprep.subr.bf16.mxu0 0
      %1020 = vmatpush1.bf16.msra.mxu0 0
      %1021 = vmatprep.subr.bf16.mxu0 0
      %1022 = vmatpush1.bf16.msra.mxu0 0
      %1023 = vmatprep.mubr.bf16.mxu0 0
      %1024 = vmatmul.mubr.bf16.gmra.mrb[0].mxu0 %v986
      %v1025 = vpop.f32.mrb[0].mxu0
      %v1026 = vadd.f32 0.0, %v1025
      %v1027 = vpop.f32.mrb[0].mxu0
      %v1028 = vpop.f32.mrb[0].mxu0
      %v1029 = vadd.f32 0.0, %v1028
      %v1030 = vpop.f32.mrb[0].mxu0
      %1031 = vdwg.mxu0
      %v1032 = vadd.f32 %v967, %v1026
      %v1033 = vadd.f32 %v968, %v1029
      %1034 = vst.msk [vmem:[%s683] sm:$0xff] %vm808, %v1032
      %1035 = vst.msk [vmem:[%s683 + $0x8] sm:$0xff] %vm808, %v1033
      %v1036 = vsel %vm808, %v960, 0.0
      %1037 = vadd.xlane.f32.xlu0 %v1036
      %v1038 = vpop.xlane.xlu0 %1037
      %v1039 = vrcp.pop 16.0
      %v1040 = vmul.f32 %v1038, %v1039
      %v1041 = vsub.f32 %v960, %v1040
      %v1042 = vmul.f32 %v1041, %v1041
      %v1043 = vsel %vm808, %v1042, 0.0
      %1044 = vadd.xlane.f32.xlu0 %v1043
      %v1045 = vpop.xlane.xlu0 %1044
      %v1046 = vmul.f32 %v1045, %v1039
      %v1047 = vadd.f32 %v1046, 0.00064
      %v1048 = vrsqrt.pop %v1047
      %v1049 = vmul.f32 %v1041, %v1048
      %v1050 = vld [vmem:[%s651] sm:$0x1]
      %v1052 = vlaneseq
      %v1053 = vshrl.u32 %v1052, 7
      %v1054 = vsub.s32 0, %v1053
      %v1055 = vrot.slane %v1050, %v1054
      %v1057 = vmul.f32 %v1049, %v1055
      %v1058 = vld [vmem:[%s654] sm:$0x1]
      %v1060 = vlaneseq
      %v1061 = vshrl.u32 %v1060, 7
      %v1062 = vsub.s32 0, %v1061
      %v1063 = vrot.slane %v1058, %v1062
      %v1065 = vadd.f32 %v1057, %v1063
      %v1066 = vld [vmem:[%s645] sm:$0xf]
      %v1067 = vunpack.c.l.bf16 %v1066
      %v1068 = vxor.u32 %v1067, 2147483648
      %v1069 = vmul.f32 %v1068, 1.442695
      %v1070 = vpow.pop %v1069
      %v1071 = vadd.f32 %v1070, 1.0
      %v1072 = vrcp.pop %v1071
      %v1073 = vmul.f32 1.0, %v1072
      %v1074 = vmul.f32 %v1067, %v1073
      %v1075 = vmul.f32 %v1065, %v1074
      %v1076 = vpack.c.bf16 %v1075, %v1075
      %vm1077 = vcmask 125952
      %1078 = vst.msk [vmem:[%s674] sm:$0xf] %vm1077, %v1076
      %p1079 = scmp.lt.s32.totalorder %s27, 1
      %s1080 = scalar_select %p1079, %s27, 1
      %p1081 = scmp.lt.s32.totalorder %s28, 1
      %s1082 = scalar_select %p1081, %s28, 1
      %p1083 = scmp.lt.s32.totalorder %s29, 0
      %s1084 = scalar_select %p1083, %s29, 0
      %s1085 = sadd.s32 %s1084, %s1082
      %s1086 = smul.addr %s1080, 2
      %s1087 = sadd.s32 %s1085, %s1086
      %s1088 = smul.addr %s1087, 4
      %s1089 = scalar_lea.vmem %s9, %s1088
      %p1090 = scmp.lt.s32.totalorder %s27, 1
      %s1091 = scalar_select %p1090, %s27, 1
      %p1092 = scmp.lt.s32.totalorder %s28, 1
      %s1093 = scalar_select %p1092, %s28, 1
      %s1094 = smul.addr %s1093, 2
      %s1095 = smul.addr %s1091, 4
      %s1096 = sadd.s32 %s1094, %s1095
      %s1097 = smul.addr %s1096, 8
      %s1098 = scalar_lea.vmem %s10, %s1097
      // Predicated region
      $region61: #{_lambda_.21} parent=55 // pred_check
        %p1099 = pneg %p319
      $region62: #{_lambda_.21} parent=55 // pred_check_branch
        %1101 = sbr.rel (%p1099) target = $region64
      $region63: #{_lambda_.21} parent=55 // pred_region
        _
      $region64: #{_lambda_.21} parent=55 // pred_fallthru
        _
      // Predicated region
      $region65: #{_lambda_.21} parent=55 // pred_check
        %p1102 = pneg %p347
      $region66: #{_lambda_.21} parent=55 // pred_check_branch
        %1104 = sbr.rel (%p1102) target = $region68
      $region67: #{_lambda_.21} parent=55 // pred_region
        _
      $region68: #{_lambda_.21} parent=55 // pred_fallthru
        _
    $region56: #{_lambda_.21} parent=5 // pred_fallthru
      _
    %p1105 = scmp.le.s32.totalorder 2, %s17
    // Predicated region
    $region69: #{_lambda_.21} parent=5 // pred_check
      %p1106 = pneg %p1105
    $region70: #{_lambda_.21} parent=5 // pred_check_branch
      %1108 = sbr.rel (%p1106) target = $region72
    $region71: #{_lambda_.21} parent=5 // pred_region
      %s1109 = ssub.s32 %s17, 2
      // Predicated region
      $region73: #{_lambda_.21} parent=71 // pred_check
        %p1110 = pneg %p325
      $region74: #{_lambda_.21} parent=71 // pred_check_branch
        %1112 = sbr.rel (%p1110) target = $region76
      $region75: #{_lambda_.21} parent=71 // pred_region
        %p1113 = scmp.lt.s32.totalorder %s30, 1
        %s1114 = scalar_select %p1113, %s30, 1
        %p1115 = scmp.lt.s32.totalorder %s31, 1
        %s1116 = scalar_select %p1115, %s31, 1
        %p1117 = scmp.lt.s32.totalorder %s32, 0
        %s1118 = scalar_select %p1117, %s32, 0
        %s1119 = sadd.s32 %s1118, %s1116
        %s1120 = smul.addr %s1114, 2
        %s1121 = sadd.s32 %s1119, %s1120
        %s1122 = smul.addr %s1121, 4
        %s1123 = scalar_lea.vmem %s9, %s1122
      $region76: #{_lambda_.21} parent=71 // pred_fallthru
        _
      // Predicated region
      $region77: #{_lambda_.21} parent=71 // pred_check
        %p1124 = pneg %p353
      $region78: #{_lambda_.21} parent=71 // pred_check_branch
        %1126 = sbr.rel (%p1124) target = $region80
      $region79: #{_lambda_.21} parent=71 // pred_region
        %p1127 = scmp.lt.s32.totalorder %s30, 1
        %s1128 = scalar_select %p1127, %s30, 1
        %p1129 = scmp.lt.s32.totalorder %s31, 1
        %s1130 = scalar_select %p1129, %s31, 1
        %s1131 = smul.addr %s1130, 2
        %s1132 = smul.addr %s1128, 4
        %s1133 = sadd.s32 %s1131, %s1132
        %s1134 = smul.addr %s1133, 8
        %s1135 = scalar_lea.vmem %s10, %s1134
      $region80: #{_lambda_.21} parent=71 // pred_fallthru
        _
    $region72: #{_lambda_.21} parent=5 // pred_fallthru
      _
  $region6: #{_lambda_.21} parent=0 // loop_footer
    %s21 = sadd.s32 1, %s17
  $region7: #{_lambda_.21} parent=0 // loop_footer_branch
    %16 = sbr.rel target = $region3
  $region8: #{_lambda_.21} parent=0 // loop_exit
    _

// kernel: _lambda_.24
$region0: #{_lambda_.24}
  #allocation0 [shape = 'u32[]', space=smem, size = 0x4, offset = 0x4, fixed_abs, tag = 'smem constant byte address 0x4 - core index']
  #allocation1 [shape = 'u32[144,128]{1,0:T(1,128)}', space=vmem, size = 0x12000, scoped, tag = 'internal scratch']
  %s0 = inlined_call_operand.vmem [shape: bf16[16,96], index: 0, kind: input, shape index: {}]
  %s1 = inlined_call_operand.vmem [shape: bf16[96,32], index: 1, kind: input, shape index: {}]
  %s2 = inlined_call_operand.vmem [shape: bf16[16,32], index: 2, kind: input, shape index: {}]
  %s3 = inlined_call_operand.vmem [shape: f32[16,32], index: 3, kind: input, shape index: {}]
  %s4 = inlined_call_operand.vmem [shape: f32[16,32], index: 4, kind: output, shape index: {}]
  %s5 = sld [smem:[#allocation0]]
  $region26: #{_lambda_.24} parent=0
    _
  %s7 = ssub.s32 1, %s5
  %s8 = scalar_select 0, %s7, %s5
  // Predicated region
  $region2: #{_lambda_.24} parent=0 // pred_check
    _
  $region3: #{_lambda_.24} parent=0 // pred_check_branch
    %10 = sbr.rel (0) target = $region5
  $region4: #{_lambda_.24} parent=0 // pred_region
    _
  $region5: #{_lambda_.24} parent=0 // pred_fallthru
    _
  // Predicated region
  $region6: #{_lambda_.24} parent=0 // pred_check
    _
  $region7: #{_lambda_.24} parent=0 // pred_check_branch
    %12 = sbr.rel (0) target = $region9
  $region8: #{_lambda_.24} parent=0 // pred_region
    _
  $region9: #{_lambda_.24} parent=0 // pred_fallthru
    _
  // Predicated region
  $region10: #{_lambda_.24} parent=0 // pred_check
    _
  $region11: #{_lambda_.24} parent=0 // pred_check_branch
    %14 = sbr.rel (0) target = $region13
  $region12: #{_lambda_.24} parent=0 // pred_region
    _
  $region13: #{_lambda_.24} parent=0 // pred_fallthru
    _
  // Predicated region
  $region14: #{_lambda_.24} parent=0 // pred_check
    _
  $region15: #{_lambda_.24} parent=0 // pred_check_branch
    %16 = sbr.rel (0) target = $region17
  $region16: #{_lambda_.24} parent=0 // pred_region
    _
  $region17: #{_lambda_.24} parent=0 // pred_fallthru
    _
  %v18 = vld [vmem:[%s0] sm:$0xf]
  %v19 = vld [vmem:[%s0 + $0x4] sm:$0xf]
  %v20 = vmax.bf16 %v18, 0
  %v21 = vmax.bf16 %v19, 0
  %v22 = vmul.bf16 %v20, %v20
  %v23 = vmul.bf16 %v21, %v21
  %v24 = vld [vmem:[%s1] sm:$0xf]
  %v25 = vld [vmem:[%s1 + $0x4] sm:$0xf]
  %v26 = vld [vmem:[%s1 + $0x8] sm:$0xf]
  %v27 = vld [vmem:[%s1 + $0xc] sm:$0xf]
  %v28 = vld [vmem:[%s1 + $0x10] sm:$0xf]
  %v29 = vld [vmem:[%s1 + $0x14] sm:$0xf]
  %v30 = vld [vmem:[%s1 + $0x18] sm:$0xf]
  %v31 = vld [vmem:[%s1 + $0x1c] sm:$0xf]
  %v32 = vld [vmem:[%s1 + $0x20] sm:$0xf]
  %v33 = vld [vmem:[%s1 + $0x24] sm:$0xf]
  %v34 = vld [vmem:[%s1 + $0x28] sm:$0xf]
  %v35 = vld [vmem:[%s1 + $0x2c] sm:$0xf]
  %v38 = vunpack.c.l.b16 %v22
  %v39 = vunpack.c.l.b16 %v23
  %v40 = vpack.c.b16 %v39, %v38
  %v53 = vunpack.c.l.b16 %v24
  %v54 = vunpack.c.l.b16 %v25
  %v55 = vunpack.c.l.b16 %v26
  %v56 = vunpack.c.l.b16 %v27
  %v57 = vunpack.c.l.b16 %v28
  %v58 = vunpack.c.l.b16 %v29
  %v59 = vunpack.c.l.b16 %v30
  %v60 = vunpack.c.l.b16 %v31
  %v61 = vunpack.c.l.b16 %v32
  %v62 = vunpack.c.l.b16 %v33
  %v63 = vunpack.c.l.b16 %v34
  %v64 = vunpack.c.l.b16 %v35
  %v65 = vpack.c.b16 %v54, %v53
  %v66 = vpack.c.b16 %v56, %v55
  %v67 = vpack.c.b16 %v58, %v57
  %v68 = vpack.c.b16 %v60, %v59
  %v69 = vpack.c.b16 %v62, %v61
  %v70 = vpack.c.b16 %v64, %v63
  %vm77 = vcmask 785408
  %v79 = vsel %vm77, %v40, 0
  %81 = vmatprep.subr.bf16.mxu0 0
  %82 = vmatpush1.bf16.msra.mxu0 %v65
  %83 = vmatprep.subr.bf16.mxu0 0
  %84 = vmatpush1.bf16.msra.mxu0 %v66
  %85 = vmatprep.subr.bf16.mxu0 0
  %86 = vmatpush1.bf16.msra.mxu0 %v67
  %87 = vmatprep.subr.bf16.mxu0 0
  %88 = vmatpush1.bf16.msra.mxu0 %v68
  %89 = vmatprep.subr.bf16.mxu0 0
  %90 = vmatpush1.bf16.msra.mxu0 %v69
  %91 = vmatprep.subr.bf16.mxu0 0
  %92 = vmatpush1.bf16.msra.mxu0 %v70
  %93 = vmatprep.subr.bf16.mxu0 0
  %94 = vmatpush1.bf16.msra.mxu0 0
  %95 = vmatprep.subr.bf16.mxu0 0
  %96 = vmatpush1.bf16.msra.mxu0 0
  %97 = vmatprep.subr.bf16.mxu0 0
  %98 = vmatpush1.bf16.msra.mxu0 0
  %99 = vmatprep.subr.bf16.mxu0 0
  %100 = vmatpush1.bf16.msra.mxu0 0
  %101 = vmatprep.subr.bf16.mxu0 0
  %102 = vmatpush1.bf16.msra.mxu0 0
  %103 = vmatprep.subr.bf16.mxu0 0
  %104 = vmatpush1.bf16.msra.mxu0 0
  %105 = vmatprep.subr.bf16.mxu0 0
  %106 = vmatpush1.bf16.msra.mxu0 0
  %107 = vmatprep.subr.bf16.mxu0 0
  %108 = vmatpush1.bf16.msra.mxu0 0
  %109 = vmatprep.subr.bf16.mxu0 0
  %110 = vmatpush1.bf16.msra.mxu0 0
  %111 = vmatprep.subr.bf16.mxu0 0
  %112 = vmatpush1.bf16.msra.mxu0 0
  %113 = vmatprep.mubr.bf16.mxu0 0
  %114 = vmatmul.mubr.bf16.gmra.mrb[0].mxu0 %v79
  %v115 = vpop.f32.mrb[0].mxu0
  %v116 = vadd.f32 0.0, %v115
  %v117 = vpop.f32.mrb[0].mxu0
  %v118 = vpop.f32.mrb[0].mxu0
  %v119 = vadd.f32 0.0, %v118
  %v120 = vpop.f32.mrb[0].mxu0
  %121 = vdwg.mxu0
  %v122 = vld [vmem:[%s2] sm:$0xf]
  %v123 = vld [vmem:[%s2 + $0x4] sm:$0xf]
  %v124 = vunpack.c.l.bf16 %v122
  %v125 = vunpack.c.l.bf16 %v123
  %v126 = vxor.u32 %v124, 2147483648
  %v127 = vxor.u32 %v125, 2147483648
  %v128 = vmul.f32 %v126, 1.442695
  %v129 = vpow.pop %v128
  %v130 = vmul.f32 %v127, 1.442695
  %v131 = vpow.pop %v130
  %v132 = vadd.f32 %v129, 1.0
  %v133 = vadd.f32 %v131, 1.0
  %v134 = vrcp.pop %v132
  %v135 = vmul.f32 1.0, %v134
  %v136 = vrcp.pop %v133
  %v137 = vmul.f32 1.0, %v136
  %v138 = vmul.f32 %v116, %v135
  %v139 = vmul.f32 %v119, %v137
  %v140 = vld [vmem:[%s3] sm:$0xff]
  %v141 = vld [vmem:[%s3 + $0x8] sm:$0xff]
  %v142 = vadd.f32 %v138, %v140
  %v143 = vadd.f32 %v139, %v141
  %vm144 = vcmask 261120
  %145 = vst.msk [vmem:[%s4] sm:$0xff] %vm144, %v142
  %146 = vst.msk [vmem:[%s4 + $0x8] sm:$0xff] %vm144, %v143
  // Predicated region
  $region18: #{_lambda_.24} parent=0 // pred_check
    _
  $region19: #{_lambda_.24} parent=0 // pred_check_branch
    %148 = sbr.rel (0) target = $region21
  $region20: #{_lambda_.24} parent=0 // pred_region
    _
  $region21: #{_lambda_.24} parent=0 // pred_fallthru
    _
  // Predicated region
  $region22: #{_lambda_.24} parent=0 // pred_check
    _
  $region23: #{_lambda_.24} parent=0 // pred_check_branch
    %150 = sbr.rel (0) target = $region25
  $region24: #{_lambda_.24} parent=0 // pred_region
    _
  $region25: #{_lambda_.24} parent=0 // pred_fallthru
    _

// kernel: _lambda_.33
$region0: #{_lambda_.33}
  #allocation0 [shape = 'u32[]', space=smem, size = 0x4, offset = 0x4, fixed_abs, tag = 'smem constant byte address 0x4 - core index']
  #allocation1 [shape = 'u32[144,128]{1,0:T(1,128)}', space=vmem, size = 0x12000, scoped, tag = 'internal scratch']
  %s0 = inlined_call_operand.vmem [shape: bf16[16,32], index: 0, kind: input, shape index: {}]
  %s1 = inlined_call_operand.vmem [shape: bf16[32,64], index: 1, kind: input, shape index: {}]
  %s2 = inlined_call_operand.hbm [shape: f32[16,64], index: 2, kind: output, shape index: {}]
  %s3 = sld [smem:[#allocation0]]
  $region18: #{_lambda_.33} parent=0
    _
  %s5 = ssub.s32 1, %s3
  %s6 = scalar_select 0, %s5, %s3
  $region1: #{_lambda_.33} parent=0
    #allocation2 [shape = 'u8[8192]{0}', space=vmem, size = 0x2000, scoped, tag = 'output window, operand 0, single buffered']
    #allocation3 [shape = 's32[1]{0}', space=sflag, size = 0x4, scoped, tag = 'scoped memory for _lambda_.33']
    %7 = vsyncpa [#allocation3], 0
    // Predicated region
    $region2: #{_lambda_.33} parent=1 // pred_check
      _
    $region3: #{_lambda_.33} parent=1 // pred_check_branch
      %9 = sbr.rel (0) target = $region5
    $region4: #{_lambda_.33} parent=1 // pred_region
      _
    $region5: #{_lambda_.33} parent=1 // pred_fallthru
      _
    // Predicated region
    $region6: #{_lambda_.33} parent=1 // pred_check
      _
    $region7: #{_lambda_.33} parent=1 // pred_check_branch
      %11 = sbr.rel (0) target = $region9
    $region8: #{_lambda_.33} parent=1 // pred_region
      _
    $region9: #{_lambda_.33} parent=1 // pred_fallthru
      _
    %v13 = vld [vmem:[%s0] sm:$0xf]
    %v14 = vld [vmem:[%s0 + $0x4] sm:$0xf]
    %v15 = vld [vmem:[%s1] sm:$0xf]
    %v16 = vld [vmem:[%s1 + $0x4] sm:$0xf]
    %v17 = vld [vmem:[%s1 + $0x8] sm:$0xf]
    %v18 = vld [vmem:[%s1 + $0xc] sm:$0xf]
    %v21 = vunpack.c.l.b16 %v13
    %v22 = vunpack.c.l.b16 %v14
    %v23 = vpack.c.b16 %v22, %v21
    %v28 = vunpack.c.l.b16 %v15
    %v29 = vunpack.c.l.b16 %v16
    %v30 = vunpack.c.l.b16 %v17
    %v31 = vunpack.c.l.b16 %v18
    %v32 = vpack.c.b16 %v29, %v28
    %v33 = vpack.c.b16 %v31, %v30
    %vm36 = vcmask 261120
    %v38 = vsel %vm36, %v23, 0
    %40 = vmatprep.subr.bf16.mxu0 0
    %41 = vmatpush1.bf16.msra.mxu0 %v32
    %42 = vmatprep.subr.bf16.mxu0 0
    %43 = vmatpush1.bf16.msra.mxu0 %v33
    %44 = vmatprep.subr.bf16.mxu0 0
    %45 = vmatpush1.bf16.msra.mxu0 0
    %46 = vmatprep.subr.bf16.mxu0 0
    %47 = vmatpush1.bf16.msra.mxu0 0
    %48 = vmatprep.subr.bf16.mxu0 0
    %49 = vmatpush1.bf16.msra.mxu0 0
    %50 = vmatprep.subr.bf16.mxu0 0
    %51 = vmatpush1.bf16.msra.mxu0 0
    %52 = vmatprep.subr.bf16.mxu0 0
    %53 = vmatpush1.bf16.msra.mxu0 0
    %54 = vmatprep.subr.bf16.mxu0 0
    %55 = vmatpush1.bf16.msra.mxu0 0
    %56 = vmatprep.subr.bf16.mxu0 0
    %57 = vmatpush1.bf16.msra.mxu0 0
    %58 = vmatprep.subr.bf16.mxu0 0
    %59 = vmatpush1.bf16.msra.mxu0 0
    %60 = vmatprep.subr.bf16.mxu0 0
    %61 = vmatpush1.bf16.msra.mxu0 0
    %62 = vmatprep.subr.bf16.mxu0 0
    %63 = vmatpush1.bf16.msra.mxu0 0
    %64 = vmatprep.subr.bf16.mxu0 0
    %65 = vmatpush1.bf16.msra.mxu0 0
    %66 = vmatprep.subr.bf16.mxu0 0
    %67 = vmatpush1.bf16.msra.mxu0 0
    %68 = vmatprep.subr.bf16.mxu0 0
    %69 = vmatpush1.bf16.msra.mxu0 0
    %70 = vmatprep.subr.bf16.mxu0 0
    %71 = vmatpush1.bf16.msra.mxu0 0
    %72 = vmatprep.mubr.bf16.mxu0 0
    %73 = vmatmul.mubr.bf16.gmra.mrb[0].mxu0 %v38
    %v74 = vpop.f32.mrb[0].mxu0
    %v75 = vadd.f32 0.0, %v74
    %v76 = vpop.f32.mrb[0].mxu0
    %v77 = vpop.f32.mrb[0].mxu0
    %v78 = vadd.f32 0.0, %v77
    %v79 = vpop.f32.mrb[0].mxu0
    %80 = vdwg.mxu0
    %vm81 = vcmask 523264
    %82 = vst.msk [vmem:[#allocation2] sm:$0xff] %vm81, %v75
    %83 = vst.msk [vmem:[#allocation2 + $0x8] sm:$0xff] %vm81, %v78
    // Predicated region
    $region10: #{_lambda_.33} parent=1 // pred_check
      _
    $region11: #{_lambda_.33} parent=1 // pred_check_branch
      %85 = sbr.rel (0) target = $region13
    $region12: #{_lambda_.33} parent=1 // pred_region
      %s87 = ssub.s32 256, 256
      %88 = vsyncadd [#allocation3], %s87
      %s89 = sshll.u32 [#allocation2], 4
      %s90 = int_to_ptr.vmem [resolvable:$true] %s89
      %95 = dma.vmem_to_hbm [thread:$0]  %s90, 256, %s2, [#allocation3], 128, 128, 8
    $region13: #{_lambda_.33} parent=1 // pred_fallthru
      _
    // Predicated region
    $region14: #{_lambda_.33} parent=1 // pred_check
      _
    $region15: #{_lambda_.33} parent=1 // pred_check_branch
      %97 = sbr.rel (0) target = $region17
    $region16: #{_lambda_.33} parent=1 // pred_region
      %98 = dma.done [#allocation3], 256
    $region17: #{_lambda_.33} parent=1 // pred_fallthru
      _
    %99 = vsyncpa [#allocation3], 1

</llo_original>
